<compile_context>
chip_gen: v7x
topology: tpu7x:2x2x1
jax: 0.10.0
libtpu: 0.0.40
codegen_flags: <defaults>
</compile_context>

<pallas_src>
import jax
import jax.numpy as jnp
from jax.experimental import pallas as pl
from jax.experimental.pallas import tpu as pltpu


# ---------------------------------------------------------------------------
# Kernel
# ---------------------------------------------------------------------------
def _attention_kernel(v_ref, q_ref, wv_ref, bv_ref, wq_ref, bq_ref, wl_ref,
                      out_ref, vacc_ref):
    """One (batch-tile, H-chunk, Vdim-chunk) grid step."""
    bt, K = out_ref.shape
    tH = wv_ref.shape[1]

    h_idx = pl.program_id(1)
    v_idx = pl.program_id(2)
    n_h = pl.num_programs(1)
    n_v = pl.num_programs(2)

    # New batch tile: zero the logits accumulator (the resident output block).
    @pl.when(jnp.logical_and(h_idx == 0, v_idx == 0))
    def _():
        out_ref[...] = jnp.zeros_like(out_ref)

    # New Vdim sweep: zero the pre-activation accumulator.
    @pl.when(v_idx == 0)
    def _():
        vacc_ref[...] = jnp.zeros_like(vacc_ref)

    # Partial v-projection for this Vdim chunk (MXU, bf16 x bf16 -> f32 acc).
    # Inputs arrive in their HBM dtype; the bf16 cast happens here on the VPU
    # (hidden under the MXU) instead of as a separate HBM round trip upstream.
    vacc_ref[...] += jnp.dot(v_ref[...].astype(jnp.bfloat16), wv_ref[...],
                             preferred_element_type=jnp.float32)

    # End of the Vdim sweep for this H chunk: bias + ReLU, q-projection, and the
    # fused weight-normed Linear(H -> 1) reduced over this H chunk.
    @pl.when(v_idx == n_v - 1)
    def _():
        v_proj = jnp.maximum(vacc_ref[...] + bv_ref[...], 0.0)        # (bt*K, tH) f32
        q_proj = jnp.maximum(
            jnp.dot(q_ref[...].astype(jnp.bfloat16), wq_ref[...],
                    preferred_element_type=jnp.float32) + bq_ref[...],
            0.0)                                                       # (bt, tH) f32
        # Final Linear's bias bl is a per-row constant -> cancelled by softmax.
        # r and its broadcast are computed once per (batch tile, H chunk) and
        # kept out of any inner loop (JAX does not CSE broadcast_in_dim).
        r = q_proj * wl_ref[...]                                       # (bt, tH)  VPU
        out_ref[...] += jnp.sum(v_proj.reshape(bt, K, tH) * r[:, None, :],
                                axis=-1)                               # (bt, K) VPU+XLU

    # Very last chunk for this batch tile: softmax over the K (region) axis.
    @pl.when(jnp.logical_and(h_idx == n_h - 1, v_idx == n_v - 1))
    def _():
        logits = out_ref[...]
        m = jnp.max(logits, axis=-1, keepdims=True)
        e = jnp.exp(logits - m)
        # Exact normalization: attention weights must sum to 1 (the approx EUP
        # reciprocal only achieves ~1e-3).
        out_ref[...] = e / jnp.sum(e, axis=-1, keepdims=True)


# ---------------------------------------------------------------------------
# Tiling / VMEM sizing helpers
# ---------------------------------------------------------------------------
def _tpu_vmem_capacity_bytes():
    """Per-core VMEM capacity; conservative fallback if the query fails."""
    try:
        return int(pltpu.get_tpu_info().vmem_capacity_bytes)
    except Exception:
        return 64 * 1024 * 1024  # v7x per-TensorCore VMEM (smallest current part)


def _pick_chunk(total, max_chunk=512, align=128):
    """Largest chunk <= max_chunk that is a multiple of `align` and divides
    `total`; falls back to the full dim when it is small or not 128-aligned
    (Pallas block dims must be multiples of (8, 128) or the full extent)."""
    if total <= max_chunk or total % align != 0:
        return total
    for c in range(max_chunk, align - 1, -align):
        if total % c == 0:
            return c
    return total


def _working_set_bytes(btile, K, Qdim, tV, tH, v_bytes, q_bytes):
    """Rough per-grid-step VMEM working set: double-buffered streamed blocks,
    f32 scratch accumulator and f32 epilogue temporaries."""
    bt_k = btile * K
    streamed = (bt_k * tV * v_bytes          # v block
                + tV * tH * 2                # Wv block (bf16)
                + btile * Qdim * q_bytes     # q block
                + Qdim * tH * 2              # Wq block (bf16)
                + 3 * tH * 4                 # bv, bq, wl
                + btile * K * 4)             # output block
    scratch = bt_k * tH * 4                  # pre-ReLU accumulator (f32)
    epilogue = 2 * bt_k * tH * 4             # v_proj + broadcast product temporaries
    return 2 * streamed + scratch + epilogue


def _choose_btile(B, K, Qdim, tV, tH, budget, v_bytes, q_bytes, max_btile=256):
    """Largest batch tile whose working set fits `budget`. Prefers (a) the whole
    batch in one grid step (no padding, no per-step overhead) and otherwise
    (b) a multiple of 8 that divides B (avoids the jnp.pad HBM copy of v)."""
    def fits(bt):
        return _working_set_bytes(bt, K, Qdim, tV, tH, v_bytes, q_bytes) <= budget

    if fits(B):
        return B
    bt = 8
    while bt + 8 <= max_btile and fits(bt + 8):
        bt += 8
    # TODO(synk): on 2-TensorCore parts (v7x) also prefer an even step count so
    # the "parallel" batch axis load-balances across cores.
    for cand in range(bt, max(bt // 2, 8) - 1, -8):
        if B % cand == 0:
            return cand
    return bt


# ---------------------------------------------------------------------------
# Wrapper
# ---------------------------------------------------------------------------
def new_attention(v, q, params, *, btile=None, v_chunk=None, h_chunk=None):
    """v: [B, K, Vdim], q: [B, Qdim] -> attention weights [B, K, 1] (float32)."""
    B, K, Vdim = v.shape
    Bq, Qdim = q.shape
    assert Bq == B

    wv = params["wv"].astype(jnp.bfloat16)                    # [Vdim, H]
    wq = params["wq"].astype(jnp.bfloat16)                    # [Qdim, H]
    bv = params["bv"].astype(jnp.float32).reshape(1, -1)      # [1, H]
    bq = params["bq"].astype(jnp.float32).reshape(1, -1)      # [1, H]
    wl = params["wl"].astype(jnp.float32).reshape(1, -1)      # [H, 1] -> [1, H]
    H = wv.shape[1]

    tV = v_chunk if v_chunk is not None else _pick_chunk(Vdim)
    tH = h_chunk if h_chunk is not None else _pick_chunk(H)
    assert Vdim % tV == 0 and H % tH == 0

    vmem_cap = _tpu_vmem_capacity_bytes()
    budget = int(vmem_cap * 0.7)            # headroom for pipeline bookkeeping
    if btile is None:
        btile = _choose_btile(B, K, Qdim, tV, tH, budget,
                              jnp.dtype(v.dtype).itemsize,
                              jnp.dtype(q.dtype).itemsize)

    n_b = pl.cdiv(B, btile)
    n_h = H // tH
    n_v = Vdim // tV
    Bpad = n_b * btile

    # Inputs stay in their incoming dtype (bf16 upstream is used as-is); the
    # kernel casts to bf16 on the VPU, so no wrapper-side astype HBM copy.
    v2 = v.reshape(B * K, Vdim)
    q2 = q
    if Bpad != B:
        # Zero-padded batch rows produce uniform softmax rows and are sliced off.
        # TODO(synk): a @pl.when-masked ragged last tile would avoid this copy.
        v2 = jnp.pad(v2, ((0, (Bpad - B) * K), (0, 0)))
        q2 = jnp.pad(q2, ((0, Bpad - B), (0, 0)))

    vmem_limit = int(max(32 * 1024 * 1024,
                         min(vmem_cap * 3 // 4, 100 * 1024 * 1024)))

    def run(allow_single_buffer):
        def spec(shape, index_map, single_buffer=False):
            if allow_single_buffer and single_buffer:
                # Grid-invariant operand: a single VMEM buffer is sufficient.
                return pl.BlockSpec(shape, index_map, pipeline_mode=pl.Buffered(1))
            return pl.BlockSpec(shape, index_map)

        grid_spec = pltpu.PrefetchScalarGridSpec(
            num_scalar_prefetch=0,
            grid=(n_b, n_h, n_v),
            in_specs=[
                spec((btile * K, tV), lambda b, h, vc: (b, vc)),                  # v
                spec((btile, Qdim), lambda b, h, vc: (b, 0), n_b == 1),           # q
                spec((tV, tH), lambda b, h, vc: (vc, h), n_h == 1 and n_v == 1),  # Wv
                spec((1, tH), lambda b, h, vc: (0, h), n_h == 1),                 # bv
                spec((Qdim, tH), lambda b, h, vc: (0, h), n_h == 1),              # Wq
                spec((1, tH), lambda b, h, vc: (0, h), n_h == 1),                 # bq
                spec((1, tH), lambda b, h, vc: (0, h), n_h == 1),                 # wl
            ],
            out_specs=pl.BlockSpec((btile, K), lambda b, h, vc: (b, 0)),
            scratch_shapes=[pltpu.VMEM((btile * K, tH), jnp.float32)],
        )
        return pl.pallas_call(
            _attention_kernel,
            out_shape=jax.ShapeDtypeStruct((Bpad, K), jnp.float32),
            grid_spec=grid_spec,
            compiler_params=pltpu.CompilerParams(
                dimension_semantics=("parallel", "arbitrary", "arbitrary"),
                vmem_limit_bytes=vmem_limit,
            ),
        )(v2, q2, wv, bv, wq, bq, wl)

    try:
        out2d = run(True)
    except Exception:
        # pl.Buffered(1) pipeline hint unsupported on this jax/backend: retry
        # with default double-buffering (identical results, slightly more VMEM).
        out2d = run(False)

    return out2d[:B].reshape(B, K, 1)


# ---------------------------------------------------------------------------
# Parameter init + pure-JAX reference
# ---------------------------------------------------------------------------
def _weight_norm_effective(v_raw):
    """weight_norm(dim=None): w = g * V / ||V||_F with g initialised to ||V||_F."""
    norm = jnp.sqrt(jnp.sum(v_raw * v_raw))
    g = norm
    return (g / norm) * v_raw


def init_params(key, v_dim, q_dim, num_hid):
    assert q_dim == num_hid, "final Linear(q_dim, 1) is applied to num_hid features"
    k = jax.random.split(key, 6)

    def lin(kw, kb, fan_in, fan_out):
        bound = 1.0 / float(fan_in) ** 0.5
        W = jax.random.uniform(kw, (fan_in, fan_out), jnp.float32, -bound, bound)
        b = jax.random.uniform(kb, (1, fan_out), jnp.float32, -bound, bound)
        return W, b

    wv_raw, bv = lin(k[0], k[1], v_dim, num_hid)
    wq_raw, bq = lin(k[2], k[3], q_dim, num_hid)
    wl_raw, bl = lin(k[4], k[5], num_hid, 1)
    return {
        "wv": _weight_norm_effective(wv_raw).astype(jnp.bfloat16), "bv": bv,
        "wq": _weight_norm_effective(wq_raw).astype(jnp.bfloat16), "bq": bq,
        "wl": _weight_norm_effective(wl_raw), "bl": bl,
    }


def reference(v, q, p):
    """Pure-JAX reference with the same bf16 operand quantisation the kernel uses."""
    vf = v.astype(jnp.bfloat16).astype(jnp.float32)
    qf = q.astype(jnp.bfloat16).astype(jnp.float32)
    wv = p["wv"].astype(jnp.float32)
    wq = p["wq"].astype(jnp.float32)
    v_proj = jnp.maximum(jnp.einsum("bkd,dh->bkh", vf, wv) + p["bv"], 0.0)
    q_proj = jnp.maximum(qf @ wq + p["bq"], 0.0)[:, None, :]
    joint = v_proj * q_proj                 # Dropout(0.2) == identity in eval mode
    logits = jnp.einsum("bkh,ho->bko", joint, p["wl"]) + p["bl"]
    return jax.nn.softmax(logits, axis=1)


# ---------------------------------------------------------------------------
# Test
# ---------------------------------------------------------------------------
if __name__ == "__main__":
    # Small shapes; Vdim/H = 256 so the contraction / H-chunk path can also be
    # exercised with explicit 128-wide chunks in the second call below.
    B, K, V_DIM, Q_DIM, NUM_HID = 20, 8, 256, 256, 256

    key = jax.random.PRNGKey(0)
    kv, kq, kp = jax.random.split(key, 3)
    v = jax.random.normal(kv, (B, K, V_DIM), jnp.float32)
    q = jax.random.normal(kq, (B, Q_DIM), jnp.float32)
    params = init_params(kp, V_DIM, Q_DIM, NUM_HID)

    ref = reference(v, q, params)

    # 1) Auto-tiled configuration (whole batch fits in one grid step here).
    out = jax.block_until_ready(new_attention(v, q, params))
    assert out.shape == (B, K, 1)
    assert jnp.allclose(out, ref, atol=2e-3, rtol=2e-3), "mismatch vs reference"
    assert jnp.allclose(jnp.sum(out, axis=1), 1.0, atol=1e-3), "softmax not normalised"

    # 2) Exercise the batch-tiled grid (padding path) and the Vdim / H chunked
    #    accumulators explicitly (btile=8 -> 3 steps, 128-wide chunks -> 2x2).
    out2 = jax.block_until_ready(
        new_attention(v, q, params, btile=8, v_chunk=128, h_chunk=128))
    assert out2.shape == (B, K, 1)
    assert jnp.allclose(out2, ref, atol=2e-3, rtol=2e-3), "mismatch vs reference (tiled)"
    assert jnp.allclose(jnp.sum(out2, axis=1), 1.0, atol=1e-3), "softmax not normalised (tiled)"

    print("KERNEL_OK")
</pallas_src>

<mosaic_0001>
module attributes {stable_mosaic.version = 11 : i64} {
  func.func @_attention_kernel(%arg0: i32, %arg1: i32, %arg2: i32, %arg3: memref<160x256xf32, #tpu.memory_space<vmem>>, %arg4: memref<20x256xf32, #tpu.memory_space<vmem>>, %arg5: memref<256x256xbf16, #tpu.memory_space<vmem>>, %arg6: memref<1x256xf32, #tpu.memory_space<vmem>>, %arg7: memref<256x256xbf16, #tpu.memory_space<vmem>>, %arg8: memref<1x256xf32, #tpu.memory_space<vmem>>, %arg9: memref<1x256xf32, #tpu.memory_space<vmem>>, %arg10: memref<20x8xf32, #tpu.memory_space<vmem>>, %arg11: memref<160x256xf32, #tpu.memory_space<vmem>>) attributes {dimension_semantics = [#tpu.dimension_semantics<parallel>, #tpu.dimension_semantics<arbitrary>, #tpu.dimension_semantics<arbitrary>], iteration_bounds = array<i64: 1, 1, 1>, scalar_prefetch = 0 : i64, scratch_operands = 1 : i64, tpu.core_type = #tpu.core_type<tc>, window_params = [{transform_indices = @transform_0, window_bounds = array<i64: 160, 256>}, {pipeline_mode = #tpu.pipeline_mode<synchronous>, transform_indices = @transform_1, window_bounds = array<i64: 20, 256>}, {pipeline_mode = #tpu.pipeline_mode<synchronous>, transform_indices = @transform_2, window_bounds = array<i64: 256, 256>}, {pipeline_mode = #tpu.pipeline_mode<synchronous>, transform_indices = @transform_3, window_bounds = array<i64: 1, 256>}, {pipeline_mode = #tpu.pipeline_mode<synchronous>, transform_indices = @transform_4, window_bounds = array<i64: 256, 256>}, {pipeline_mode = #tpu.pipeline_mode<synchronous>, transform_indices = @transform_5, window_bounds = array<i64: 1, 256>}, {pipeline_mode = #tpu.pipeline_mode<synchronous>, transform_indices = @transform_6, window_bounds = array<i64: 1, 256>}, {transform_indices = @transform_7, window_bounds = array<i64: 20, 8>}]} {
    %c0_i32 = arith.constant 0 : i32
    %0 = arith.cmpi eq, %arg1, %c0_i32 : i32
    %c0_i32_0 = arith.constant 0 : i32
    %1 = arith.cmpi eq, %arg2, %c0_i32_0 : i32
    %2 = arith.andi %0, %1 : i1
    %3 = arith.extui %2 : i1 to i32
    %c0_i32_1 = arith.constant 0 : i32
    %4 = arith.cmpi ne, %3, %c0_i32_1 : i32
    scf.if %4 {
      %cst_16 = arith.constant 0.000000e+00 : f32
      %23 = vector.broadcast %cst_16 : f32 to vector<20x8xf32>
      %c0_17 = arith.constant 0 : index
      %c0_18 = arith.constant 0 : index
      %24 = vector.load %arg10[%c0_17, %c0_18] : memref<20x8xf32, #tpu.memory_space<vmem>>, vector<20x8xf32>
      tpu.vector_store %arg10[%c0_17, %c0_18], %23 {strides = array<i32>} : memref<20x8xf32, #tpu.memory_space<vmem>>, vector<20x8xf32>,
    } else {
    }
    %c0_i32_2 = arith.constant 0 : i32
    %5 = arith.cmpi eq, %arg2, %c0_i32_2 : i32
    %6 = arith.extui %5 : i1 to i32
    %c0_i32_3 = arith.constant 0 : i32
    %7 = arith.cmpi ne, %6, %c0_i32_3 : i32
    scf.if %7 {
      %cst_16 = arith.constant 0.000000e+00 : f32
      %23 = vector.broadcast %cst_16 : f32 to vector<160x256xf32>
      %c0_17 = arith.constant 0 : index
      %c0_18 = arith.constant 0 : index
      %24 = vector.load %arg11[%c0_17, %c0_18] : memref<160x256xf32, #tpu.memory_space<vmem>>, vector<160x256xf32>
      tpu.vector_store %arg11[%c0_17, %c0_18], %23 {strides = array<i32>} : memref<160x256xf32, #tpu.memory_space<vmem>>, vector<160x256xf32>,
    } else {
    }
    %c0 = arith.constant 0 : index
    %c0_4 = arith.constant 0 : index
    %8 = vector.load %arg11[%c0, %c0_4] : memref<160x256xf32, #tpu.memory_space<vmem>>, vector<160x256xf32>
    %c0_5 = arith.constant 0 : index
    %c0_6 = arith.constant 0 : index
    %9 = vector.load %arg3[%c0_5, %c0_6] : memref<160x256xf32, #tpu.memory_space<vmem>>, vector<160x256xf32>
    %10 = arith.truncf %9 : vector<160x256xf32> to vector<160x256xbf16>
    %c0_7 = arith.constant 0 : index
    %c0_8 = arith.constant 0 : index
    %11 = vector.load %arg5[%c0_7, %c0_8] : memref<256x256xbf16, #tpu.memory_space<vmem>>, vector<256x256xbf16>
    %cst = arith.constant dense<0.000000e+00> : vector<160x256xf32>
    %12 = tpu.matmul %10, %11, %cst {dimension_numbers = #tpu.dot_dimension_numbers<[1], [0], [0], [1], [0, 0, 1, 1], [], []>} : vector<160x256xbf16>, vector<256x256xbf16>, vector<160x256xf32> -> vector<160x256xf32>
    %13 = arith.addf %8, %12 : vector<160x256xf32>
    %c0_9 = arith.constant 0 : index
    %c0_10 = arith.constant 0 : index
    %14 = vector.load %arg11[%c0_9, %c0_10] : memref<160x256xf32, #tpu.memory_space<vmem>>, vector<160x256xf32>
    tpu.vector_store %arg11[%c0_9, %c0_10], %13 {strides = array<i32>} : memref<160x256xf32, #tpu.memory_space<vmem>>, vector<160x256xf32>,
    %c0_i32_11 = arith.constant 0 : i32
    %15 = arith.cmpi eq, %arg2, %c0_i32_11 : i32
    %16 = arith.extui %15 : i1 to i32
    %c0_i32_12 = arith.constant 0 : i32
    %17 = arith.cmpi ne, %16, %c0_i32_12 : i32
    scf.if %17 {
      %c0_16 = arith.constant 0 : index
      %c0_17 = arith.constant 0 : index
      %23 = vector.load %arg11[%c0_16, %c0_17] : memref<160x256xf32, #tpu.memory_space<vmem>>, vector<160x256xf32>
      %c0_18 = arith.constant 0 : index
      %c0_19 = arith.constant 0 : index
      %24 = vector.load %arg6[%c0_18, %c0_19] : memref<1x256xf32, #tpu.memory_space<vmem>>, vector<1x256xf32>
      %25 = vector.broadcast %24 : vector<1x256xf32> to vector<160x256xf32>
      %26 = arith.addf %23, %25 : vector<160x256xf32>
      %cst_20 = arith.constant 0.000000e+00 : f32
      %27 = vector.broadcast %cst_20 : f32 to vector<160x256xf32>
      %28 = arith.maximumf %26, %27 : vector<160x256xf32>
      %c0_21 = arith.constant 0 : index
      %c0_22 = arith.constant 0 : index
      %29 = vector.load %arg4[%c0_21, %c0_22] : memref<20x256xf32, #tpu.memory_space<vmem>>, vector<20x256xf32>
      %30 = arith.truncf %29 : vector<20x256xf32> to vector<20x256xbf16>
      %c0_23 = arith.constant 0 : index
      %c0_24 = arith.constant 0 : index
      %31 = vector.load %arg7[%c0_23, %c0_24] : memref<256x256xbf16, #tpu.memory_space<vmem>>, vector<256x256xbf16>
      %cst_25 = arith.constant dense<0.000000e+00> : vector<20x256xf32>
      %32 = tpu.matmul %30, %31, %cst_25 {dimension_numbers = #tpu.dot_dimension_numbers<[1], [0], [0], [1], [0, 0, 1, 1], [], []>} : vector<20x256xbf16>, vector<256x256xbf16>, vector<20x256xf32> -> vector<20x256xf32>
      %c0_26 = arith.constant 0 : index
      %c0_27 = arith.constant 0 : index
      %33 = vector.load %arg8[%c0_26, %c0_27] : memref<1x256xf32, #tpu.memory_space<vmem>>, vector<1x256xf32>
      %34 = vector.broadcast %33 : vector<1x256xf32> to vector<20x256xf32>
      %35 = arith.addf %32, %34 : vector<20x256xf32>
      %cst_28 = arith.constant 0.000000e+00 : f32
      %36 = vector.broadcast %cst_28 : f32 to vector<20x256xf32>
      %37 = arith.maximumf %35, %36 : vector<20x256xf32>
      %c0_29 = arith.constant 0 : index
      %c0_30 = arith.constant 0 : index
      %38 = vector.load %arg9[%c0_29, %c0_30] : memref<1x256xf32, #tpu.memory_space<vmem>>, vector<1x256xf32>
      %39 = vector.broadcast %38 : vector<1x256xf32> to vector<20x256xf32>
      %40 = arith.mulf %37, %39 : vector<20x256xf32>
      %c0_31 = arith.constant 0 : index
      %c0_32 = arith.constant 0 : index
      %41 = vector.load %arg10[%c0_31, %c0_32] : memref<20x8xf32, #tpu.memory_space<vmem>>, vector<20x8xf32>
      %42 = vector.shape_cast %28 : vector<160x256xf32> to vector<20x8x256xf32>
      %43 = vector.shape_cast %40 : vector<20x256xf32> to vector<20x1x256xf32>
      %44 = vector.broadcast %43 : vector<20x1x256xf32> to vector<20x8x256xf32>
      %45 = arith.mulf %42, %44 : vector<20x8x256xf32>
      %cst_33 = arith.constant dense<0.000000e+00> : vector<20x8xf32>
      %46 = vector.multi_reduction <add>, %45, %cst_33 [2] : vector<20x8x256xf32> to vector<20x8xf32>
      %47 = arith.addf %41, %46 : vector<20x8xf32>
      %c0_34 = arith.constant 0 : index
      %c0_35 = arith.constant 0 : index
      %48 = vector.load %arg10[%c0_34, %c0_35] : memref<20x8xf32, #tpu.memory_space<vmem>>, vector<20x8xf32>
      tpu.vector_store %arg10[%c0_34, %c0_35], %47 {strides = array<i32>} : memref<20x8xf32, #tpu.memory_space<vmem>>, vector<20x8xf32>,
    } else {
    }
    %c0_i32_13 = arith.constant 0 : i32
    %18 = arith.cmpi eq, %arg1, %c0_i32_13 : i32
    %c0_i32_14 = arith.constant 0 : i32
    %19 = arith.cmpi eq, %arg2, %c0_i32_14 : i32
    %20 = arith.andi %18, %19 : i1
    %21 = arith.extui %20 : i1 to i32
    %c0_i32_15 = arith.constant 0 : i32
    %22 = arith.cmpi ne, %21, %c0_i32_15 : i32
    scf.if %22 {
      %c0_16 = arith.constant 0 : index
      %c0_17 = arith.constant 0 : index
      %23 = vector.load %arg10[%c0_16, %c0_17] : memref<20x8xf32, #tpu.memory_space<vmem>>, vector<20x8xf32>
      %cst_18 = arith.constant dense<0xFF800000> : vector<20xf32>
      %24 = vector.multi_reduction <maximumf>, %23, %cst_18 [1] : vector<20x8xf32> to vector<20xf32>
      %25 = vector.shape_cast %24 : vector<20xf32> to vector<20x1xf32>
      %26 = vector.broadcast %25 : vector<20x1xf32> to vector<20x8xf32>
      %27 = arith.subf %23, %26 : vector<20x8xf32>
      %28 = math.exp %27 : vector<20x8xf32>
      %cst_19 = arith.constant dense<0.000000e+00> : vector<20xf32>
      %29 = vector.multi_reduction <add>, %28, %cst_19 [1] : vector<20x8xf32> to vector<20xf32>
      %30 = vector.shape_cast %29 : vector<20xf32> to vector<20x1xf32>
      %31 = vector.broadcast %30 : vector<20x1xf32> to vector<20x8xf32>
      %32 = arith.divf %28, %31 : vector<20x8xf32>
      %c0_20 = arith.constant 0 : index
      %c0_21 = arith.constant 0 : index
      %33 = vector.load %arg10[%c0_20, %c0_21] : memref<20x8xf32, #tpu.memory_space<vmem>>, vector<20x8xf32>
      tpu.vector_store %arg10[%c0_20, %c0_21], %32 {strides = array<i32>} : memref<20x8xf32, #tpu.memory_space<vmem>>, vector<20x8xf32>,
    } else {
    }
    return
  }
  func.func @transform_0(%arg0: i32, %arg1: i32, %arg2: i32) -> (i32, i32) {
    %c0_i32 = arith.constant 0 : i32
    return %arg0, %arg2 : i32, i32
  }
  func.func @transform_1(%arg0: i32, %arg1: i32, %arg2: i32) -> (i32, i32) {
    %c0_i32 = arith.constant 0 : i32
    %c0_i32_0 = arith.constant 0 : i32
    return %arg0, %c0_i32 : i32, i32
  }
  func.func @transform_2(%arg0: i32, %arg1: i32, %arg2: i32) -> (i32, i32) {
    %c0_i32 = arith.constant 0 : i32
    return %arg2, %arg1 : i32, i32
  }
  func.func @transform_3(%arg0: i32, %arg1: i32, %arg2: i32) -> (i32, i32) {
    %c0_i32 = arith.constant 0 : i32
    %c0_i32_0 = arith.constant 0 : i32
    return %c0_i32, %arg1 : i32, i32
  }
  func.func @transform_4(%arg0: i32, %arg1: i32, %arg2: i32) -> (i32, i32) {
    %c0_i32 = arith.constant 0 : i32
    %c0_i32_0 = arith.constant 0 : i32
    return %c0_i32, %arg1 : i32, i32
  }
  func.func @transform_5(%arg0: i32, %arg1: i32, %arg2: i32) -> (i32, i32) {
    %c0_i32 = arith.constant 0 : i32
    %c0_i32_0 = arith.constant 0 : i32
    return %c0_i32, %arg1 : i32, i32
  }
  func.func @transform_6(%arg0: i32, %arg1: i32, %arg2: i32) -> (i32, i32) {
    %c0_i32 = arith.constant 0 : i32
    %c0_i32_0 = arith.constant 0 : i32
    return %c0_i32, %arg1 : i32, i32
  }
  func.func @transform_7(%arg0: i32, %arg1: i32, %arg2: i32) -> (i32, i32) {
    %c0_i32 = arith.constant 0 : i32
    %c0_i32_0 = arith.constant 0 : i32
    return %arg0, %c0_i32 : i32, i32
  }
}

module attributes {stable_mosaic.version = 11 : i64} {
  func.func @_attention_kernel(%arg0: i32, %arg1: i32, %arg2: i32, %arg3: memref<160x256xf32, #tpu.memory_space<vmem>>, %arg4: memref<20x256xf32, #tpu.memory_space<vmem>>, %arg5: memref<256x256xbf16, #tpu.memory_space<vmem>>, %arg6: memref<1x256xf32, #tpu.memory_space<vmem>>, %arg7: memref<256x256xbf16, #tpu.memory_space<vmem>>, %arg8: memref<1x256xf32, #tpu.memory_space<vmem>>, %arg9: memref<1x256xf32, #tpu.memory_space<vmem>>, %arg10: memref<20x8xf32, #tpu.memory_space<vmem>>, %arg11: memref<160x256xf32, #tpu.memory_space<vmem>>) attributes {dimension_semantics = [#tpu.dimension_semantics<parallel>, #tpu.dimension_semantics<arbitrary>, #tpu.dimension_semantics<arbitrary>], iteration_bounds = array<i64: 1, 1, 1>, scalar_prefetch = 0 : i64, scratch_operands = 1 : i64, tpu.core_type = #tpu.core_type<tc>, window_params = [{transform_indices = @transform_0, window_bounds = array<i64: 160, 256>}, {transform_indices = @transform_1, window_bounds = array<i64: 20, 256>}, {transform_indices = @transform_2, window_bounds = array<i64: 256, 256>}, {transform_indices = @transform_3, window_bounds = array<i64: 1, 256>}, {transform_indices = @transform_4, window_bounds = array<i64: 256, 256>}, {transform_indices = @transform_5, window_bounds = array<i64: 1, 256>}, {transform_indices = @transform_6, window_bounds = array<i64: 1, 256>}, {transform_indices = @transform_7, window_bounds = array<i64: 20, 8>}]} {
    %c0_i32 = arith.constant 0 : i32
    %0 = arith.cmpi eq, %arg1, %c0_i32 : i32
    %c0_i32_0 = arith.constant 0 : i32
    %1 = arith.cmpi eq, %arg2, %c0_i32_0 : i32
    %2 = arith.andi %0, %1 : i1
    %3 = arith.extui %2 : i1 to i32
    %c0_i32_1 = arith.constant 0 : i32
    %4 = arith.cmpi ne, %3, %c0_i32_1 : i32
    scf.if %4 {
      %cst_16 = arith.constant 0.000000e+00 : f32
      %23 = vector.broadcast %cst_16 : f32 to vector<20x8xf32>
      %c0_17 = arith.constant 0 : index
      %c0_18 = arith.constant 0 : index
      %24 = vector.load %arg10[%c0_17, %c0_18] : memref<20x8xf32, #tpu.memory_space<vmem>>, vector<20x8xf32>
      tpu.vector_store %arg10[%c0_17, %c0_18], %23 {strides = array<i32>} : memref<20x8xf32, #tpu.memory_space<vmem>>, vector<20x8xf32>,
    } else {
    }
    %c0_i32_2 = arith.constant 0 : i32
    %5 = arith.cmpi eq, %arg2, %c0_i32_2 : i32
    %6 = arith.extui %5 : i1 to i32
    %c0_i32_3 = arith.constant 0 : i32
    %7 = arith.cmpi ne, %6, %c0_i32_3 : i32
    scf.if %7 {
      %cst_16 = arith.constant 0.000000e+00 : f32
      %23 = vector.broadcast %cst_16 : f32 to vector<160x256xf32>
      %c0_17 = arith.constant 0 : index
      %c0_18 = arith.constant 0 : index
      %24 = vector.load %arg11[%c0_17, %c0_18] : memref<160x256xf32, #tpu.memory_space<vmem>>, vector<160x256xf32>
      tpu.vector_store %arg11[%c0_17, %c0_18], %23 {strides = array<i32>} : memref<160x256xf32, #tpu.memory_space<vmem>>, vector<160x256xf32>,
    } else {
    }
    %c0 = arith.constant 0 : index
    %c0_4 = arith.constant 0 : index
    %8 = vector.load %arg11[%c0, %c0_4] : memref<160x256xf32, #tpu.memory_space<vmem>>, vector<160x256xf32>
    %c0_5 = arith.constant 0 : index
    %c0_6 = arith.constant 0 : index
    %9 = vector.load %arg3[%c0_5, %c0_6] : memref<160x256xf32, #tpu.memory_space<vmem>>, vector<160x256xf32>
    %10 = arith.truncf %9 : vector<160x256xf32> to vector<160x256xbf16>
    %c0_7 = arith.constant 0 : index
    %c0_8 = arith.constant 0 : index
    %11 = vector.load %arg5[%c0_7, %c0_8] : memref<256x256xbf16, #tpu.memory_space<vmem>>, vector<256x256xbf16>
    %cst = arith.constant dense<0.000000e+00> : vector<160x256xf32>
    %12 = tpu.matmul %10, %11, %cst {dimension_numbers = #tpu.dot_dimension_numbers<[1], [0], [0], [1], [0, 0, 1, 1], [], []>} : vector<160x256xbf16>, vector<256x256xbf16>, vector<160x256xf32> -> vector<160x256xf32>
    %13 = arith.addf %8, %12 : vector<160x256xf32>
    %c0_9 = arith.constant 0 : index
    %c0_10 = arith.constant 0 : index
    %14 = vector.load %arg11[%c0_9, %c0_10] : memref<160x256xf32, #tpu.memory_space<vmem>>, vector<160x256xf32>
    tpu.vector_store %arg11[%c0_9, %c0_10], %13 {strides = array<i32>} : memref<160x256xf32, #tpu.memory_space<vmem>>, vector<160x256xf32>,
    %c0_i32_11 = arith.constant 0 : i32
    %15 = arith.cmpi eq, %arg2, %c0_i32_11 : i32
    %16 = arith.extui %15 : i1 to i32
    %c0_i32_12 = arith.constant 0 : i32
    %17 = arith.cmpi ne, %16, %c0_i32_12 : i32
    scf.if %17 {
      %c0_16 = arith.constant 0 : index
      %c0_17 = arith.constant 0 : index
      %23 = vector.load %arg11[%c0_16, %c0_17] : memref<160x256xf32, #tpu.memory_space<vmem>>, vector<160x256xf32>
      %c0_18 = arith.constant 0 : index
      %c0_19 = arith.constant 0 : index
      %24 = vector.load %arg6[%c0_18, %c0_19] : memref<1x256xf32, #tpu.memory_space<vmem>>, vector<1x256xf32>
      %25 = vector.broadcast %24 : vector<1x256xf32> to vector<160x256xf32>
      %26 = arith.addf %23, %25 : vector<160x256xf32>
      %cst_20 = arith.constant 0.000000e+00 : f32
      %27 = vector.broadcast %cst_20 : f32 to vector<160x256xf32>
      %28 = arith.maximumf %26, %27 : vector<160x256xf32>
      %c0_21 = arith.constant 0 : index
      %c0_22 = arith.constant 0 : index
      %29 = vector.load %arg4[%c0_21, %c0_22] : memref<20x256xf32, #tpu.memory_space<vmem>>, vector<20x256xf32>
      %30 = arith.truncf %29 : vector<20x256xf32> to vector<20x256xbf16>
      %c0_23 = arith.constant 0 : index
      %c0_24 = arith.constant 0 : index
      %31 = vector.load %arg7[%c0_23, %c0_24] : memref<256x256xbf16, #tpu.memory_space<vmem>>, vector<256x256xbf16>
      %cst_25 = arith.constant dense<0.000000e+00> : vector<20x256xf32>
      %32 = tpu.matmul %30, %31, %cst_25 {dimension_numbers = #tpu.dot_dimension_numbers<[1], [0], [0], [1], [0, 0, 1, 1], [], []>} : vector<20x256xbf16>, vector<256x256xbf16>, vector<20x256xf32> -> vector<20x256xf32>
      %c0_26 = arith.constant 0 : index
      %c0_27 = arith.constant 0 : index
      %33 = vector.load %arg8[%c0_26, %c0_27] : memref<1x256xf32, #tpu.memory_space<vmem>>, vector<1x256xf32>
      %34 = vector.broadcast %33 : vector<1x256xf32> to vector<20x256xf32>
      %35 = arith.addf %32, %34 : vector<20x256xf32>
      %cst_28 = arith.constant 0.000000e+00 : f32
      %36 = vector.broadcast %cst_28 : f32 to vector<20x256xf32>
      %37 = arith.maximumf %35, %36 : vector<20x256xf32>
      %c0_29 = arith.constant 0 : index
      %c0_30 = arith.constant 0 : index
      %38 = vector.load %arg9[%c0_29, %c0_30] : memref<1x256xf32, #tpu.memory_space<vmem>>, vector<1x256xf32>
      %39 = vector.broadcast %38 : vector<1x256xf32> to vector<20x256xf32>
      %40 = arith.mulf %37, %39 : vector<20x256xf32>
      %c0_31 = arith.constant 0 : index
      %c0_32 = arith.constant 0 : index
      %41 = vector.load %arg10[%c0_31, %c0_32] : memref<20x8xf32, #tpu.memory_space<vmem>>, vector<20x8xf32>
      %42 = vector.shape_cast %28 : vector<160x256xf32> to vector<20x8x256xf32>
      %43 = vector.shape_cast %40 : vector<20x256xf32> to vector<20x1x256xf32>
      %44 = vector.broadcast %43 : vector<20x1x256xf32> to vector<20x8x256xf32>
      %45 = arith.mulf %42, %44 : vector<20x8x256xf32>
      %cst_33 = arith.constant dense<0.000000e+00> : vector<20x8xf32>
      %46 = vector.multi_reduction <add>, %45, %cst_33 [2] : vector<20x8x256xf32> to vector<20x8xf32>
      %47 = arith.addf %41, %46 : vector<20x8xf32>
      %c0_34 = arith.constant 0 : index
      %c0_35 = arith.constant 0 : index
      %48 = vector.load %arg10[%c0_34, %c0_35] : memref<20x8xf32, #tpu.memory_space<vmem>>, vector<20x8xf32>
      tpu.vector_store %arg10[%c0_34, %c0_35], %47 {strides = array<i32>} : memref<20x8xf32, #tpu.memory_space<vmem>>, vector<20x8xf32>,
    } else {
    }
    %c0_i32_13 = arith.constant 0 : i32
    %18 = arith.cmpi eq, %arg1, %c0_i32_13 : i32
    %c0_i32_14 = arith.constant 0 : i32
    %19 = arith.cmpi eq, %arg2, %c0_i32_14 : i32
    %20 = arith.andi %18, %19 : i1
    %21 = arith.extui %20 : i1 to i32
    %c0_i32_15 = arith.constant 0 : i32
    %22 = arith.cmpi ne, %21, %c0_i32_15 : i32
    scf.if %22 {
      %c0_16 = arith.constant 0 : index
      %c0_17 = arith.constant 0 : index
      %23 = vector.load %arg10[%c0_16, %c0_17] : memref<20x8xf32, #tpu.memory_space<vmem>>, vector<20x8xf32>
      %cst_18 = arith.constant dense<0xFF800000> : vector<20xf32>
      %24 = vector.multi_reduction <maximumf>, %23, %cst_18 [1] : vector<20x8xf32> to vector<20xf32>
      %25 = vector.shape_cast %24 : vector<20xf32> to vector<20x1xf32>
      %26 = vector.broadcast %25 : vector<20x1xf32> to vector<20x8xf32>
      %27 = arith.subf %23, %26 : vector<20x8xf32>
      %28 = math.exp %27 : vector<20x8xf32>
      %cst_19 = arith.constant dense<0.000000e+00> : vector<20xf32>
      %29 = vector.multi_reduction <add>, %28, %cst_19 [1] : vector<20x8xf32> to vector<20xf32>
      %30 = vector.shape_cast %29 : vector<20xf32> to vector<20x1xf32>
      %31 = vector.broadcast %30 : vector<20x1xf32> to vector<20x8xf32>
      %32 = arith.divf %28, %31 : vector<20x8xf32>
      %c0_20 = arith.constant 0 : index
      %c0_21 = arith.constant 0 : index
      %33 = vector.load %arg10[%c0_20, %c0_21] : memref<20x8xf32, #tpu.memory_space<vmem>>, vector<20x8xf32>
      tpu.vector_store %arg10[%c0_20, %c0_21], %32 {strides = array<i32>} : memref<20x8xf32, #tpu.memory_space<vmem>>, vector<20x8xf32>,
    } else {
    }
    return
  }
  func.func @transform_0(%arg0: i32, %arg1: i32, %arg2: i32) -> (i32, i32) {
    %c0_i32 = arith.constant 0 : i32
    return %arg0, %arg2 : i32, i32
  }
  func.func @transform_1(%arg0: i32, %arg1: i32, %arg2: i32) -> (i32, i32) {
    %c0_i32 = arith.constant 0 : i32
    %c0_i32_0 = arith.constant 0 : i32
    return %arg0, %c0_i32 : i32, i32
  }
  func.func @transform_2(%arg0: i32, %arg1: i32, %arg2: i32) -> (i32, i32) {
    %c0_i32 = arith.constant 0 : i32
    return %arg2, %arg1 : i32, i32
  }
  func.func @transform_3(%arg0: i32, %arg1: i32, %arg2: i32) -> (i32, i32) {
    %c0_i32 = arith.constant 0 : i32
    %c0_i32_0 = arith.constant 0 : i32
    return %c0_i32, %arg1 : i32, i32
  }
  func.func @transform_4(%arg0: i32, %arg1: i32, %arg2: i32) -> (i32, i32) {
    %c0_i32 = arith.constant 0 : i32
    %c0_i32_0 = arith.constant 0 : i32
    return %c0_i32, %arg1 : i32, i32
  }
  func.func @transform_5(%arg0: i32, %arg1: i32, %arg2: i32) -> (i32, i32) {
    %c0_i32 = arith.constant 0 : i32
    %c0_i32_0 = arith.constant 0 : i32
    return %c0_i32, %arg1 : i32, i32
  }
  func.func @transform_6(%arg0: i32, %arg1: i32, %arg2: i32) -> (i32, i32) {
    %c0_i32 = arith.constant 0 : i32
    %c0_i32_0 = arith.constant 0 : i32
    return %c0_i32, %arg1 : i32, i32
  }
  func.func @transform_7(%arg0: i32, %arg1: i32, %arg2: i32) -> (i32, i32) {
    %c0_i32 = arith.constant 0 : i32
    %c0_i32_0 = arith.constant 0 : i32
    return %arg0, %c0_i32 : i32, i32
  }
}

</mosaic_0001>

<llo_original>
// kernel: tpu_custom_call.1
$region0: #{tpu_custom_call.1}
  #allocation0 [shape = 'u32[]', space=smem, size = 0x4, offset = 0x4, fixed_abs, tag = 'smem constant byte address 0x4 - core index']
  #allocation1 [shape = 'u32[144,128]{1,0:T(1,128)}', space=vmem, size = 0x12000, scoped, tag = 'internal scratch']
  #allocation2 [shape = 'f32[160,256]{1,0:T(8,128)}', space=vmem, size = 0x28000, scoped, tag = 'scratch operand']
  %s0 = inlined_call_operand.hbm [shape: f32[160,256], index: 0, kind: input, shape index: {}]
  %s1 = inlined_call_operand.hbm [shape: f32[20,256], index: 1, kind: input, shape index: {}]
  %s2 = inlined_call_operand.hbm [shape: bf16[256,256], index: 2, kind: input, shape index: {}]
  %s3 = inlined_call_operand.vmem [shape: f32[1,256], index: 3, kind: input, shape index: {}]
  %s4 = inlined_call_operand.hbm [shape: bf16[256,256], index: 4, kind: input, shape index: {}]
  %s5 = inlined_call_operand.vmem [shape: f32[1,256], index: 5, kind: input, shape index: {}]
  %s6 = inlined_call_operand.vmem [shape: f32[1,256], index: 6, kind: input, shape index: {}]
  %s7 = inlined_call_operand.vmem [shape: f32[20,8], index: 7, kind: output, shape index: {}]
  %s8 = sld [smem:[#allocation0]]
  $region70: #{tpu_custom_call.1} parent=0
    _
  %s10 = ssub.s32 1, %s8
  %s11 = scalar_select 0, %s10, %s8
  $region1: #{tpu_custom_call.1} parent=0
    #allocation3 [shape = 'u8[163840]{0}', space=vmem, size = 0x28000, scoped, tag = 'input window, operand 0, single buffered']
    #allocation4 [shape = 's32[1]{0}', space=sflag, size = 0x4, scoped, tag = 'scoped memory for tpu_custom_call.1']
    #allocation5 [shape = 'u8[24576]{0}', space=vmem, size = 0x6000, scoped, tag = 'input window, operand 1, single buffered']
    #allocation6 [shape = 's32[1]{0}', space=sflag, size = 0x4, scoped, tag = 'scoped memory for tpu_custom_call.1']
    #allocation7 [shape = 'u8[131072]{0}', space=vmem, size = 0x20000, scoped, tag = 'input window, operand 2, single buffered']
    #allocation8 [shape = 'u8[131072]{0}', space=vmem, size = 0x20000, scoped, tag = 'input window, operand 4, single buffered']
    #allocation9 [shape = 's32[1]{0}', space=sflag, size = 0x4, scoped, tag = 'scoped memory for tpu_custom_call.1']
    %12 = vsyncpa [#allocation4], 0
    %13 = vsyncpa [#allocation6], 0
    %14 = vsyncpa [#allocation9], 0
    // Predicated region
    $region2: #{tpu_custom_call.1} parent=1 // pred_check
      _
    $region3: #{tpu_custom_call.1} parent=1 // pred_check_branch
      %16 = sbr.rel (0) target = $region5
    $region4: #{tpu_custom_call.1} parent=1 // pred_region
      %s18 = ssub.s32 5120, 5120
      %19 = vsyncadd [#allocation4], %s18
      %s20 = sshll.u32 [#allocation3], 4
      %s21 = int_to_ptr.vmem [resolvable:$true] %s20
      %26 = dma.hbm_to_vmem [thread:$0]  %s0, 5120, %s21, [#allocation4], 256, 256, 16
    $region5: #{tpu_custom_call.1} parent=1 // pred_fallthru
      _
    // Predicated region
    $region6: #{tpu_custom_call.1} parent=1 // pred_check
      _
    $region7: #{tpu_custom_call.1} parent=1 // pred_check_branch
      %28 = sbr.rel (0) target = $region9
    $region8: #{tpu_custom_call.1} parent=1 // pred_region
      %s30 = ssub.s32 768, 768
      %31 = vsyncadd [#allocation6], %s30
      %s32 = sshll.u32 [#allocation5], 4
      %s33 = int_to_ptr.vmem [resolvable:$true] %s32
      %38 = dma.hbm_to_vmem [thread:$0]  %s1, 768, %s33, [#allocation6], 256, 256, 16
    $region9: #{tpu_custom_call.1} parent=1 // pred_fallthru
      _
    // Predicated region
    $region10: #{tpu_custom_call.1} parent=1 // pred_check
      _
    $region11: #{tpu_custom_call.1} parent=1 // pred_check_branch
      %40 = sbr.rel (0) target = $region13
    $region12: #{tpu_custom_call.1} parent=1 // pred_region
      %s42 = ssub.s32 4096, 4096
      %43 = vsyncadd [#allocation6], %s42
      %s44 = sshll.u32 [#allocation7], 4
      %s45 = int_to_ptr.vmem [resolvable:$true] %s44
      %50 = dma.hbm_to_vmem [thread:$0]  %s2, 4096, %s45, [#allocation6], 128, 128, 8
    $region13: #{tpu_custom_call.1} parent=1 // pred_fallthru
      _
    // Predicated region
    $region14: #{tpu_custom_call.1} parent=1 // pred_check
      _
    $region15: #{tpu_custom_call.1} parent=1 // pred_check_branch
      %52 = sbr.rel (0) target = $region17
    $region16: #{tpu_custom_call.1} parent=1 // pred_region
      _
    $region17: #{tpu_custom_call.1} parent=1 // pred_fallthru
      _
    // Predicated region
    $region18: #{tpu_custom_call.1} parent=1 // pred_check
      _
    $region19: #{tpu_custom_call.1} parent=1 // pred_check_branch
      %54 = sbr.rel (0) target = $region21
    $region20: #{tpu_custom_call.1} parent=1 // pred_region
      %s56 = ssub.s32 4096, 4096
      %57 = vsyncadd [#allocation9], %s56
      %s58 = sshll.u32 [#allocation8], 4
      %s59 = int_to_ptr.vmem [resolvable:$true] %s58
      %64 = dma.hbm_to_vmem [thread:$0]  %s4, 4096, %s59, [#allocation9], 128, 128, 8
    $region21: #{tpu_custom_call.1} parent=1 // pred_fallthru
      _
    // Predicated region
    $region22: #{tpu_custom_call.1} parent=1 // pred_check
      _
    $region23: #{tpu_custom_call.1} parent=1 // pred_check_branch
      %66 = sbr.rel (0) target = $region25
    $region24: #{tpu_custom_call.1} parent=1 // pred_region
      _
    $region25: #{tpu_custom_call.1} parent=1 // pred_fallthru
      _
    // Predicated region
    $region26: #{tpu_custom_call.1} parent=1 // pred_check
      _
    $region27: #{tpu_custom_call.1} parent=1 // pred_check_branch
      %68 = sbr.rel (0) target = $region29
    $region28: #{tpu_custom_call.1} parent=1 // pred_region
      _
    $region29: #{tpu_custom_call.1} parent=1 // pred_fallthru
      _
    // Predicated region
    $region30: #{tpu_custom_call.1} parent=1 // pred_check
      _
    $region31: #{tpu_custom_call.1} parent=1 // pred_check_branch
      %70 = sbr.rel (0) target = $region33
    $region32: #{tpu_custom_call.1} parent=1 // pred_region
      %71 = dma.done [#allocation4], 5120
    $region33: #{tpu_custom_call.1} parent=1 // pred_fallthru
      _
    // Predicated region
    $region34: #{tpu_custom_call.1} parent=1 // pred_check
      _
    $region35: #{tpu_custom_call.1} parent=1 // pred_check_branch
      %73 = sbr.rel (0) target = $region37
    $region36: #{tpu_custom_call.1} parent=1 // pred_region
      %74 = dma.done [#allocation6], 768
    $region37: #{tpu_custom_call.1} parent=1 // pred_fallthru
      _
    // Predicated region
    $region38: #{tpu_custom_call.1} parent=1 // pred_check
      _
    $region39: #{tpu_custom_call.1} parent=1 // pred_check_branch
      %76 = sbr.rel (0) target = $region41
    $region40: #{tpu_custom_call.1} parent=1 // pred_region
      %77 = dma.done [#allocation6], 4096
    $region41: #{tpu_custom_call.1} parent=1 // pred_fallthru
      _
    // Predicated region
    $region42: #{tpu_custom_call.1} parent=1 // pred_check
      _
    $region43: #{tpu_custom_call.1} parent=1 // pred_check_branch
      %79 = sbr.rel (0) target = $region45
    $region44: #{tpu_custom_call.1} parent=1 // pred_region
      %80 = dma.done [#allocation9], 4096
    $region45: #{tpu_custom_call.1} parent=1 // pred_fallthru
      _
    %p81 = scmp.eq.s32.totalorder 0, 0
    %p82 = scmp.eq.s32.totalorder 0, 0
    %p83 = pnand %p81, %p82
    %p84 = pneg %p83
    // Predicated region
    $region46: #{tpu_custom_call.1} parent=1 // pred_check
      _
    $region47: #{tpu_custom_call.1} parent=1 // pred_check_branch
      %86 = sbr.rel (%p83) target = $region49
    $region48: #{tpu_custom_call.1} parent=1 // pred_region
      %vm87 = vcmask 64512
      %88 = vst.msk [vmem:[%s7] sm:$0xff] %vm87, 0.0
      %89 = vst.msk [vmem:[%s7 + $0x8] sm:$0xff] %vm87, 0.0
      %vm90 = vcmask 60416
      %91 = vst.msk [vmem:[%s7 + $0x10] sm:$0xf] %vm90, 0.0
    $region49: #{tpu_custom_call.1} parent=1 // pred_fallthru
      _
    // Predicated region
    $region50: #{tpu_custom_call.1} parent=1 // pred_check
      %p92 = pneg %p82
    $region51: #{tpu_custom_call.1} parent=1 // pred_check_branch
      %94 = sbr.rel (%p92) target = $region53
    $region52: #{tpu_custom_call.1} parent=1 // pred_region
      %95 = vst [vmem:[#allocation2] sm:$0xff] 0.0
      %96 = vst [vmem:[#allocation2 + $0x8] sm:$0xff] 0.0
      %97 = vst [vmem:[#allocation2 + $0x10] sm:$0xff] 0.0
      %98 = vst [vmem:[#allocation2 + $0x18] sm:$0xff] 0.0
      %99 = vst [vmem:[#allocation2 + $0x20] sm:$0xff] 0.0
      %100 = vst [vmem:[#allocation2 + $0x28] sm:$0xff] 0.0
      %101 = vst [vmem:[#allocation2 + $0x30] sm:$0xff] 0.0
      %102 = vst [vmem:[#allocation2 + $0x38] sm:$0xff] 0.0
      %103 = vst [vmem:[#allocation2 + $0x40] sm:$0xff] 0.0
      %104 = vst [vmem:[#allocation2 + $0x48] sm:$0xff] 0.0
      %105 = vst [vmem:[#allocation2 + $0x50] sm:$0xff] 0.0
      %106 = vst [vmem:[#allocation2 + $0x58] sm:$0xff] 0.0
      %107 = vst [vmem:[#allocation2 + $0x60] sm:$0xff] 0.0
      %108 = vst [vmem:[#allocation2 + $0x68] sm:$0xff] 0.0
      %109 = vst [vmem:[#allocation2 + $0x70] sm:$0xff] 0.0
      %110 = vst [vmem:[#allocation2 + $0x78] sm:$0xff] 0.0
      %111 = vst [vmem:[#allocation2 + $0x80] sm:$0xff] 0.0
      %112 = vst [vmem:[#allocation2 + $0x88] sm:$0xff] 0.0
      %113 = vst [vmem:[#allocation2 + $0x90] sm:$0xff] 0.0
      %114 = vst [vmem:[#allocation2 + $0x98] sm:$0xff] 0.0
      %115 = vst [vmem:[#allocation2 + $0xa0] sm:$0xff] 0.0
      %116 = vst [vmem:[#allocation2 + $0xa8] sm:$0xff] 0.0
      %117 = vst [vmem:[#allocation2 + $0xb0] sm:$0xff] 0.0
      %118 = vst [vmem:[#allocation2 + $0xb8] sm:$0xff] 0.0
      %119 = vst [vmem:[#allocation2 + $0xc0] sm:$0xff] 0.0
      %120 = vst [vmem:[#allocation2 + $0xc8] sm:$0xff] 0.0
      %121 = vst [vmem:[#allocation2 + $0xd0] sm:$0xff] 0.0
      %122 = vst [vmem:[#allocation2 + $0xd8] sm:$0xff] 0.0
      %123 = vst [vmem:[#allocation2 + $0xe0] sm:$0xff] 0.0
      %124 = vst [vmem:[#allocation2 + $0xe8] sm:$0xff] 0.0
      %125 = vst [vmem:[#allocation2 + $0xf0] sm:$0xff] 0.0
      %126 = vst [vmem:[#allocation2 + $0xf8] sm:$0xff] 0.0
      %127 = vst [vmem:[#allocation2 + $0x100] sm:$0xff] 0.0
      %128 = vst [vmem:[#allocation2 + $0x108] sm:$0xff] 0.0
      %129 = vst [vmem:[#allocation2 + $0x110] sm:$0xff] 0.0
      %130 = vst [vmem:[#allocation2 + $0x118] sm:$0xff] 0.0
      %131 = vst [vmem:[#allocation2 + $0x120] sm:$0xff] 0.0
      %132 = vst [vmem:[#allocation2 + $0x128] sm:$0xff] 0.0
      %133 = vst [vmem:[#allocation2 + $0x130] sm:$0xff] 0.0
      %134 = vst [vmem:[#allocation2 + $0x138] sm:$0xff] 0.0
    $region53: #{tpu_custom_call.1} parent=1 // pred_fallthru
      _
    %v135 = vld [vmem:[#allocation2] sm:$0xff]
    %v136 = vld [vmem:[#allocation2 + $0x8] sm:$0xff]
    %v137 = vld [vmem:[#allocation2 + $0x10] sm:$0xff]
    %v138 = vld [vmem:[#allocation2 + $0x18] sm:$0xff]
    %v139 = vld [vmem:[#allocation2 + $0x20] sm:$0xff]
    %v140 = vld [vmem:[#allocation2 + $0x28] sm:$0xff]
    %v141 = vld [vmem:[#allocation2 + $0x30] sm:$0xff]
    %v142 = vld [vmem:[#allocation2 + $0x38] sm:$0xff]
    %v143 = vld [vmem:[#allocation2 + $0x40] sm:$0xff]
    %v144 = vld [vmem:[#allocation2 + $0x48] sm:$0xff]
    %v145 = vld [vmem:[#allocation2 + $0x50] sm:$0xff]
    %v146 = vld [vmem:[#allocation2 + $0x58] sm:$0xff]
    %v147 = vld [vmem:[#allocation2 + $0x60] sm:$0xff]
    %v148 = vld [vmem:[#allocation2 + $0x68] sm:$0xff]
    %v149 = vld [vmem:[#allocation2 + $0x70] sm:$0xff]
    %v150 = vld [vmem:[#allocation2 + $0x78] sm:$0xff]
    %v151 = vld [vmem:[#allocation2 + $0x80] sm:$0xff]
    %v152 = vld [vmem:[#allocation2 + $0x88] sm:$0xff]
    %v153 = vld [vmem:[#allocation2 + $0x90] sm:$0xff]
    %v154 = vld [vmem:[#allocation2 + $0x98] sm:$0xff]
    %v155 = vld [vmem:[#allocation2 + $0xa0] sm:$0xff]
    %v156 = vld [vmem:[#allocation2 + $0xa8] sm:$0xff]
    %v157 = vld [vmem:[#allocation2 + $0xb0] sm:$0xff]
    %v158 = vld [vmem:[#allocation2 + $0xb8] sm:$0xff]
    %v159 = vld [vmem:[#allocation2 + $0xc0] sm:$0xff]
    %v160 = vld [vmem:[#allocation2 + $0xc8] sm:$0xff]
    %v161 = vld [vmem:[#allocation2 + $0xd0] sm:$0xff]
    %v162 = vld [vmem:[#allocation2 + $0xd8] sm:$0xff]
    %v163 = vld [vmem:[#allocation2 + $0xe0] sm:$0xff]
    %v164 = vld [vmem:[#allocation2 + $0xe8] sm:$0xff]
    %v165 = vld [vmem:[#allocation2 + $0xf0] sm:$0xff]
    %v166 = vld [vmem:[#allocation2 + $0xf8] sm:$0xff]
    %v167 = vld [vmem:[#allocation2 + $0x100] sm:$0xff]
    %v168 = vld [vmem:[#allocation2 + $0x108] sm:$0xff]
    %v169 = vld [vmem:[#allocation2 + $0x110] sm:$0xff]
    %v170 = vld [vmem:[#allocation2 + $0x118] sm:$0xff]
    %v171 = vld [vmem:[#allocation2 + $0x120] sm:$0xff]
    %v172 = vld [vmem:[#allocation2 + $0x128] sm:$0xff]
    %v173 = vld [vmem:[#allocation2 + $0x130] sm:$0xff]
    %v174 = vld [vmem:[#allocation2 + $0x138] sm:$0xff]
    %v175 = vld [vmem:[#allocation3] sm:$0xff]
    %v176 = vld [vmem:[#allocation3 + $0x8] sm:$0xff]
    %v177 = vld [vmem:[#allocation3 + $0x10] sm:$0xff]
    %v178 = vld [vmem:[#allocation3 + $0x18] sm:$0xff]
    %v179 = vld [vmem:[#allocation3 + $0x20] sm:$0xff]
    %v180 = vld [vmem:[#allocation3 + $0x28] sm:$0xff]
    %v181 = vld [vmem:[#allocation3 + $0x30] sm:$0xff]
    %v182 = vld [vmem:[#allocation3 + $0x38] sm:$0xff]
    %v183 = vld [vmem:[#allocation3 + $0x40] sm:$0xff]
    %v184 = vld [vmem:[#allocation3 + $0x48] sm:$0xff]
    %v185 = vld [vmem:[#allocation3 + $0x50] sm:$0xff]
    %v186 = vld [vmem:[#allocation3 + $0x58] sm:$0xff]
    %v187 = vld [vmem:[#allocation3 + $0x60] sm:$0xff]
    %v188 = vld [vmem:[#allocation3 + $0x68] sm:$0xff]
    %v189 = vld [vmem:[#allocation3 + $0x70] sm:$0xff]
    %v190 = vld [vmem:[#allocation3 + $0x78] sm:$0xff]
    %v191 = vld [vmem:[#allocation3 + $0x80] sm:$0xff]
    %v192 = vld [vmem:[#allocation3 + $0x88] sm:$0xff]
    %v193 = vld [vmem:[#allocation3 + $0x90] sm:$0xff]
    %v194 = vld [vmem:[#allocation3 + $0x98] sm:$0xff]
    %v195 = vld [vmem:[#allocation3 + $0xa0] sm:$0xff]
    %v196 = vld [vmem:[#allocation3 + $0xa8] sm:$0xff]
    %v197 = vld [vmem:[#allocation3 + $0xb0] sm:$0xff]
    %v198 = vld [vmem:[#allocation3 + $0xb8] sm:$0xff]
    %v199 = vld [vmem:[#allocation3 + $0xc0] sm:$0xff]
    %v200 = vld [vmem:[#allocation3 + $0xc8] sm:$0xff]
    %v201 = vld [vmem:[#allocation3 + $0xd0] sm:$0xff]
    %v202 = vld [vmem:[#allocation3 + $0xd8] sm:$0xff]
    %v203 = vld [vmem:[#allocation3 + $0xe0] sm:$0xff]
    %v204 = vld [vmem:[#allocation3 + $0xe8] sm:$0xff]
    %v205 = vld [vmem:[#allocation3 + $0xf0] sm:$0xff]
    %v206 = vld [vmem:[#allocation3 + $0xf8] sm:$0xff]
    %v207 = vld [vmem:[#allocation3 + $0x100] sm:$0xff]
    %v208 = vld [vmem:[#allocation3 + $0x108] sm:$0xff]
    %v209 = vld [vmem:[#allocation3 + $0x110] sm:$0xff]
    %v210 = vld [vmem:[#allocation3 + $0x118] sm:$0xff]
    %v211 = vld [vmem:[#allocation3 + $0x120] sm:$0xff]
    %v212 = vld [vmem:[#allocation3 + $0x128] sm:$0xff]
    %v213 = vld [vmem:[#allocation3 + $0x130] sm:$0xff]
    %v214 = vld [vmem:[#allocation3 + $0x138] sm:$0xff]
    %v215 = vpack.c.bf16 %v177, %v175
    %v216 = vpack.c.bf16 %v178, %v176
    %v217 = vpack.c.bf16 %v181, %v179
    %v218 = vpack.c.bf16 %v182, %v180
    %v219 = vpack.c.bf16 %v185, %v183
    %v220 = vpack.c.bf16 %v186, %v184
    %v221 = vpack.c.bf16 %v189, %v187
    %v222 = vpack.c.bf16 %v190, %v188
    %v223 = vpack.c.bf16 %v193, %v191
    %v224 = vpack.c.bf16 %v194, %v192
    %v225 = vpack.c.bf16 %v197, %v195
    %v226 = vpack.c.bf16 %v198, %v196
    %v227 = vpack.c.bf16 %v201, %v199
    %v228 = vpack.c.bf16 %v202, %v200
    %v229 = vpack.c.bf16 %v205, %v203
    %v230 = vpack.c.bf16 %v206, %v204
    %v231 = vpack.c.bf16 %v209, %v207
    %v232 = vpack.c.bf16 %v210, %v208
    %v233 = vpack.c.bf16 %v213, %v211
    %v234 = vpack.c.bf16 %v214, %v212
    %v235 = vld [vmem:[#allocation7] sm:$0xff]
    %v236 = vld [vmem:[#allocation7 + $0x8] sm:$0xff]
    %v237 = vld [vmem:[#allocation7 + $0x10] sm:$0xff]
    %v238 = vld [vmem:[#allocation7 + $0x18] sm:$0xff]
    %v239 = vld [vmem:[#allocation7 + $0x20] sm:$0xff]
    %v240 = vld [vmem:[#allocation7 + $0x28] sm:$0xff]
    %v241 = vld [vmem:[#allocation7 + $0x30] sm:$0xff]
    %v242 = vld [vmem:[#allocation7 + $0x38] sm:$0xff]
    %v243 = vld [vmem:[#allocation7 + $0x40] sm:$0xff]
    %v244 = vld [vmem:[#allocation7 + $0x48] sm:$0xff]
    %v245 = vld [vmem:[#allocation7 + $0x50] sm:$0xff]
    %v246 = vld [vmem:[#allocation7 + $0x58] sm:$0xff]
    %v247 = vld [vmem:[#allocation7 + $0x60] sm:$0xff]
    %v248 = vld [vmem:[#allocation7 + $0x68] sm:$0xff]
    %v249 = vld [vmem:[#allocation7 + $0x70] sm:$0xff]
    %v250 = vld [vmem:[#allocation7 + $0x78] sm:$0xff]
    %v251 = vld [vmem:[#allocation7 + $0x80] sm:$0xff]
    %v252 = vld [vmem:[#allocation7 + $0x88] sm:$0xff]
    %v253 = vld [vmem:[#allocation7 + $0x90] sm:$0xff]
    %v254 = vld [vmem:[#allocation7 + $0x98] sm:$0xff]
    %v255 = vld [vmem:[#allocation7 + $0xa0] sm:$0xff]
    %v256 = vld [vmem:[#allocation7 + $0xa8] sm:$0xff]
    %v257 = vld [vmem:[#allocation7 + $0xb0] sm:$0xff]
    %v258 = vld [vmem:[#allocation7 + $0xb8] sm:$0xff]
    %v259 = vld [vmem:[#allocation7 + $0xc0] sm:$0xff]
    %v260 = vld [vmem:[#allocation7 + $0xc8] sm:$0xff]
    %v261 = vld [vmem:[#allocation7 + $0xd0] sm:$0xff]
    %v262 = vld [vmem:[#allocation7 + $0xd8] sm:$0xff]
    %v263 = vld [vmem:[#allocation7 + $0xe0] sm:$0xff]
    %v264 = vld [vmem:[#allocation7 + $0xe8] sm:$0xff]
    %v265 = vld [vmem:[#allocation7 + $0xf0] sm:$0xff]
    %v266 = vld [vmem:[#allocation7 + $0xf8] sm:$0xff]
    %v299 = vunpack.c.l.b16 %v235
    %v300 = vunpack.c.h.b16 %v235
    %v301 = vunpack.c.l.b16 %v236
    %v302 = vunpack.c.h.b16 %v236
    %v303 = vunpack.c.l.b16 %v237
    %v304 = vunpack.c.h.b16 %v237
    %v305 = vunpack.c.l.b16 %v238
    %v306 = vunpack.c.h.b16 %v238
    %v307 = vunpack.c.l.b16 %v239
    %v308 = vunpack.c.h.b16 %v239
    %v309 = vunpack.c.l.b16 %v240
    %v310 = vunpack.c.h.b16 %v240
    %v311 = vunpack.c.l.b16 %v241
    %v312 = vunpack.c.h.b16 %v241
    %v313 = vunpack.c.l.b16 %v242
    %v314 = vunpack.c.h.b16 %v242
    %v315 = vunpack.c.l.b16 %v243
    %v316 = vunpack.c.h.b16 %v243
    %v317 = vunpack.c.l.b16 %v244
    %v318 = vunpack.c.h.b16 %v244
    %v319 = vunpack.c.l.b16 %v245
    %v320 = vunpack.c.h.b16 %v245
    %v321 = vunpack.c.l.b16 %v246
    %v322 = vunpack.c.h.b16 %v246
    %v323 = vunpack.c.l.b16 %v247
    %v324 = vunpack.c.h.b16 %v247
    %v325 = vunpack.c.l.b16 %v248
    %v326 = vunpack.c.h.b16 %v248
    %v327 = vunpack.c.l.b16 %v249
    %v328 = vunpack.c.h.b16 %v249
    %v329 = vunpack.c.l.b16 %v250
    %v330 = vunpack.c.h.b16 %v250
    %v331 = vunpack.c.l.b16 %v251
    %v332 = vunpack.c.h.b16 %v251
    %v333 = vunpack.c.l.b16 %v252
    %v334 = vunpack.c.h.b16 %v252
    %v335 = vunpack.c.l.b16 %v253
    %v336 = vunpack.c.h.b16 %v253
    %v337 = vunpack.c.l.b16 %v254
    %v338 = vunpack.c.h.b16 %v254
    %v339 = vunpack.c.l.b16 %v255
    %v340 = vunpack.c.h.b16 %v255
    %v341 = vunpack.c.l.b16 %v256
    %v342 = vunpack.c.h.b16 %v256
    %v343 = vunpack.c.l.b16 %v257
    %v344 = vunpack.c.h.b16 %v257
    %v345 = vunpack.c.l.b16 %v258
    %v346 = vunpack.c.h.b16 %v258
    %v347 = vunpack.c.l.b16 %v259
    %v348 = vunpack.c.h.b16 %v259
    %v349 = vunpack.c.l.b16 %v260
    %v350 = vunpack.c.h.b16 %v260
    %v351 = vunpack.c.l.b16 %v261
    %v352 = vunpack.c.h.b16 %v261
    %v353 = vunpack.c.l.b16 %v262
    %v354 = vunpack.c.h.b16 %v262
    %v355 = vunpack.c.l.b16 %v263
    %v356 = vunpack.c.h.b16 %v263
    %v357 = vunpack.c.l.b16 %v264
    %v358 = vunpack.c.h.b16 %v264
    %v359 = vunpack.c.l.b16 %v265
    %v360 = vunpack.c.h.b16 %v265
    %v361 = vunpack.c.l.b16 %v266
    %v362 = vunpack.c.h.b16 %v266
    %v363 = vpack.c.b16 %v301, %v299
    %v364 = vpack.c.b16 %v302, %v300
    %v365 = vpack.c.b16 %v305, %v303
    %v366 = vpack.c.b16 %v306, %v304
    %v367 = vpack.c.b16 %v309, %v307
    %v368 = vpack.c.b16 %v310, %v308
    %v369 = vpack.c.b16 %v313, %v311
    %v370 = vpack.c.b16 %v314, %v312
    %v371 = vpack.c.b16 %v317, %v315
    %v372 = vpack.c.b16 %v318, %v316
    %v373 = vpack.c.b16 %v321, %v319
    %v374 = vpack.c.b16 %v322, %v320
    %v375 = vpack.c.b16 %v325, %v323
    %v376 = vpack.c.b16 %v326, %v324
    %v377 = vpack.c.b16 %v329, %v327
    %v378 = vpack.c.b16 %v330, %v328
    %v379 = vpack.c.b16 %v333, %v331
    %v380 = vpack.c.b16 %v334, %v332
    %v381 = vpack.c.b16 %v337, %v335
    %v382 = vpack.c.b16 %v338, %v336
    %v383 = vpack.c.b16 %v341, %v339
    %v384 = vpack.c.b16 %v342, %v340
    %v385 = vpack.c.b16 %v345, %v343
    %v386 = vpack.c.b16 %v346, %v344
    %v387 = vpack.c.b16 %v349, %v347
    %v388 = vpack.c.b16 %v350, %v348
    %v389 = vpack.c.b16 %v353, %v351
    %v390 = vpack.c.b16 %v354, %v352
    %v391 = vpack.c.b16 %v357, %v355
    %v392 = vpack.c.b16 %v358, %v356
    %v393 = vpack.c.b16 %v361, %v359
    %v394 = vpack.c.b16 %v362, %v360
    %427 = vmatprep.subr.bf16.mxu0 %v364
    %428 = vmatpush1.bf16.msra.mxu0 %v363
    %429 = vmatprep.subr.bf16.mxu0 %v366
    %430 = vmatpush1.bf16.msra.mxu0 %v365
    %431 = vmatprep.subr.bf16.mxu0 %v368
    %432 = vmatpush1.bf16.msra.mxu0 %v367
    %433 = vmatprep.subr.bf16.mxu0 %v370
    %434 = vmatpush1.bf16.msra.mxu0 %v369
    %435 = vmatprep.subr.bf16.mxu0 %v372
    %436 = vmatpush1.bf16.msra.mxu0 %v371
    %437 = vmatprep.subr.bf16.mxu0 %v374
    %438 = vmatpush1.bf16.msra.mxu0 %v373
    %439 = vmatprep.subr.bf16.mxu0 %v376
    %440 = vmatpush1.bf16.msra.mxu0 %v375
    %441 = vmatprep.subr.bf16.mxu0 %v378
    %442 = vmatpush1.bf16.msra.mxu0 %v377
    %443 = vmatprep.subr.bf16.mxu0 %v380
    %444 = vmatpush1.bf16.msra.mxu0 %v379
    %445 = vmatprep.subr.bf16.mxu0 %v382
    %446 = vmatpush1.bf16.msra.mxu0 %v381
    %447 = vmatprep.subr.bf16.mxu0 %v384
    %448 = vmatpush1.bf16.msra.mxu0 %v383
    %449 = vmatprep.subr.bf16.mxu0 %v386
    %450 = vmatpush1.bf16.msra.mxu0 %v385
    %451 = vmatprep.subr.bf16.mxu0 %v388
    %452 = vmatpush1.bf16.msra.mxu0 %v387
    %453 = vmatprep.subr.bf16.mxu0 %v390
    %454 = vmatpush1.bf16.msra.mxu0 %v389
    %455 = vmatprep.subr.bf16.mxu0 %v392
    %456 = vmatpush1.bf16.msra.mxu0 %v391
    %457 = vmatprep.subr.bf16.mxu0 %v394
    %458 = vmatpush1.bf16.msra.mxu0 %v393
    %459 = vmatprep.mubr.bf16.mxu0 %v216
    %460 = vmatmul.mubr.bf16.gmra.mrb[0].mxu0 %v215
    %v461 = vpop.f32.mrb[0].mxu0
    %v462 = vadd.f32 0.0, %v461
    %v463 = vpop.f32.mrb[0].mxu0
    %v464 = vadd.f32 0.0, %v463
    %v465 = vpop.f32.mrb[0].mxu0
    %v466 = vadd.f32 0.0, %v465
    %v467 = vpop.f32.mrb[0].mxu0
    %v468 = vadd.f32 0.0, %v467
    %469 = vmatprep.mubr.bf16.mxu0 %v218
    %470 = vmatmul.mubr.bf16.gmra.mrb[0].mxu0 %v217
    %v471 = vpop.f32.mrb[0].mxu0
    %v472 = vadd.f32 0.0, %v471
    %v473 = vpop.f32.mrb[0].mxu0
    %v474 = vadd.f32 0.0, %v473
    %v475 = vpop.f32.mrb[0].mxu0
    %v476 = vadd.f32 0.0, %v475
    %v477 = vpop.f32.mrb[0].mxu0
    %v478 = vadd.f32 0.0, %v477
    %479 = vmatprep.mubr.bf16.mxu0 %v220
    %480 = vmatmul.mubr.bf16.gmra.mrb[0].mxu0 %v219
    %v481 = vpop.f32.mrb[0].mxu0
    %v482 = vadd.f32 0.0, %v481
    %v483 = vpop.f32.mrb[0].mxu0
    %v484 = vadd.f32 0.0, %v483
    %v485 = vpop.f32.mrb[0].mxu0
    %v486 = vadd.f32 0.0, %v485
    %v487 = vpop.f32.mrb[0].mxu0
    %v488 = vadd.f32 0.0, %v487
    %489 = vmatprep.mubr.bf16.mxu0 %v222
    %490 = vmatmul.mubr.bf16.gmra.mrb[0].mxu0 %v221
    %v491 = vpop.f32.mrb[0].mxu0
    %v492 = vadd.f32 0.0, %v491
    %v493 = vpop.f32.mrb[0].mxu0
    %v494 = vadd.f32 0.0, %v493
    %v495 = vpop.f32.mrb[0].mxu0
    %v496 = vadd.f32 0.0, %v495
    %v497 = vpop.f32.mrb[0].mxu0
    %v498 = vadd.f32 0.0, %v497
    %499 = vmatprep.mubr.bf16.mxu0 %v224
    %500 = vmatmul.mubr.bf16.gmra.mrb[0].mxu0 %v223
    %v501 = vpop.f32.mrb[0].mxu0
    %v502 = vadd.f32 0.0, %v501
    %v503 = vpop.f32.mrb[0].mxu0
    %v504 = vadd.f32 0.0, %v503
    %v505 = vpop.f32.mrb[0].mxu0
    %v506 = vadd.f32 0.0, %v505
    %v507 = vpop.f32.mrb[0].mxu0
    %v508 = vadd.f32 0.0, %v507
    %509 = vmatprep.mubr.bf16.mxu0 %v226
    %510 = vmatmul.mubr.bf16.gmra.mrb[0].mxu0 %v225
    %v511 = vpop.f32.mrb[0].mxu0
    %v512 = vadd.f32 0.0, %v511
    %v513 = vpop.f32.mrb[0].mxu0
    %v514 = vadd.f32 0.0, %v513
    %v515 = vpop.f32.mrb[0].mxu0
    %v516 = vadd.f32 0.0, %v515
    %v517 = vpop.f32.mrb[0].mxu0
    %v518 = vadd.f32 0.0, %v517
    %519 = vmatprep.mubr.bf16.mxu0 %v228
    %520 = vmatmul.mubr.bf16.gmra.mrb[0].mxu0 %v227
    %v521 = vpop.f32.mrb[0].mxu0
    %v522 = vadd.f32 0.0, %v521
    %v523 = vpop.f32.mrb[0].mxu0
    %v524 = vadd.f32 0.0, %v523
    %v525 = vpop.f32.mrb[0].mxu0
    %v526 = vadd.f32 0.0, %v525
    %v527 = vpop.f32.mrb[0].mxu0
    %v528 = vadd.f32 0.0, %v527
    %529 = vmatprep.mubr.bf16.mxu0 %v230
    %530 = vmatmul.mubr.bf16.gmra.mrb[0].mxu0 %v229
    %v531 = vpop.f32.mrb[0].mxu0
    %v532 = vadd.f32 0.0, %v531
    %v533 = vpop.f32.mrb[0].mxu0
    %v534 = vadd.f32 0.0, %v533
    %v535 = vpop.f32.mrb[0].mxu0
    %v536 = vadd.f32 0.0, %v535
    %v537 = vpop.f32.mrb[0].mxu0
    %v538 = vadd.f32 0.0, %v537
    %539 = vmatprep.mubr.bf16.mxu0 %v232
    %540 = vmatmul.mubr.bf16.gmra.mrb[0].mxu0 %v231
    %v541 = vpop.f32.mrb[0].mxu0
    %v542 = vadd.f32 0.0, %v541
    %v543 = vpop.f32.mrb[0].mxu0
    %v544 = vadd.f32 0.0, %v543
    %v545 = vpop.f32.mrb[0].mxu0
    %v546 = vadd.f32 0.0, %v545
    %v547 = vpop.f32.mrb[0].mxu0
    %v548 = vadd.f32 0.0, %v547
    %549 = vmatprep.mubr.bf16.mxu0 %v234
    %550 = vmatmul.mubr.bf16.gmra.mrb[0].mxu0 %v233
    %v551 = vpop.f32.mrb[0].mxu0
    %v552 = vadd.f32 0.0, %v551
    %v553 = vpop.f32.mrb[0].mxu0
    %v554 = vadd.f32 0.0, %v553
    %v555 = vpop.f32.mrb[0].mxu0
    %v556 = vadd.f32 0.0, %v555
    %v557 = vpop.f32.mrb[0].mxu0
    %v558 = vadd.f32 0.0, %v557
    %559 = vdwg.mxu0
    %v560 = vadd.f32 %v135, %v462
    %v561 = vadd.f32 %v136, %v464
    %v562 = vadd.f32 %v137, %v466
    %v563 = vadd.f32 %v138, %v468
    %v564 = vadd.f32 %v139, %v472
    %v565 = vadd.f32 %v140, %v474
    %v566 = vadd.f32 %v141, %v476
    %v567 = vadd.f32 %v142, %v478
    %v568 = vadd.f32 %v143, %v482
    %v569 = vadd.f32 %v144, %v484
    %v570 = vadd.f32 %v145, %v486
    %v571 = vadd.f32 %v146, %v488
    %v572 = vadd.f32 %v147, %v492
    %v573 = vadd.f32 %v148, %v494
    %v574 = vadd.f32 %v149, %v496
    %v575 = vadd.f32 %v150, %v498
    %v576 = vadd.f32 %v151, %v502
    %v577 = vadd.f32 %v152, %v504
    %v578 = vadd.f32 %v153, %v506
    %v579 = vadd.f32 %v154, %v508
    %v580 = vadd.f32 %v155, %v512
    %v581 = vadd.f32 %v156, %v514
    %v582 = vadd.f32 %v157, %v516
    %v583 = vadd.f32 %v158, %v518
    %v584 = vadd.f32 %v159, %v522
    %v585 = vadd.f32 %v160, %v524
    %v586 = vadd.f32 %v161, %v526
    %v587 = vadd.f32 %v162, %v528
    %v588 = vadd.f32 %v163, %v532
    %v589 = vadd.f32 %v164, %v534
    %v590 = vadd.f32 %v165, %v536
    %v591 = vadd.f32 %v166, %v538
    %v592 = vadd.f32 %v167, %v542
    %v593 = vadd.f32 %v168, %v544
    %v594 = vadd.f32 %v169, %v546
    %v595 = vadd.f32 %v170, %v548
    %v596 = vadd.f32 %v171, %v552
    %v597 = vadd.f32 %v172, %v554
    %v598 = vadd.f32 %v173, %v556
    %v599 = vadd.f32 %v174, %v558
    %600 = vst [vmem:[#allocation2] sm:$0xff] %v560
    %601 = vst [vmem:[#allocation2 + $0x8] sm:$0xff] %v561
    %602 = vst [vmem:[#allocation2 + $0x10] sm:$0xff] %v562
    %603 = vst [vmem:[#allocation2 + $0x18] sm:$0xff] %v563
    %604 = vst [vmem:[#allocation2 + $0x20] sm:$0xff] %v564
    %605 = vst [vmem:[#allocation2 + $0x28] sm:$0xff] %v565
    %606 = vst [vmem:[#allocation2 + $0x30] sm:$0xff] %v566
    %607 = vst [vmem:[#allocation2 + $0x38] sm:$0xff] %v567
    %608 = vst [vmem:[#allocation2 + $0x40] sm:$0xff] %v568
    %609 = vst [vmem:[#allocation2 + $0x48] sm:$0xff] %v569
    %610 = vst [vmem:[#allocation2 + $0x50] sm:$0xff] %v570
    %611 = vst [vmem:[#allocation2 + $0x58] sm:$0xff] %v571
    %612 = vst [vmem:[#allocation2 + $0x60] sm:$0xff] %v572
    %613 = vst [vmem:[#allocation2 + $0x68] sm:$0xff] %v573
    %614 = vst [vmem:[#allocation2 + $0x70] sm:$0xff] %v574
    %615 = vst [vmem:[#allocation2 + $0x78] sm:$0xff] %v575
    %616 = vst [vmem:[#allocation2 + $0x80] sm:$0xff] %v576
    %617 = vst [vmem:[#allocation2 + $0x88] sm:$0xff] %v577
    %618 = vst [vmem:[#allocation2 + $0x90] sm:$0xff] %v578
    %619 = vst [vmem:[#allocation2 + $0x98] sm:$0xff] %v579
    %620 = vst [vmem:[#allocation2 + $0xa0] sm:$0xff] %v580
    %621 = vst [vmem:[#allocation2 + $0xa8] sm:$0xff] %v581
    %622 = vst [vmem:[#allocation2 + $0xb0] sm:$0xff] %v582
    %623 = vst [vmem:[#allocation2 + $0xb8] sm:$0xff] %v583
    %624 = vst [vmem:[#allocation2 + $0xc0] sm:$0xff] %v584
    %625 = vst [vmem:[#allocation2 + $0xc8] sm:$0xff] %v585
    %626 = vst [vmem:[#allocation2 + $0xd0] sm:$0xff] %v586
    %627 = vst [vmem:[#allocation2 + $0xd8] sm:$0xff] %v587
    %628 = vst [vmem:[#allocation2 + $0xe0] sm:$0xff] %v588
    %629 = vst [vmem:[#allocation2 + $0xe8] sm:$0xff] %v589
    %630 = vst [vmem:[#allocation2 + $0xf0] sm:$0xff] %v590
    %631 = vst [vmem:[#allocation2 + $0xf8] sm:$0xff] %v591
    %632 = vst [vmem:[#allocation2 + $0x100] sm:$0xff] %v592
    %633 = vst [vmem:[#allocation2 + $0x108] sm:$0xff] %v593
    %634 = vst [vmem:[#allocation2 + $0x110] sm:$0xff] %v594
    %635 = vst [vmem:[#allocation2 + $0x118] sm:$0xff] %v595
    %636 = vst [vmem:[#allocation2 + $0x120] sm:$0xff] %v596
    %637 = vst [vmem:[#allocation2 + $0x128] sm:$0xff] %v597
    %638 = vst [vmem:[#allocation2 + $0x130] sm:$0xff] %v598
    %639 = vst [vmem:[#allocation2 + $0x138] sm:$0xff] %v599
    // Predicated region
    $region54: #{tpu_custom_call.1} parent=1 // pred_check
      %p640 = pneg %p82
    $region55: #{tpu_custom_call.1} parent=1 // pred_check_branch
      %642 = sbr.rel (%p640) target = $region57
    $region56: #{tpu_custom_call.1} parent=1 // pred_region
      %v643 = vld [vmem:[#allocation2] sm:$0xff]
      %v644 = vld [vmem:[#allocation2 + $0x8] sm:$0xff]
      %v645 = vld [vmem:[#allocation2 + $0x10] sm:$0xff]
      %v646 = vld [vmem:[#allocation2 + $0x18] sm:$0xff]
      %v647 = vld [vmem:[#allocation2 + $0x20] sm:$0xff]
      %v648 = vld [vmem:[#allocation2 + $0x28] sm:$0xff]
      %v649 = vld [vmem:[#allocation2 + $0x30] sm:$0xff]
      %v650 = vld [vmem:[#allocation2 + $0x38] sm:$0xff]
      %v651 = vld [vmem:[#allocation2 + $0x40] sm:$0xff]
      %v652 = vld [vmem:[#allocation2 + $0x48] sm:$0xff]
      %v653 = vld [vmem:[#allocation2 + $0x50] sm:$0xff]
      %v654 = vld [vmem:[#allocation2 + $0x58] sm:$0xff]
      %v655 = vld [vmem:[#allocation2 + $0x60] sm:$0xff]
      %v656 = vld [vmem:[#allocation2 + $0x68] sm:$0xff]
      %v657 = vld [vmem:[#allocation2 + $0x70] sm:$0xff]
      %v658 = vld [vmem:[#allocation2 + $0x78] sm:$0xff]
      %v659 = vld [vmem:[#allocation2 + $0x80] sm:$0xff]
      %v660 = vld [vmem:[#allocation2 + $0x88] sm:$0xff]
      %v661 = vld [vmem:[#allocation2 + $0x90] sm:$0xff]
      %v662 = vld [vmem:[#allocation2 + $0x98] sm:$0xff]
      %v663 = vld [vmem:[#allocation2 + $0xa0] sm:$0xff]
      %v664 = vld [vmem:[#allocation2 + $0xa8] sm:$0xff]
      %v665 = vld [vmem:[#allocation2 + $0xb0] sm:$0xff]
      %v666 = vld [vmem:[#allocation2 + $0xb8] sm:$0xff]
      %v667 = vld [vmem:[#allocation2 + $0xc0] sm:$0xff]
      %v668 = vld [vmem:[#allocation2 + $0xc8] sm:$0xff]
      %v669 = vld [vmem:[#allocation2 + $0xd0] sm:$0xff]
      %v670 = vld [vmem:[#allocation2 + $0xd8] sm:$0xff]
      %v671 = vld [vmem:[#allocation2 + $0xe0] sm:$0xff]
      %v672 = vld [vmem:[#allocation2 + $0xe8] sm:$0xff]
      %v673 = vld [vmem:[#allocation2 + $0xf0] sm:$0xff]
      %v674 = vld [vmem:[#allocation2 + $0xf8] sm:$0xff]
      %v675 = vld [vmem:[#allocation2 + $0x100] sm:$0xff]
      %v676 = vld [vmem:[#allocation2 + $0x108] sm:$0xff]
      %v677 = vld [vmem:[#allocation2 + $0x110] sm:$0xff]
      %v678 = vld [vmem:[#allocation2 + $0x118] sm:$0xff]
      %v679 = vld [vmem:[#allocation2 + $0x120] sm:$0xff]
      %v680 = vld [vmem:[#allocation2 + $0x128] sm:$0xff]
      %v681 = vld [vmem:[#allocation2 + $0x130] sm:$0xff]
      %v682 = vld [vmem:[#allocation2 + $0x138] sm:$0xff]
      %v683 = vld [vmem:[%s3] sm:$0x3]
      %v685 = vlaneseq
      %v686 = vshrl.u32 %v685, 7
      %v687 = vsub.s32 0, %v686
      %v688 = vrot.slane %v683, %v687
      %v689 = vlaneseq
      %v690 = vshrl.u32 %v689, 7
      %v691 = vsub.s32 1, %v690
      %v692 = vrot.slane %v683, %v691
      %v695 = vadd.f32 %v643, %v688
      %v696 = vadd.f32 %v644, %v692
      %v697 = vadd.f32 %v645, %v688
      %v698 = vadd.f32 %v646, %v692
      %v699 = vadd.f32 %v647, %v688
      %v700 = vadd.f32 %v648, %v692
      %v701 = vadd.f32 %v649, %v688
      %v702 = vadd.f32 %v650, %v692
      %v703 = vadd.f32 %v651, %v688
      %v704 = vadd.f32 %v652, %v692
      %v705 = vadd.f32 %v653, %v688
      %v706 = vadd.f32 %v654, %v692
      %v707 = vadd.f32 %v655, %v688
      %v708 = vadd.f32 %v656, %v692
      %v709 = vadd.f32 %v657, %v688
      %v710 = vadd.f32 %v658, %v692
      %v711 = vadd.f32 %v659, %v688
      %v712 = vadd.f32 %v660, %v692
      %v713 = vadd.f32 %v661, %v688
      %v714 = vadd.f32 %v662, %v692
      %v715 = vadd.f32 %v663, %v688
      %v716 = vadd.f32 %v664, %v692
      %v717 = vadd.f32 %v665, %v688
      %v718 = vadd.f32 %v666, %v692
      %v719 = vadd.f32 %v667, %v688
      %v720 = vadd.f32 %v668, %v692
      %v721 = vadd.f32 %v669, %v688
      %v722 = vadd.f32 %v670, %v692
      %v723 = vadd.f32 %v671, %v688
      %v724 = vadd.f32 %v672, %v692
      %v725 = vadd.f32 %v673, %v688
      %v726 = vadd.f32 %v674, %v692
      %v727 = vadd.f32 %v675, %v688
      %v728 = vadd.f32 %v676, %v692
      %v729 = vadd.f32 %v677, %v688
      %v730 = vadd.f32 %v678, %v692
      %v731 = vadd.f32 %v679, %v688
      %v732 = vadd.f32 %v680, %v692
      %v733 = vadd.f32 %v681, %v688
      %v734 = vadd.f32 %v682, %v692
      %v735 = vmax.f32 %v695, 0.0
      %v736 = vmax.f32 %v696, 0.0
      %v737 = vmax.f32 %v697, 0.0
      %v738 = vmax.f32 %v698, 0.0
      %v739 = vmax.f32 %v699, 0.0
      %v740 = vmax.f32 %v700, 0.0
      %v741 = vmax.f32 %v701, 0.0
      %v742 = vmax.f32 %v702, 0.0
      %v743 = vmax.f32 %v703, 0.0
      %v744 = vmax.f32 %v704, 0.0
      %v745 = vmax.f32 %v705, 0.0
      %v746 = vmax.f32 %v706, 0.0
      %v747 = vmax.f32 %v707, 0.0
      %v748 = vmax.f32 %v708, 0.0
      %v749 = vmax.f32 %v709, 0.0
      %v750 = vmax.f32 %v710, 0.0
      %v751 = vmax.f32 %v711, 0.0
      %v752 = vmax.f32 %v712, 0.0
      %v753 = vmax.f32 %v713, 0.0
      %v754 = vmax.f32 %v714, 0.0
      %v755 = vmax.f32 %v715, 0.0
      %v756 = vmax.f32 %v716, 0.0
      %v757 = vmax.f32 %v717, 0.0
      %v758 = vmax.f32 %v718, 0.0
      %v759 = vmax.f32 %v719, 0.0
      %v760 = vmax.f32 %v720, 0.0
      %v761 = vmax.f32 %v721, 0.0
      %v762 = vmax.f32 %v722, 0.0
      %v763 = vmax.f32 %v723, 0.0
      %v764 = vmax.f32 %v724, 0.0
      %v765 = vmax.f32 %v725, 0.0
      %v766 = vmax.f32 %v726, 0.0
      %v767 = vmax.f32 %v727, 0.0
      %v768 = vmax.f32 %v728, 0.0
      %v769 = vmax.f32 %v729, 0.0
      %v770 = vmax.f32 %v730, 0.0
      %v771 = vmax.f32 %v731, 0.0
      %v772 = vmax.f32 %v732, 0.0
      %v773 = vmax.f32 %v733, 0.0
      %v774 = vmax.f32 %v734, 0.0
      %v775 = vld [vmem:[#allocation5] sm:$0xff]
      %v776 = vld [vmem:[#allocation5 + $0x8] sm:$0xff]
      %v777 = vld [vmem:[#allocation5 + $0x10] sm:$0xff]
      %v778 = vld [vmem:[#allocation5 + $0x18] sm:$0xff]
      %v779 = vld [vmem:[#allocation5 + $0x20] sm:$0xf]
      %v780 = vld [vmem:[#allocation5 + $0x28] sm:$0xf]
      %v781 = vpack.c.bf16 %v777, %v775
      %v782 = vpack.c.bf16 %v778, %v776
      %v783 = vpack.c.bf16 %v779, %v779
      %v784 = vpack.c.bf16 %v780, %v780
      %v785 = vld [vmem:[#allocation8] sm:$0xff]
      %v786 = vld [vmem:[#allocation8 + $0x8] sm:$0xff]
      %v787 = vld [vmem:[#allocation8 + $0x10] sm:$0xff]
      %v788 = vld [vmem:[#allocation8 + $0x18] sm:$0xff]
      %v789 = vld [vmem:[#allocation8 + $0x20] sm:$0xff]
      %v790 = vld [vmem:[#allocation8 + $0x28] sm:$0xff]
      %v791 = vld [vmem:[#allocation8 + $0x30] sm:$0xff]
      %v792 = vld [vmem:[#allocation8 + $0x38] sm:$0xff]
      %v793 = vld [vmem:[#allocation8 + $0x40] sm:$0xff]
      %v794 = vld [vmem:[#allocation8 + $0x48] sm:$0xff]
      %v795 = vld [vmem:[#allocation8 + $0x50] sm:$0xff]
      %v796 = vld [vmem:[#allocation8 + $0x58] sm:$0xff]
      %v797 = vld [vmem:[#allocation8 + $0x60] sm:$0xff]
      %v798 = vld [vmem:[#allocation8 + $0x68] sm:$0xff]
      %v799 = vld [vmem:[#allocation8 + $0x70] sm:$0xff]
      %v800 = vld [vmem:[#allocation8 + $0x78] sm:$0xff]
      %v801 = vld [vmem:[#allocation8 + $0x80] sm:$0xff]
      %v802 = vld [vmem:[#allocation8 + $0x88] sm:$0xff]
      %v803 = vld [vmem:[#allocation8 + $0x90] sm:$0xff]
      %v804 = vld [vmem:[#allocation8 + $0x98] sm:$0xff]
      %v805 = vld [vmem:[#allocation8 + $0xa0] sm:$0xff]
      %v806 = vld [vmem:[#allocation8 + $0xa8] sm:$0xff]
      %v807 = vld [vmem:[#allocation8 + $0xb0] sm:$0xff]
      %v808 = vld [vmem:[#allocation8 + $0xb8] sm:$0xff]
      %v809 = vld [vmem:[#allocation8 + $0xc0] sm:$0xff]
      %v810 = vld [vmem:[#allocation8 + $0xc8] sm:$0xff]
      %v811 = vld [vmem:[#allocation8 + $0xd0] sm:$0xff]
      %v812 = vld [vmem:[#allocation8 + $0xd8] sm:$0xff]
      %v813 = vld [vmem:[#allocation8 + $0xe0] sm:$0xff]
      %v814 = vld [vmem:[#allocation8 + $0xe8] sm:$0xff]
      %v815 = vld [vmem:[#allocation8 + $0xf0] sm:$0xff]
      %v816 = vld [vmem:[#allocation8 + $0xf8] sm:$0xff]
      %v817 = vld [vmem:[%s5] sm:$0x3]
      %v819 = vlaneseq
      %v820 = vshrl.u32 %v819, 7
      %v821 = vsub.s32 0, %v820
      %v822 = vrot.slane %v817, %v821
      %v823 = vlaneseq
      %v824 = vshrl.u32 %v823, 7
      %v825 = vsub.s32 1, %v824
      %v826 = vrot.slane %v817, %v825
      %v861 = vunpack.c.l.b16 %v785
      %v862 = vunpack.c.h.b16 %v785
      %v863 = vunpack.c.l.b16 %v786
      %v864 = vunpack.c.h.b16 %v786
      %v865 = vunpack.c.l.b16 %v787
      %v866 = vunpack.c.h.b16 %v787
      %v867 = vunpack.c.l.b16 %v788
      %v868 = vunpack.c.h.b16 %v788
      %v869 = vunpack.c.l.b16 %v789
      %v870 = vunpack.c.h.b16 %v789
      %v871 = vunpack.c.l.b16 %v790
      %v872 = vunpack.c.h.b16 %v790
      %v873 = vunpack.c.l.b16 %v791
      %v874 = vunpack.c.h.b16 %v791
      %v875 = vunpack.c.l.b16 %v792
      %v876 = vunpack.c.h.b16 %v792
      %v877 = vunpack.c.l.b16 %v793
      %v878 = vunpack.c.h.b16 %v793
      %v879 = vunpack.c.l.b16 %v794
      %v880 = vunpack.c.h.b16 %v794
      %v881 = vunpack.c.l.b16 %v795
      %v882 = vunpack.c.h.b16 %v795
      %v883 = vunpack.c.l.b16 %v796
      %v884 = vunpack.c.h.b16 %v796
      %v885 = vunpack.c.l.b16 %v797
      %v886 = vunpack.c.h.b16 %v797
      %v887 = vunpack.c.l.b16 %v798
      %v888 = vunpack.c.h.b16 %v798
      %v889 = vunpack.c.l.b16 %v799
      %v890 = vunpack.c.h.b16 %v799
      %v891 = vunpack.c.l.b16 %v800
      %v892 = vunpack.c.h.b16 %v800
      %v893 = vunpack.c.l.b16 %v801
      %v894 = vunpack.c.h.b16 %v801
      %v895 = vunpack.c.l.b16 %v802
      %v896 = vunpack.c.h.b16 %v802
      %v897 = vunpack.c.l.b16 %v803
      %v898 = vunpack.c.h.b16 %v803
      %v899 = vunpack.c.l.b16 %v804
      %v900 = vunpack.c.h.b16 %v804
      %v901 = vunpack.c.l.b16 %v805
      %v902 = vunpack.c.h.b16 %v805
      %v903 = vunpack.c.l.b16 %v806
      %v904 = vunpack.c.h.b16 %v806
      %v905 = vunpack.c.l.b16 %v807
      %v906 = vunpack.c.h.b16 %v807
      %v907 = vunpack.c.l.b16 %v808
      %v908 = vunpack.c.h.b16 %v808
      %v909 = vunpack.c.l.b16 %v809
      %v910 = vunpack.c.h.b16 %v809
      %v911 = vunpack.c.l.b16 %v810
      %v912 = vunpack.c.h.b16 %v810
      %v913 = vunpack.c.l.b16 %v811
      %v914 = vunpack.c.h.b16 %v811
      %v915 = vunpack.c.l.b16 %v812
      %v916 = vunpack.c.h.b16 %v812
      %v917 = vunpack.c.l.b16 %v813
      %v918 = vunpack.c.h.b16 %v813
      %v919 = vunpack.c.l.b16 %v814
      %v920 = vunpack.c.h.b16 %v814
      %v921 = vunpack.c.l.b16 %v815
      %v922 = vunpack.c.h.b16 %v815
      %v923 = vunpack.c.l.b16 %v816
      %v924 = vunpack.c.h.b16 %v816
      %v925 = vpack.c.b16 %v863, %v861
      %v926 = vpack.c.b16 %v864, %v862
      %v927 = vpack.c.b16 %v867, %v865
      %v928 = vpack.c.b16 %v868, %v866
      %v929 = vpack.c.b16 %v871, %v869
      %v930 = vpack.c.b16 %v872, %v870
      %v931 = vpack.c.b16 %v875, %v873
      %v932 = vpack.c.b16 %v876, %v874
      %v933 = vpack.c.b16 %v879, %v877
      %v934 = vpack.c.b16 %v880, %v878
      %v935 = vpack.c.b16 %v883, %v881
      %v936 = vpack.c.b16 %v884, %v882
      %v937 = vpack.c.b16 %v887, %v885
      %v938 = vpack.c.b16 %v888, %v886
      %v939 = vpack.c.b16 %v891, %v889
      %v940 = vpack.c.b16 %v892, %v890
      %v941 = vpack.c.b16 %v895, %v893
      %v942 = vpack.c.b16 %v896, %v894
      %v943 = vpack.c.b16 %v899, %v897
      %v944 = vpack.c.b16 %v900, %v898
      %v945 = vpack.c.b16 %v903, %v901
      %v946 = vpack.c.b16 %v904, %v902
      %v947 = vpack.c.b16 %v907, %v905
      %v948 = vpack.c.b16 %v908, %v906
      %v949 = vpack.c.b16 %v911, %v909
      %v950 = vpack.c.b16 %v912, %v910
      %v951 = vpack.c.b16 %v915, %v913
      %v952 = vpack.c.b16 %v916, %v914
      %v953 = vpack.c.b16 %v919, %v917
      %v954 = vpack.c.b16 %v920, %v918
      %v955 = vpack.c.b16 %v923, %v921
      %v956 = vpack.c.b16 %v924, %v922
      %989 = vmatprep.subr.bf16.mxu0 %v926
      %990 = vmatpush1.bf16.msra.mxu0 %v925
      %991 = vmatprep.subr.bf16.mxu0 %v928
      %992 = vmatpush1.bf16.msra.mxu0 %v927
      %993 = vmatprep.subr.bf16.mxu0 %v930
      %994 = vmatpush1.bf16.msra.mxu0 %v929
      %995 = vmatprep.subr.bf16.mxu0 %v932
      %996 = vmatpush1.bf16.msra.mxu0 %v931
      %997 = vmatprep.subr.bf16.mxu0 %v934
      %998 = vmatpush1.bf16.msra.mxu0 %v933
      %999 = vmatprep.subr.bf16.mxu0 %v936
      %1000 = vmatpush1.bf16.msra.mxu0 %v935
      %1001 = vmatprep.subr.bf16.mxu0 %v938
      %1002 = vmatpush1.bf16.msra.mxu0 %v937
      %1003 = vmatprep.subr.bf16.mxu0 %v940
      %1004 = vmatpush1.bf16.msra.mxu0 %v939
      %1005 = vmatprep.subr.bf16.mxu0 %v942
      %1006 = vmatpush1.bf16.msra.mxu0 %v941
      %1007 = vmatprep.subr.bf16.mxu0 %v944
      %1008 = vmatpush1.bf16.msra.mxu0 %v943
      %1009 = vmatprep.subr.bf16.mxu0 %v946
      %1010 = vmatpush1.bf16.msra.mxu0 %v945
      %1011 = vmatprep.subr.bf16.mxu0 %v948
      %1012 = vmatpush1.bf16.msra.mxu0 %v947
      %1013 = vmatprep.subr.bf16.mxu0 %v950
      %1014 = vmatpush1.bf16.msra.mxu0 %v949
      %1015 = vmatprep.subr.bf16.mxu0 %v952
      %1016 = vmatpush1.bf16.msra.mxu0 %v951
      %1017 = vmatprep.subr.bf16.mxu0 %v954
      %1018 = vmatpush1.bf16.msra.mxu0 %v953
      %1019 = vmatprep.subr.bf16.mxu0 %v956
      %1020 = vmatpush1.bf16.msra.mxu0 %v955
      %1021 = vmatprep.mubr.bf16.mxu0 %v782
      %1022 = vmatmul.mubr.bf16.gmra.mrb[0].mxu0 %v781
      %v1023 = vpop.f32.mrb[0].mxu0
      %v1024 = vadd.f32 %v822, %v1023
      %v1025 = vpop.f32.mrb[0].mxu0
      %v1026 = vadd.f32 %v826, %v1025
      %v1027 = vpop.f32.mrb[0].mxu0
      %v1028 = vadd.f32 %v822, %v1027
      %v1029 = vpop.f32.mrb[0].mxu0
      %v1030 = vadd.f32 %v826, %v1029
      %1031 = vmatprep.mubr.bf16.mxu0 %v784
      %1032 = vmatmul.mubr.bf16.gmra.mrb[0].mxu0 %v783
      %v1033 = vpop.f32.mrb[0].mxu0
      %v1034 = vadd.f32 %v822, %v1033
      %v1035 = vpop.f32.mrb[0].mxu0
      %v1036 = vadd.f32 %v826, %v1035
      %v1037 = vpop.f32.mrb[0].mxu0
      %v1038 = vpop.f32.mrb[0].mxu0
      %1039 = vdwg.mxu0
      %v1040 = vmax.f32 %v1024, 0.0
      %v1041 = vmax.f32 %v1026, 0.0
      %v1042 = vmax.f32 %v1028, 0.0
      %v1043 = vmax.f32 %v1030, 0.0
      %v1044 = vmax.f32 %v1034, 0.0
      %v1045 = vmax.f32 %v1036, 0.0
      %v1046 = vld [vmem:[%s6] sm:$0x3]
      %v1048 = vlaneseq
      %v1049 = vshrl.u32 %v1048, 7
      %v1050 = vsub.s32 0, %v1049
      %v1051 = vrot.slane %v1046, %v1050
      %v1052 = vlaneseq
      %v1053 = vshrl.u32 %v1052, 7
      %v1054 = vsub.s32 1, %v1053
      %v1055 = vrot.slane %v1046, %v1054
      %v1058 = vmul.f32 %v1040, %v1051
      %v1059 = vmul.f32 %v1041, %v1055
      %v1060 = vmul.f32 %v1042, %v1051
      %v1061 = vmul.f32 %v1043, %v1055
      %v1062 = vmul.f32 %v1044, %v1051
      %v1063 = vmul.f32 %v1045, %v1055
      %v1064 = vld [vmem:[%s7] sm:$0xff]
      %v1065 = vld [vmem:[%s7 + $0x8] sm:$0xff]
      %v1066 = vld [vmem:[%s7 + $0x10] sm:$0xf]
      %v1073 = vcombine.low %v1058, %v1059
      %v1074 = vcombine.high %v1058, %v1059
      %v1076 = vunpack.c.l.s4 1966171168
      %v1077 = vunpack.c.0.s8 %v1076
      %v1078 = vlaneseq
      %v1079 = vshrl.u32 %v1078, 7
      %v1080 = vsub.s32 %v1077, %v1079
      %v1081 = vrot.slane %v1073, %v1080
      %v1083 = vunpack.c.l.s4 1966171168
      %v1084 = vunpack.c.0.s8 %v1083
      %v1085 = vlaneseq
      %v1086 = vshrl.u32 %v1085, 7
      %v1087 = vsub.s32 %v1084, %v1086
      %v1088 = vrot.slane %v1074, %v1087
      %v1089 = vcombine.high %v1081, %v1081
      %v1090 = vcombine.high %v1088, %v1088
      %v1092 = vunpack.c.l.s4 1966171168
      %v1093 = vunpack.c.0.s8 %v1092
      %v1094 = vlaneseq
      %v1095 = vshrl.u32 %v1094, 7
      %v1096 = vsub.s32 %v1093, %v1095
      %v1097 = vrot.slane %v1081, %v1096
      %v1099 = vunpack.c.l.s4 1966171168
      %v1100 = vunpack.c.0.s8 %v1099
      %v1101 = vlaneseq
      %v1102 = vshrl.u32 %v1101, 7
      %v1103 = vsub.s32 %v1100, %v1102
      %v1104 = vrot.slane %v1088, %v1103
      %v1106 = vunpack.c.l.s4 1966171168
      %v1107 = vunpack.c.0.s8 %v1106
      %v1108 = vlaneseq
      %v1109 = vshrl.u32 %v1108, 7
      %v1110 = vsub.s32 %v1107, %v1109
      %v1111 = vrot.slane %v1089, %v1110
      %v1113 = vunpack.c.l.s4 1966171168
      %v1114 = vunpack.c.0.s8 %v1113
      %v1115 = vlaneseq
      %v1116 = vshrl.u32 %v1115, 7
      %v1117 = vsub.s32 %v1114, %v1116
      %v1118 = vrot.slane %v1090, %v1117
      %v1119 = vcombine.high %v1097, %v1097
      %v1120 = vcombine.high %v1104, %v1104
      %v1121 = vcombine.high %v1111, %v1111
      %v1122 = vcombine.high %v1118, %v1118
      %v1123 = vcombine.low %v1060, %v1061
      %v1124 = vcombine.high %v1060, %v1061
      %v1126 = vunpack.c.l.s4 1966171168
      %v1127 = vunpack.c.0.s8 %v1126
      %v1128 = vlaneseq
      %v1129 = vshrl.u32 %v1128, 7
      %v1130 = vsub.s32 %v1127, %v1129
      %v1131 = vrot.slane %v1123, %v1130
      %v1133 = vunpack.c.l.s4 1966171168
      %v1134 = vunpack.c.0.s8 %v1133
      %v1135 = vlaneseq
      %v1136 = vshrl.u32 %v1135, 7
      %v1137 = vsub.s32 %v1134, %v1136
      %v1138 = vrot.slane %v1124, %v1137
      %v1139 = vcombine.high %v1131, %v1131
      %v1140 = vcombine.high %v1138, %v1138
      %v1142 = vunpack.c.l.s4 1966171168
      %v1143 = vunpack.c.0.s8 %v1142
      %v1144 = vlaneseq
      %v1145 = vshrl.u32 %v1144, 7
      %v1146 = vsub.s32 %v1143, %v1145
      %v1147 = vrot.slane %v1131, %v1146
      %v1149 = vunpack.c.l.s4 1966171168
      %v1150 = vunpack.c.0.s8 %v1149
      %v1151 = vlaneseq
      %v1152 = vshrl.u32 %v1151, 7
      %v1153 = vsub.s32 %v1150, %v1152
      %v1154 = vrot.slane %v1138, %v1153
      %v1156 = vunpack.c.l.s4 1966171168
      %v1157 = vunpack.c.0.s8 %v1156
      %v1158 = vlaneseq
      %v1159 = vshrl.u32 %v1158, 7
      %v1160 = vsub.s32 %v1157, %v1159
      %v1161 = vrot.slane %v1139, %v1160
      %v1163 = vunpack.c.l.s4 1966171168
      %v1164 = vunpack.c.0.s8 %v1163
      %v1165 = vlaneseq
      %v1166 = vshrl.u32 %v1165, 7
      %v1167 = vsub.s32 %v1164, %v1166
      %v1168 = vrot.slane %v1140, %v1167
      %v1169 = vcombine.high %v1147, %v1147
      %v1170 = vcombine.high %v1154, %v1154
      %v1171 = vcombine.high %v1161, %v1161
      %v1172 = vcombine.high %v1168, %v1168
      %v1173 = vcombine.low %v1062, %v1063
      %v1175 = vunpack.c.l.s4 1966171168
      %v1176 = vunpack.c.0.s8 %v1175
      %v1177 = vlaneseq
      %v1178 = vshrl.u32 %v1177, 7
      %v1179 = vsub.s32 %v1176, %v1178
      %v1180 = vrot.slane %v1173, %v1179
      %v1181 = vcombine.high %v1180, %v1180
      %v1183 = vunpack.c.l.s4 1966171168
      %v1184 = vunpack.c.0.s8 %v1183
      %v1185 = vlaneseq
      %v1186 = vshrl.u32 %v1185, 7
      %v1187 = vsub.s32 %v1184, %v1186
      %v1188 = vrot.slane %v1180, %v1187
      %v1190 = vunpack.c.l.s4 1966171168
      %v1191 = vunpack.c.0.s8 %v1190
      %v1192 = vlaneseq
      %v1193 = vshrl.u32 %v1192, 7
      %v1194 = vsub.s32 %v1191, %v1193
      %v1195 = vrot.slane %v1181, %v1194
      %v1196 = vcombine.high %v1188, %v1188
      %v1197 = vcombine.high %v1195, %v1195
      %v1198 = vlaneseq
      %v1199 = vshrl.u32 %v1198, 7
      %v1200 = vsub.s32 0, %v1199
      %v1201 = vrot.slane %v1097, %v1200
      %v1202 = vlaneseq
      %v1203 = vshrl.u32 %v1202, 7
      %v1204 = vsub.s32 1, %v1203
      %v1205 = vrot.slane %v1097, %v1204
      %v1206 = vlaneseq
      %v1207 = vshrl.u32 %v1206, 7
      %v1208 = vsub.s32 0, %v1207
      %v1209 = vrot.slane %v1111, %v1208
      %v1210 = vlaneseq
      %v1211 = vshrl.u32 %v1210, 7
      %v1212 = vsub.s32 1, %v1211
      %v1213 = vrot.slane %v1111, %v1212
      %v1214 = vlaneseq
      %v1215 = vshrl.u32 %v1214, 7
      %v1216 = vsub.s32 0, %v1215
      %v1217 = vrot.slane %v1119, %v1216
      %v1218 = vlaneseq
      %v1219 = vshrl.u32 %v1218, 7
      %v1220 = vsub.s32 1, %v1219
      %v1221 = vrot.slane %v1119, %v1220
      %v1222 = vlaneseq
      %v1223 = vshrl.u32 %v1222, 7
      %v1224 = vsub.s32 0, %v1223
      %v1225 = vrot.slane %v1121, %v1224
      %v1226 = vlaneseq
      %v1227 = vshrl.u32 %v1226, 7
      %v1228 = vsub.s32 1, %v1227
      %v1229 = vrot.slane %v1121, %v1228
      %v1230 = vlaneseq
      %v1231 = vshrl.u32 %v1230, 7
      %v1232 = vsub.s32 0, %v1231
      %v1233 = vrot.slane %v1104, %v1232
      %v1234 = vlaneseq
      %v1235 = vshrl.u32 %v1234, 7
      %v1236 = vsub.s32 1, %v1235
      %v1237 = vrot.slane %v1104, %v1236
      %v1238 = vlaneseq
      %v1239 = vshrl.u32 %v1238, 7
      %v1240 = vsub.s32 0, %v1239
      %v1241 = vrot.slane %v1118, %v1240
      %v1242 = vlaneseq
      %v1243 = vshrl.u32 %v1242, 7
      %v1244 = vsub.s32 1, %v1243
      %v1245 = vrot.slane %v1118, %v1244
      %v1246 = vlaneseq
      %v1247 = vshrl.u32 %v1246, 7
      %v1248 = vsub.s32 0, %v1247
      %v1249 = vrot.slane %v1120, %v1248
      %v1250 = vlaneseq
      %v1251 = vshrl.u32 %v1250, 7
      %v1252 = vsub.s32 1, %v1251
      %v1253 = vrot.slane %v1120, %v1252
      %v1254 = vlaneseq
      %v1255 = vshrl.u32 %v1254, 7
      %v1256 = vsub.s32 0, %v1255
      %v1257 = vrot.slane %v1122, %v1256
      %v1258 = vlaneseq
      %v1259 = vshrl.u32 %v1258, 7
      %v1260 = vsub.s32 1, %v1259
      %v1261 = vrot.slane %v1122, %v1260
      %v1262 = vlaneseq
      %v1263 = vshrl.u32 %v1262, 7
      %v1264 = vsub.s32 0, %v1263
      %v1265 = vrot.slane %v1147, %v1264
      %v1266 = vlaneseq
      %v1267 = vshrl.u32 %v1266, 7
      %v1268 = vsub.s32 1, %v1267
      %v1269 = vrot.slane %v1147, %v1268
      %v1270 = vlaneseq
      %v1271 = vshrl.u32 %v1270, 7
      %v1272 = vsub.s32 0, %v1271
      %v1273 = vrot.slane %v1161, %v1272
      %v1274 = vlaneseq
      %v1275 = vshrl.u32 %v1274, 7
      %v1276 = vsub.s32 1, %v1275
      %v1277 = vrot.slane %v1161, %v1276
      %v1278 = vlaneseq
      %v1279 = vshrl.u32 %v1278, 7
      %v1280 = vsub.s32 0, %v1279
      %v1281 = vrot.slane %v1169, %v1280
      %v1282 = vlaneseq
      %v1283 = vshrl.u32 %v1282, 7
      %v1284 = vsub.s32 1, %v1283
      %v1285 = vrot.slane %v1169, %v1284
      %v1286 = vlaneseq
      %v1287 = vshrl.u32 %v1286, 7
      %v1288 = vsub.s32 0, %v1287
      %v1289 = vrot.slane %v1171, %v1288
      %v1290 = vlaneseq
      %v1291 = vshrl.u32 %v1290, 7
      %v1292 = vsub.s32 1, %v1291
      %v1293 = vrot.slane %v1171, %v1292
      %v1294 = vlaneseq
      %v1295 = vshrl.u32 %v1294, 7
      %v1296 = vsub.s32 0, %v1295
      %v1297 = vrot.slane %v1154, %v1296
      %v1298 = vlaneseq
      %v1299 = vshrl.u32 %v1298, 7
      %v1300 = vsub.s32 1, %v1299
      %v1301 = vrot.slane %v1154, %v1300
      %v1302 = vlaneseq
      %v1303 = vshrl.u32 %v1302, 7
      %v1304 = vsub.s32 0, %v1303
      %v1305 = vrot.slane %v1168, %v1304
      %v1306 = vlaneseq
      %v1307 = vshrl.u32 %v1306, 7
      %v1308 = vsub.s32 1, %v1307
      %v1309 = vrot.slane %v1168, %v1308
      %v1310 = vlaneseq
      %v1311 = vshrl.u32 %v1310, 7
      %v1312 = vsub.s32 0, %v1311
      %v1313 = vrot.slane %v1170, %v1312
      %v1314 = vlaneseq
      %v1315 = vshrl.u32 %v1314, 7
      %v1316 = vsub.s32 1, %v1315
      %v1317 = vrot.slane %v1170, %v1316
      %v1318 = vlaneseq
      %v1319 = vshrl.u32 %v1318, 7
      %v1320 = vsub.s32 0, %v1319
      %v1321 = vrot.slane %v1172, %v1320
      %v1322 = vlaneseq
      %v1323 = vshrl.u32 %v1322, 7
      %v1324 = vsub.s32 1, %v1323
      %v1325 = vrot.slane %v1172, %v1324
      %v1326 = vlaneseq
      %v1327 = vshrl.u32 %v1326, 7
      %v1328 = vsub.s32 0, %v1327
      %v1329 = vrot.slane %v1188, %v1328
      %v1330 = vlaneseq
      %v1331 = vshrl.u32 %v1330, 7
      %v1332 = vsub.s32 1, %v1331
      %v1333 = vrot.slane %v1188, %v1332
      %v1334 = vlaneseq
      %v1335 = vshrl.u32 %v1334, 7
      %v1336 = vsub.s32 0, %v1335
      %v1337 = vrot.slane %v1195, %v1336
      %v1338 = vlaneseq
      %v1339 = vshrl.u32 %v1338, 7
      %v1340 = vsub.s32 1, %v1339
      %v1341 = vrot.slane %v1195, %v1340
      %v1342 = vlaneseq
      %v1343 = vshrl.u32 %v1342, 7
      %v1344 = vsub.s32 0, %v1343
      %v1345 = vrot.slane %v1196, %v1344
      %v1346 = vlaneseq
      %v1347 = vshrl.u32 %v1346, 7
      %v1348 = vsub.s32 1, %v1347
      %v1349 = vrot.slane %v1196, %v1348
      %v1350 = vlaneseq
      %v1351 = vshrl.u32 %v1350, 7
      %v1352 = vsub.s32 0, %v1351
      %v1353 = vrot.slane %v1197, %v1352
      %v1354 = vlaneseq
      %v1355 = vshrl.u32 %v1354, 7
      %v1356 = vsub.s32 1, %v1355
      %v1357 = vrot.slane %v1197, %v1356
      %v1398 = vmul.f32 %v735, %v1201
      %v1399 = vmul.f32 %v736, %v1205
      %v1400 = vmul.f32 %v737, %v1209
      %v1401 = vmul.f32 %v738, %v1213
      %v1402 = vmul.f32 %v739, %v1217
      %v1403 = vmul.f32 %v740, %v1221
      %v1404 = vmul.f32 %v741, %v1225
      %v1405 = vmul.f32 %v742, %v1229
      %v1406 = vmul.f32 %v743, %v1233
      %v1407 = vmul.f32 %v744, %v1237
      %v1408 = vmul.f32 %v745, %v1241
      %v1409 = vmul.f32 %v746, %v1245
      %v1410 = vmul.f32 %v747, %v1249
      %v1411 = vmul.f32 %v748, %v1253
      %v1412 = vmul.f32 %v749, %v1257
      %v1413 = vmul.f32 %v750, %v1261
      %v1414 = vmul.f32 %v751, %v1265
      %v1415 = vmul.f32 %v752, %v1269
      %v1416 = vmul.f32 %v753, %v1273
      %v1417 = vmul.f32 %v754, %v1277
      %v1418 = vmul.f32 %v755, %v1281
      %v1419 = vmul.f32 %v756, %v1285
      %v1420 = vmul.f32 %v757, %v1289
      %v1421 = vmul.f32 %v758, %v1293
      %v1422 = vmul.f32 %v759, %v1297
      %v1423 = vmul.f32 %v760, %v1301
      %v1424 = vmul.f32 %v761, %v1305
      %v1425 = vmul.f32 %v762, %v1309
      %v1426 = vmul.f32 %v763, %v1313
      %v1427 = vmul.f32 %v764, %v1317
      %v1428 = vmul.f32 %v765, %v1321
      %v1429 = vmul.f32 %v766, %v1325
      %v1430 = vmul.f32 %v767, %v1329
      %v1431 = vmul.f32 %v768, %v1333
      %v1432 = vmul.f32 %v769, %v1337
      %v1433 = vmul.f32 %v770, %v1341
      %v1434 = vmul.f32 %v771, %v1345
      %v1435 = vmul.f32 %v772, %v1349
      %v1436 = vmul.f32 %v773, %v1353
      %v1437 = vmul.f32 %v774, %v1357
      %v1438 = vadd.f32 %v1398, %v1399
      %1439 = vadd.xlane.f32.xlu0 %v1438
      %v1440 = vpop.xlane.xlu0 %1439
      %v1441 = vadd.f32 %v1400, %v1401
      %1442 = vadd.xlane.f32.xlu0 %v1441
      %v1443 = vpop.xlane.xlu0 %1442
      %v1444 = vadd.f32 %v1402, %v1403
      %1445 = vadd.xlane.f32.xlu0 %v1444
      %v1446 = vpop.xlane.xlu0 %1445
      %v1447 = vadd.f32 %v1404, %v1405
      %1448 = vadd.xlane.f32.xlu0 %v1447
      %v1449 = vpop.xlane.xlu0 %1448
      %v1450 = vadd.f32 %v1406, %v1407
      %1451 = vadd.xlane.f32.xlu0 %v1450
      %v1452 = vpop.xlane.xlu0 %1451
      %v1453 = vadd.f32 %v1408, %v1409
      %1454 = vadd.xlane.f32.xlu0 %v1453
      %v1455 = vpop.xlane.xlu0 %1454
      %v1456 = vadd.f32 %v1410, %v1411
      %1457 = vadd.xlane.f32.xlu0 %v1456
      %v1458 = vpop.xlane.xlu0 %1457
      %v1459 = vadd.f32 %v1412, %v1413
      %1460 = vadd.xlane.f32.xlu0 %v1459
      %v1461 = vpop.xlane.xlu0 %1460
      %v1462 = vadd.f32 %v1414, %v1415
      %1463 = vadd.xlane.f32.xlu0 %v1462
      %v1464 = vpop.xlane.xlu0 %1463
      %v1465 = vadd.f32 %v1416, %v1417
      %1466 = vadd.xlane.f32.xlu0 %v1465
      %v1467 = vpop.xlane.xlu0 %1466
      %v1468 = vadd.f32 %v1418, %v1419
      %1469 = vadd.xlane.f32.xlu0 %v1468
      %v1470 = vpop.xlane.xlu0 %1469
      %v1471 = vadd.f32 %v1420, %v1421
      %1472 = vadd.xlane.f32.xlu0 %v1471
      %v1473 = vpop.xlane.xlu0 %1472
      %v1474 = vadd.f32 %v1422, %v1423
      %1475 = vadd.xlane.f32.xlu0 %v1474
      %v1476 = vpop.xlane.xlu0 %1475
      %v1477 = vadd.f32 %v1424, %v1425
      %1478 = vadd.xlane.f32.xlu0 %v1477
      %v1479 = vpop.xlane.xlu0 %1478
      %v1480 = vadd.f32 %v1426, %v1427
      %1481 = vadd.xlane.f32.xlu0 %v1480
      %v1482 = vpop.xlane.xlu0 %1481
      %v1483 = vadd.f32 %v1428, %v1429
      %1484 = vadd.xlane.f32.xlu0 %v1483
      %v1485 = vpop.xlane.xlu0 %1484
      %v1486 = vadd.f32 %v1430, %v1431
      %1487 = vadd.xlane.f32.xlu0 %v1486
      %v1488 = vpop.xlane.xlu0 %1487
      %v1489 = vadd.f32 %v1432, %v1433
      %1490 = vadd.xlane.f32.xlu0 %v1489
      %v1491 = vpop.xlane.xlu0 %1490
      %v1492 = vadd.f32 %v1434, %v1435
      %1493 = vadd.xlane.f32.xlu0 %v1492
      %v1494 = vpop.xlane.xlu0 %1493
      %v1495 = vadd.f32 %v1436, %v1437
      %1496 = vadd.xlane.f32.xlu0 %v1495
      %v1497 = vpop.xlane.xlu0 %1496
      %v1518 = vlaneseq
      %v1519 = vand.u32 %v1518, 127
      %v1520 = vlaneseq
      %v1521 = vshrl.u32 %v1520, 7
      %v1522 = vsub.s32 %v1519, %v1521
      %v1523 = vrot.slane %v1440, %v1522
      %v1524 = vlaneseq
      %v1525 = vshrl.u32 %v1524, 7
      %v1526 = vsub.s32 %v1519, %v1525
      %v1527 = vrot.slane %v1443, %v1526
      %v1528 = vlaneseq
      %v1529 = vshrl.u32 %v1528, 7
      %v1530 = vsub.s32 %v1519, %v1529
      %v1531 = vrot.slane %v1446, %v1530
      %v1532 = vlaneseq
      %v1533 = vshrl.u32 %v1532, 7
      %v1534 = vsub.s32 %v1519, %v1533
      %v1535 = vrot.slane %v1449, %v1534
      %v1536 = vlaneseq
      %v1537 = vshrl.u32 %v1536, 7
      %v1538 = vsub.s32 %v1519, %v1537
      %v1539 = vrot.slane %v1452, %v1538
      %v1540 = vlaneseq
      %v1541 = vshrl.u32 %v1540, 7
      %v1542 = vsub.s32 %v1519, %v1541
      %v1543 = vrot.slane %v1455, %v1542
      %v1544 = vlaneseq
      %v1545 = vshrl.u32 %v1544, 7
      %v1546 = vsub.s32 %v1519, %v1545
      %v1547 = vrot.slane %v1458, %v1546
      %v1548 = vlaneseq
      %v1549 = vshrl.u32 %v1548, 7
      %v1550 = vsub.s32 %v1519, %v1549
      %v1551 = vrot.slane %v1461, %v1550
      %v1552 = vlaneseq
      %v1553 = vshrl.u32 %v1552, 7
      %v1554 = vsub.s32 %v1519, %v1553
      %v1555 = vrot.slane %v1464, %v1554
      %v1556 = vlaneseq
      %v1557 = vshrl.u32 %v1556, 7
      %v1558 = vsub.s32 %v1519, %v1557
      %v1559 = vrot.slane %v1467, %v1558
      %v1560 = vlaneseq
      %v1561 = vshrl.u32 %v1560, 7
      %v1562 = vsub.s32 %v1519, %v1561
      %v1563 = vrot.slane %v1470, %v1562
      %v1564 = vlaneseq
      %v1565 = vshrl.u32 %v1564, 7
      %v1566 = vsub.s32 %v1519, %v1565
      %v1567 = vrot.slane %v1473, %v1566
      %v1568 = vlaneseq
      %v1569 = vshrl.u32 %v1568, 7
      %v1570 = vsub.s32 %v1519, %v1569
      %v1571 = vrot.slane %v1476, %v1570
      %v1572 = vlaneseq
      %v1573 = vshrl.u32 %v1572, 7
      %v1574 = vsub.s32 %v1519, %v1573
      %v1575 = vrot.slane %v1479, %v1574
      %v1576 = vlaneseq
      %v1577 = vshrl.u32 %v1576, 7
      %v1578 = vsub.s32 %v1519, %v1577
      %v1579 = vrot.slane %v1482, %v1578
      %v1580 = vlaneseq
      %v1581 = vshrl.u32 %v1580, 7
      %v1582 = vsub.s32 %v1519, %v1581
      %v1583 = vrot.slane %v1485, %v1582
      %v1584 = vlaneseq
      %v1585 = vshrl.u32 %v1584, 7
      %v1586 = vsub.s32 %v1519, %v1585
      %v1587 = vrot.slane %v1488, %v1586
      %v1588 = vlaneseq
      %v1589 = vshrl.u32 %v1588, 7
      %v1590 = vsub.s32 %v1519, %v1589
      %v1591 = vrot.slane %v1491, %v1590
      %v1592 = vlaneseq
      %v1593 = vshrl.u32 %v1592, 7
      %v1594 = vsub.s32 %v1519, %v1593
      %v1595 = vrot.slane %v1494, %v1594
      %v1596 = vlaneseq
      %v1597 = vshrl.u32 %v1596, 7
      %v1598 = vsub.s32 %v1519, %v1597
      %v1599 = vrot.slane %v1497, %v1598
      %vm1600 = vcmask 1041409
      %v1601 = vsel %vm1600, %v1527, %v1523
      %vm1602 = vcmask 1042434
      %v1603 = vsel %vm1602, %v1531, %v1601
      %vm1604 = vcmask 1043459
      %v1605 = vsel %vm1604, %v1535, %v1603
      %vm1606 = vcmask 1044484
      %v1607 = vsel %vm1606, %v1539, %v1605
      %vm1608 = vcmask 1045509
      %v1609 = vsel %vm1608, %v1543, %v1607
      %vm1610 = vcmask 1046534
      %v1611 = vsel %vm1610, %v1547, %v1609
      %vm1612 = vcmask 1047559
      %v1613 = vsel %vm1612, %v1551, %v1611
      %v1614 = vsel %vm1600, %v1559, %v1555
      %v1615 = vsel %vm1602, %v1563, %v1614
      %v1616 = vsel %vm1604, %v1567, %v1615
      %v1617 = vsel %vm1606, %v1571, %v1616
      %v1618 = vsel %vm1608, %v1575, %v1617
      %v1619 = vsel %vm1610, %v1579, %v1618
      %v1620 = vsel %vm1612, %v1583, %v1619
      %v1621 = vsel %vm1600, %v1591, %v1587
      %v1622 = vsel %vm1602, %v1595, %v1621
      %v1623 = vsel %vm1604, %v1599, %v1622
      %v1627 = vadd.f32 %v1064, %v1613
      %v1628 = vadd.f32 %v1065, %v1620
      %v1629 = vadd.f32 %v1066, %v1623
      %vm1630 = vcmask 64512
      %1631 = vst.msk [vmem:[%s7] sm:$0xff] %vm1630, %v1627
      %1632 = vst.msk [vmem:[%s7 + $0x8] sm:$0xff] %vm1630, %v1628
      %vm1633 = vcmask 60416
      %1634 = vst.msk [vmem:[%s7 + $0x10] sm:$0xf] %vm1633, %v1629
    $region57: #{tpu_custom_call.1} parent=1 // pred_fallthru
      _
    // Predicated region
    $region58: #{tpu_custom_call.1} parent=1 // pred_check
      _
    $region59: #{tpu_custom_call.1} parent=1 // pred_check_branch
      %1636 = sbr.rel (%p83) target = $region61
    $region60: #{tpu_custom_call.1} parent=1 // pred_region
      %v1637 = vld [vmem:[%s7] sm:$0xff]
      %v1638 = vld [vmem:[%s7 + $0x8] sm:$0xff]
      %v1639 = vld [vmem:[%s7 + $0x10] sm:$0xf]
      %vm1640 = vcmask 64512
      %v1641 = vsel %vm1640, %v1637, -inf
      %1642 = vmax.xlane.f32.xlu0 %v1641
      %v1643 = vpop.xlane.xlu0 %1642
      %v1644 = vsel %vm1640, %v1638, -inf
      %1645 = vmax.xlane.f32.xlu0 %v1644
      %v1646 = vpop.xlane.xlu0 %1645
      %vm1647 = vcmask 60416
      %v1648 = vsel %vm1647, %v1639, -inf
      %1649 = vmax.xlane.f32.xlu0 %v1648
      %v1650 = vpop.xlane.xlu0 %1649
      %v1651 = vsub.f32 %v1637, %v1643
      %v1652 = vsub.f32 %v1638, %v1646
      %v1653 = vsub.f32 %v1639, %v1650
      %v1654 = vmul.f32 %v1651, 1.442695
      %v1655 = vpow.pop %v1654
      %v1656 = vmul.f32 %v1652, 1.442695
      %v1657 = vpow.pop %v1656
      %v1658 = vmul.f32 %v1653, 1.442695
      %v1659 = vpow.pop %v1658
      %v1660 = vsel %vm1640, %v1655, 0.0
      %1661 = vadd.xlane.f32.xlu0 %v1660
      %v1662 = vpop.xlane.xlu0 %1661
      %v1663 = vsel %vm1640, %v1657, 0.0
      %1664 = vadd.xlane.f32.xlu0 %v1663
      %v1665 = vpop.xlane.xlu0 %1664
      %v1666 = vsel %vm1647, %v1659, 0.0
      %1667 = vadd.xlane.f32.xlu0 %v1666
      %v1668 = vpop.xlane.xlu0 %1667
      %v1669 = vrcp.pop %v1662
      %v1670 = vmul.f32 %v1655, %v1669
      %v1671 = vrcp.pop %v1665
      %v1672 = vmul.f32 %v1657, %v1671
      %v1673 = vrcp.pop %v1668
      %v1674 = vmul.f32 %v1659, %v1673
      %1675 = vst.msk [vmem:[%s7] sm:$0xff] %vm1640, %v1670
      %1676 = vst.msk [vmem:[%s7 + $0x8] sm:$0xff] %vm1640, %v1672
      %1677 = vst.msk [vmem:[%s7 + $0x10] sm:$0xf] %vm1647, %v1674
    $region61: #{tpu_custom_call.1} parent=1 // pred_fallthru
      _
    // Predicated region
    $region62: #{tpu_custom_call.1} parent=1 // pred_check
      _
    $region63: #{tpu_custom_call.1} parent=1 // pred_check_branch
      %1679 = sbr.rel (0) target = $region65
    $region64: #{tpu_custom_call.1} parent=1 // pred_region
      _
    $region65: #{tpu_custom_call.1} parent=1 // pred_fallthru
      _
    // Predicated region
    $region66: #{tpu_custom_call.1} parent=1 // pred_check
      _
    $region67: #{tpu_custom_call.1} parent=1 // pred_check_branch
      %1681 = sbr.rel (0) target = $region69
    $region68: #{tpu_custom_call.1} parent=1 // pred_region
      _
    $region69: #{tpu_custom_call.1} parent=1 // pred_fallthru
      _
    %1682 = vsyncpa [#allocation4], 1
    %1683 = vsyncpa [#allocation6], 1
    %1684 = vsyncpa [#allocation9], 1

// kernel: tpu_custom_call.1
$region0: #{tpu_custom_call.1}
  #allocation0 [shape = 'u32[]', space=smem, size = 0x4, offset = 0x4, fixed_abs, tag = 'smem constant byte address 0x4 - core index']
  #allocation1 [shape = 'u32[144,128]{1,0:T(1,128)}', space=vmem, size = 0x12000, scoped, tag = 'internal scratch']
  #allocation2 [shape = 'f32[160,256]{1,0:T(8,128)}', space=vmem, size = 0x28000, scoped, tag = 'scratch operand']
  %s0 = inlined_call_operand.hbm [shape: f32[160,256], index: 0, kind: input, shape index: {}]
  %s1 = inlined_call_operand.hbm [shape: f32[20,256], index: 1, kind: input, shape index: {}]
  %s2 = inlined_call_operand.hbm [shape: bf16[256,256], index: 2, kind: input, shape index: {}]
  %s3 = inlined_call_operand.vmem [shape: f32[1,256], index: 3, kind: input, shape index: {}]
  %s4 = inlined_call_operand.hbm [shape: bf16[256,256], index: 4, kind: input, shape index: {}]
  %s5 = inlined_call_operand.vmem [shape: f32[1,256], index: 5, kind: input, shape index: {}]
  %s6 = inlined_call_operand.vmem [shape: f32[1,256], index: 6, kind: input, shape index: {}]
  %s7 = inlined_call_operand.vmem [shape: f32[20,8], index: 7, kind: output, shape index: {}]
  %s8 = sld [smem:[#allocation0]]
  $region70: #{tpu_custom_call.1} parent=0
    _
  %s10 = ssub.s32 1, %s8
  %s11 = scalar_select 0, %s10, %s8
  $region1: #{tpu_custom_call.1} parent=0
    #allocation3 [shape = 'u8[163840]{0}', space=vmem, size = 0x28000, scoped, tag = 'input window, operand 0, single buffered']
    #allocation4 [shape = 's32[1]{0}', space=sflag, size = 0x4, scoped, tag = 'scoped memory for tpu_custom_call.1']
    #allocation5 [shape = 'u8[24576]{0}', space=vmem, size = 0x6000, scoped, tag = 'input window, operand 1, single buffered']
    #allocation6 [shape = 's32[1]{0}', space=sflag, size = 0x4, scoped, tag = 'scoped memory for tpu_custom_call.1']
    #allocation7 [shape = 'u8[131072]{0}', space=vmem, size = 0x20000, scoped, tag = 'input window, operand 2, single buffered']
    #allocation8 [shape = 'u8[131072]{0}', space=vmem, size = 0x20000, scoped, tag = 'input window, operand 4, single buffered']
    #allocation9 [shape = 's32[1]{0}', space=sflag, size = 0x4, scoped, tag = 'scoped memory for tpu_custom_call.1']
    %12 = vsyncpa [#allocation4], 0
    %13 = vsyncpa [#allocation6], 0
    %14 = vsyncpa [#allocation9], 0
    // Predicated region
    $region2: #{tpu_custom_call.1} parent=1 // pred_check
      _
    $region3: #{tpu_custom_call.1} parent=1 // pred_check_branch
      %16 = sbr.rel (0) target = $region5
    $region4: #{tpu_custom_call.1} parent=1 // pred_region
      %s18 = ssub.s32 5120, 5120
      %19 = vsyncadd [#allocation4], %s18
      %s20 = sshll.u32 [#allocation3], 4
      %s21 = int_to_ptr.vmem [resolvable:$true] %s20
      %26 = dma.hbm_to_vmem [thread:$0]  %s0, 5120, %s21, [#allocation4], 256, 256, 16
    $region5: #{tpu_custom_call.1} parent=1 // pred_fallthru
      _
    // Predicated region
    $region6: #{tpu_custom_call.1} parent=1 // pred_check
      _
    $region7: #{tpu_custom_call.1} parent=1 // pred_check_branch
      %28 = sbr.rel (0) target = $region9
    $region8: #{tpu_custom_call.1} parent=1 // pred_region
      %s30 = ssub.s32 768, 768
      %31 = vsyncadd [#allocation6], %s30
      %s32 = sshll.u32 [#allocation5], 4
      %s33 = int_to_ptr.vmem [resolvable:$true] %s32
      %38 = dma.hbm_to_vmem [thread:$0]  %s1, 768, %s33, [#allocation6], 256, 256, 16
    $region9: #{tpu_custom_call.1} parent=1 // pred_fallthru
      _
    // Predicated region
    $region10: #{tpu_custom_call.1} parent=1 // pred_check
      _
    $region11: #{tpu_custom_call.1} parent=1 // pred_check_branch
      %40 = sbr.rel (0) target = $region13
    $region12: #{tpu_custom_call.1} parent=1 // pred_region
      %s42 = ssub.s32 4096, 4096
      %43 = vsyncadd [#allocation6], %s42
      %s44 = sshll.u32 [#allocation7], 4
      %s45 = int_to_ptr.vmem [resolvable:$true] %s44
      %50 = dma.hbm_to_vmem [thread:$0]  %s2, 4096, %s45, [#allocation6], 128, 128, 8
    $region13: #{tpu_custom_call.1} parent=1 // pred_fallthru
      _
    // Predicated region
    $region14: #{tpu_custom_call.1} parent=1 // pred_check
      _
    $region15: #{tpu_custom_call.1} parent=1 // pred_check_branch
      %52 = sbr.rel (0) target = $region17
    $region16: #{tpu_custom_call.1} parent=1 // pred_region
      _
    $region17: #{tpu_custom_call.1} parent=1 // pred_fallthru
      _
    // Predicated region
    $region18: #{tpu_custom_call.1} parent=1 // pred_check
      _
    $region19: #{tpu_custom_call.1} parent=1 // pred_check_branch
      %54 = sbr.rel (0) target = $region21
    $region20: #{tpu_custom_call.1} parent=1 // pred_region
      %s56 = ssub.s32 4096, 4096
      %57 = vsyncadd [#allocation9], %s56
      %s58 = sshll.u32 [#allocation8], 4
      %s59 = int_to_ptr.vmem [resolvable:$true] %s58
      %64 = dma.hbm_to_vmem [thread:$0]  %s4, 4096, %s59, [#allocation9], 128, 128, 8
    $region21: #{tpu_custom_call.1} parent=1 // pred_fallthru
      _
    // Predicated region
    $region22: #{tpu_custom_call.1} parent=1 // pred_check
      _
    $region23: #{tpu_custom_call.1} parent=1 // pred_check_branch
      %66 = sbr.rel (0) target = $region25
    $region24: #{tpu_custom_call.1} parent=1 // pred_region
      _
    $region25: #{tpu_custom_call.1} parent=1 // pred_fallthru
      _
    // Predicated region
    $region26: #{tpu_custom_call.1} parent=1 // pred_check
      _
    $region27: #{tpu_custom_call.1} parent=1 // pred_check_branch
      %68 = sbr.rel (0) target = $region29
    $region28: #{tpu_custom_call.1} parent=1 // pred_region
      _
    $region29: #{tpu_custom_call.1} parent=1 // pred_fallthru
      _
    // Predicated region
    $region30: #{tpu_custom_call.1} parent=1 // pred_check
      _
    $region31: #{tpu_custom_call.1} parent=1 // pred_check_branch
      %70 = sbr.rel (0) target = $region33
    $region32: #{tpu_custom_call.1} parent=1 // pred_region
      %71 = dma.done [#allocation4], 5120
    $region33: #{tpu_custom_call.1} parent=1 // pred_fallthru
      _
    // Predicated region
    $region34: #{tpu_custom_call.1} parent=1 // pred_check
      _
    $region35: #{tpu_custom_call.1} parent=1 // pred_check_branch
      %73 = sbr.rel (0) target = $region37
    $region36: #{tpu_custom_call.1} parent=1 // pred_region
      %74 = dma.done [#allocation6], 768
    $region37: #{tpu_custom_call.1} parent=1 // pred_fallthru
      _
    // Predicated region
    $region38: #{tpu_custom_call.1} parent=1 // pred_check
      _
    $region39: #{tpu_custom_call.1} parent=1 // pred_check_branch
      %76 = sbr.rel (0) target = $region41
    $region40: #{tpu_custom_call.1} parent=1 // pred_region
      %77 = dma.done [#allocation6], 4096
    $region41: #{tpu_custom_call.1} parent=1 // pred_fallthru
      _
    // Predicated region
    $region42: #{tpu_custom_call.1} parent=1 // pred_check
      _
    $region43: #{tpu_custom_call.1} parent=1 // pred_check_branch
      %79 = sbr.rel (0) target = $region45
    $region44: #{tpu_custom_call.1} parent=1 // pred_region
      %80 = dma.done [#allocation9], 4096
    $region45: #{tpu_custom_call.1} parent=1 // pred_fallthru
      _
    %p81 = scmp.eq.s32.totalorder 0, 0
    %p82 = scmp.eq.s32.totalorder 0, 0
    %p83 = pnand %p81, %p82
    %p84 = pneg %p83
    // Predicated region
    $region46: #{tpu_custom_call.1} parent=1 // pred_check
      _
    $region47: #{tpu_custom_call.1} parent=1 // pred_check_branch
      %86 = sbr.rel (%p83) target = $region49
    $region48: #{tpu_custom_call.1} parent=1 // pred_region
      %vm87 = vcmask 64512
      %88 = vst.msk [vmem:[%s7] sm:$0xff] %vm87, 0.0
      %89 = vst.msk [vmem:[%s7 + $0x8] sm:$0xff] %vm87, 0.0
      %vm90 = vcmask 60416
      %91 = vst.msk [vmem:[%s7 + $0x10] sm:$0xf] %vm90, 0.0
    $region49: #{tpu_custom_call.1} parent=1 // pred_fallthru
      _
    // Predicated region
    $region50: #{tpu_custom_call.1} parent=1 // pred_check
      %p92 = pneg %p82
    $region51: #{tpu_custom_call.1} parent=1 // pred_check_branch
      %94 = sbr.rel (%p92) target = $region53
    $region52: #{tpu_custom_call.1} parent=1 // pred_region
      %95 = vst [vmem:[#allocation2] sm:$0xff] 0.0
      %96 = vst [vmem:[#allocation2 + $0x8] sm:$0xff] 0.0
      %97 = vst [vmem:[#allocation2 + $0x10] sm:$0xff] 0.0
      %98 = vst [vmem:[#allocation2 + $0x18] sm:$0xff] 0.0
      %99 = vst [vmem:[#allocation2 + $0x20] sm:$0xff] 0.0
      %100 = vst [vmem:[#allocation2 + $0x28] sm:$0xff] 0.0
      %101 = vst [vmem:[#allocation2 + $0x30] sm:$0xff] 0.0
      %102 = vst [vmem:[#allocation2 + $0x38] sm:$0xff] 0.0
      %103 = vst [vmem:[#allocation2 + $0x40] sm:$0xff] 0.0
      %104 = vst [vmem:[#allocation2 + $0x48] sm:$0xff] 0.0
      %105 = vst [vmem:[#allocation2 + $0x50] sm:$0xff] 0.0
      %106 = vst [vmem:[#allocation2 + $0x58] sm:$0xff] 0.0
      %107 = vst [vmem:[#allocation2 + $0x60] sm:$0xff] 0.0
      %108 = vst [vmem:[#allocation2 + $0x68] sm:$0xff] 0.0
      %109 = vst [vmem:[#allocation2 + $0x70] sm:$0xff] 0.0
      %110 = vst [vmem:[#allocation2 + $0x78] sm:$0xff] 0.0
      %111 = vst [vmem:[#allocation2 + $0x80] sm:$0xff] 0.0
      %112 = vst [vmem:[#allocation2 + $0x88] sm:$0xff] 0.0
      %113 = vst [vmem:[#allocation2 + $0x90] sm:$0xff] 0.0
      %114 = vst [vmem:[#allocation2 + $0x98] sm:$0xff] 0.0
      %115 = vst [vmem:[#allocation2 + $0xa0] sm:$0xff] 0.0
      %116 = vst [vmem:[#allocation2 + $0xa8] sm:$0xff] 0.0
      %117 = vst [vmem:[#allocation2 + $0xb0] sm:$0xff] 0.0
      %118 = vst [vmem:[#allocation2 + $0xb8] sm:$0xff] 0.0
      %119 = vst [vmem:[#allocation2 + $0xc0] sm:$0xff] 0.0
      %120 = vst [vmem:[#allocation2 + $0xc8] sm:$0xff] 0.0
      %121 = vst [vmem:[#allocation2 + $0xd0] sm:$0xff] 0.0
      %122 = vst [vmem:[#allocation2 + $0xd8] sm:$0xff] 0.0
      %123 = vst [vmem:[#allocation2 + $0xe0] sm:$0xff] 0.0
      %124 = vst [vmem:[#allocation2 + $0xe8] sm:$0xff] 0.0
      %125 = vst [vmem:[#allocation2 + $0xf0] sm:$0xff] 0.0
      %126 = vst [vmem:[#allocation2 + $0xf8] sm:$0xff] 0.0
      %127 = vst [vmem:[#allocation2 + $0x100] sm:$0xff] 0.0
      %128 = vst [vmem:[#allocation2 + $0x108] sm:$0xff] 0.0
      %129 = vst [vmem:[#allocation2 + $0x110] sm:$0xff] 0.0
      %130 = vst [vmem:[#allocation2 + $0x118] sm:$0xff] 0.0
      %131 = vst [vmem:[#allocation2 + $0x120] sm:$0xff] 0.0
      %132 = vst [vmem:[#allocation2 + $0x128] sm:$0xff] 0.0
      %133 = vst [vmem:[#allocation2 + $0x130] sm:$0xff] 0.0
      %134 = vst [vmem:[#allocation2 + $0x138] sm:$0xff] 0.0
    $region53: #{tpu_custom_call.1} parent=1 // pred_fallthru
      _
    %v135 = vld [vmem:[#allocation2] sm:$0xff]
    %v136 = vld [vmem:[#allocation2 + $0x8] sm:$0xff]
    %v137 = vld [vmem:[#allocation2 + $0x10] sm:$0xff]
    %v138 = vld [vmem:[#allocation2 + $0x18] sm:$0xff]
    %v139 = vld [vmem:[#allocation2 + $0x20] sm:$0xff]
    %v140 = vld [vmem:[#allocation2 + $0x28] sm:$0xff]
    %v141 = vld [vmem:[#allocation2 + $0x30] sm:$0xff]
    %v142 = vld [vmem:[#allocation2 + $0x38] sm:$0xff]
    %v143 = vld [vmem:[#allocation2 + $0x40] sm:$0xff]
    %v144 = vld [vmem:[#allocation2 + $0x48] sm:$0xff]
    %v145 = vld [vmem:[#allocation2 + $0x50] sm:$0xff]
    %v146 = vld [vmem:[#allocation2 + $0x58] sm:$0xff]
    %v147 = vld [vmem:[#allocation2 + $0x60] sm:$0xff]
    %v148 = vld [vmem:[#allocation2 + $0x68] sm:$0xff]
    %v149 = vld [vmem:[#allocation2 + $0x70] sm:$0xff]
    %v150 = vld [vmem:[#allocation2 + $0x78] sm:$0xff]
    %v151 = vld [vmem:[#allocation2 + $0x80] sm:$0xff]
    %v152 = vld [vmem:[#allocation2 + $0x88] sm:$0xff]
    %v153 = vld [vmem:[#allocation2 + $0x90] sm:$0xff]
    %v154 = vld [vmem:[#allocation2 + $0x98] sm:$0xff]
    %v155 = vld [vmem:[#allocation2 + $0xa0] sm:$0xff]
    %v156 = vld [vmem:[#allocation2 + $0xa8] sm:$0xff]
    %v157 = vld [vmem:[#allocation2 + $0xb0] sm:$0xff]
    %v158 = vld [vmem:[#allocation2 + $0xb8] sm:$0xff]
    %v159 = vld [vmem:[#allocation2 + $0xc0] sm:$0xff]
    %v160 = vld [vmem:[#allocation2 + $0xc8] sm:$0xff]
    %v161 = vld [vmem:[#allocation2 + $0xd0] sm:$0xff]
    %v162 = vld [vmem:[#allocation2 + $0xd8] sm:$0xff]
    %v163 = vld [vmem:[#allocation2 + $0xe0] sm:$0xff]
    %v164 = vld [vmem:[#allocation2 + $0xe8] sm:$0xff]
    %v165 = vld [vmem:[#allocation2 + $0xf0] sm:$0xff]
    %v166 = vld [vmem:[#allocation2 + $0xf8] sm:$0xff]
    %v167 = vld [vmem:[#allocation2 + $0x100] sm:$0xff]
    %v168 = vld [vmem:[#allocation2 + $0x108] sm:$0xff]
    %v169 = vld [vmem:[#allocation2 + $0x110] sm:$0xff]
    %v170 = vld [vmem:[#allocation2 + $0x118] sm:$0xff]
    %v171 = vld [vmem:[#allocation2 + $0x120] sm:$0xff]
    %v172 = vld [vmem:[#allocation2 + $0x128] sm:$0xff]
    %v173 = vld [vmem:[#allocation2 + $0x130] sm:$0xff]
    %v174 = vld [vmem:[#allocation2 + $0x138] sm:$0xff]
    %v175 = vld [vmem:[#allocation3] sm:$0xff]
    %v176 = vld [vmem:[#allocation3 + $0x8] sm:$0xff]
    %v177 = vld [vmem:[#allocation3 + $0x10] sm:$0xff]
    %v178 = vld [vmem:[#allocation3 + $0x18] sm:$0xff]
    %v179 = vld [vmem:[#allocation3 + $0x20] sm:$0xff]
    %v180 = vld [vmem:[#allocation3 + $0x28] sm:$0xff]
    %v181 = vld [vmem:[#allocation3 + $0x30] sm:$0xff]
    %v182 = vld [vmem:[#allocation3 + $0x38] sm:$0xff]
    %v183 = vld [vmem:[#allocation3 + $0x40] sm:$0xff]
    %v184 = vld [vmem:[#allocation3 + $0x48] sm:$0xff]
    %v185 = vld [vmem:[#allocation3 + $0x50] sm:$0xff]
    %v186 = vld [vmem:[#allocation3 + $0x58] sm:$0xff]
    %v187 = vld [vmem:[#allocation3 + $0x60] sm:$0xff]
    %v188 = vld [vmem:[#allocation3 + $0x68] sm:$0xff]
    %v189 = vld [vmem:[#allocation3 + $0x70] sm:$0xff]
    %v190 = vld [vmem:[#allocation3 + $0x78] sm:$0xff]
    %v191 = vld [vmem:[#allocation3 + $0x80] sm:$0xff]
    %v192 = vld [vmem:[#allocation3 + $0x88] sm:$0xff]
    %v193 = vld [vmem:[#allocation3 + $0x90] sm:$0xff]
    %v194 = vld [vmem:[#allocation3 + $0x98] sm:$0xff]
    %v195 = vld [vmem:[#allocation3 + $0xa0] sm:$0xff]
    %v196 = vld [vmem:[#allocation3 + $0xa8] sm:$0xff]
    %v197 = vld [vmem:[#allocation3 + $0xb0] sm:$0xff]
    %v198 = vld [vmem:[#allocation3 + $0xb8] sm:$0xff]
    %v199 = vld [vmem:[#allocation3 + $0xc0] sm:$0xff]
    %v200 = vld [vmem:[#allocation3 + $0xc8] sm:$0xff]
    %v201 = vld [vmem:[#allocation3 + $0xd0] sm:$0xff]
    %v202 = vld [vmem:[#allocation3 + $0xd8] sm:$0xff]
    %v203 = vld [vmem:[#allocation3 + $0xe0] sm:$0xff]
    %v204 = vld [vmem:[#allocation3 + $0xe8] sm:$0xff]
    %v205 = vld [vmem:[#allocation3 + $0xf0] sm:$0xff]
    %v206 = vld [vmem:[#allocation3 + $0xf8] sm:$0xff]
    %v207 = vld [vmem:[#allocation3 + $0x100] sm:$0xff]
    %v208 = vld [vmem:[#allocation3 + $0x108] sm:$0xff]
    %v209 = vld [vmem:[#allocation3 + $0x110] sm:$0xff]
    %v210 = vld [vmem:[#allocation3 + $0x118] sm:$0xff]
    %v211 = vld [vmem:[#allocation3 + $0x120] sm:$0xff]
    %v212 = vld [vmem:[#allocation3 + $0x128] sm:$0xff]
    %v213 = vld [vmem:[#allocation3 + $0x130] sm:$0xff]
    %v214 = vld [vmem:[#allocation3 + $0x138] sm:$0xff]
    %v215 = vpack.c.bf16 %v177, %v175
    %v216 = vpack.c.bf16 %v178, %v176
    %v217 = vpack.c.bf16 %v181, %v179
    %v218 = vpack.c.bf16 %v182, %v180
    %v219 = vpack.c.bf16 %v185, %v183
    %v220 = vpack.c.bf16 %v186, %v184
    %v221 = vpack.c.bf16 %v189, %v187
    %v222 = vpack.c.bf16 %v190, %v188
    %v223 = vpack.c.bf16 %v193, %v191
    %v224 = vpack.c.bf16 %v194, %v192
    %v225 = vpack.c.bf16 %v197, %v195
    %v226 = vpack.c.bf16 %v198, %v196
    %v227 = vpack.c.bf16 %v201, %v199
    %v228 = vpack.c.bf16 %v202, %v200
    %v229 = vpack.c.bf16 %v205, %v203
    %v230 = vpack.c.bf16 %v206, %v204
    %v231 = vpack.c.bf16 %v209, %v207
    %v232 = vpack.c.bf16 %v210, %v208
    %v233 = vpack.c.bf16 %v213, %v211
    %v234 = vpack.c.bf16 %v214, %v212
    %v235 = vld [vmem:[#allocation7] sm:$0xff]
    %v236 = vld [vmem:[#allocation7 + $0x8] sm:$0xff]
    %v237 = vld [vmem:[#allocation7 + $0x10] sm:$0xff]
    %v238 = vld [vmem:[#allocation7 + $0x18] sm:$0xff]
    %v239 = vld [vmem:[#allocation7 + $0x20] sm:$0xff]
    %v240 = vld [vmem:[#allocation7 + $0x28] sm:$0xff]
    %v241 = vld [vmem:[#allocation7 + $0x30] sm:$0xff]
    %v242 = vld [vmem:[#allocation7 + $0x38] sm:$0xff]
    %v243 = vld [vmem:[#allocation7 + $0x40] sm:$0xff]
    %v244 = vld [vmem:[#allocation7 + $0x48] sm:$0xff]
    %v245 = vld [vmem:[#allocation7 + $0x50] sm:$0xff]
    %v246 = vld [vmem:[#allocation7 + $0x58] sm:$0xff]
    %v247 = vld [vmem:[#allocation7 + $0x60] sm:$0xff]
    %v248 = vld [vmem:[#allocation7 + $0x68] sm:$0xff]
    %v249 = vld [vmem:[#allocation7 + $0x70] sm:$0xff]
    %v250 = vld [vmem:[#allocation7 + $0x78] sm:$0xff]
    %v251 = vld [vmem:[#allocation7 + $0x80] sm:$0xff]
    %v252 = vld [vmem:[#allocation7 + $0x88] sm:$0xff]
    %v253 = vld [vmem:[#allocation7 + $0x90] sm:$0xff]
    %v254 = vld [vmem:[#allocation7 + $0x98] sm:$0xff]
    %v255 = vld [vmem:[#allocation7 + $0xa0] sm:$0xff]
    %v256 = vld [vmem:[#allocation7 + $0xa8] sm:$0xff]
    %v257 = vld [vmem:[#allocation7 + $0xb0] sm:$0xff]
    %v258 = vld [vmem:[#allocation7 + $0xb8] sm:$0xff]
    %v259 = vld [vmem:[#allocation7 + $0xc0] sm:$0xff]
    %v260 = vld [vmem:[#allocation7 + $0xc8] sm:$0xff]
    %v261 = vld [vmem:[#allocation7 + $0xd0] sm:$0xff]
    %v262 = vld [vmem:[#allocation7 + $0xd8] sm:$0xff]
    %v263 = vld [vmem:[#allocation7 + $0xe0] sm:$0xff]
    %v264 = vld [vmem:[#allocation7 + $0xe8] sm:$0xff]
    %v265 = vld [vmem:[#allocation7 + $0xf0] sm:$0xff]
    %v266 = vld [vmem:[#allocation7 + $0xf8] sm:$0xff]
    %v299 = vunpack.c.l.b16 %v235
    %v300 = vunpack.c.h.b16 %v235
    %v301 = vunpack.c.l.b16 %v236
    %v302 = vunpack.c.h.b16 %v236
    %v303 = vunpack.c.l.b16 %v237
    %v304 = vunpack.c.h.b16 %v237
    %v305 = vunpack.c.l.b16 %v238
    %v306 = vunpack.c.h.b16 %v238
    %v307 = vunpack.c.l.b16 %v239
    %v308 = vunpack.c.h.b16 %v239
    %v309 = vunpack.c.l.b16 %v240
    %v310 = vunpack.c.h.b16 %v240
    %v311 = vunpack.c.l.b16 %v241
    %v312 = vunpack.c.h.b16 %v241
    %v313 = vunpack.c.l.b16 %v242
    %v314 = vunpack.c.h.b16 %v242
    %v315 = vunpack.c.l.b16 %v243
    %v316 = vunpack.c.h.b16 %v243
    %v317 = vunpack.c.l.b16 %v244
    %v318 = vunpack.c.h.b16 %v244
    %v319 = vunpack.c.l.b16 %v245
    %v320 = vunpack.c.h.b16 %v245
    %v321 = vunpack.c.l.b16 %v246
    %v322 = vunpack.c.h.b16 %v246
    %v323 = vunpack.c.l.b16 %v247
    %v324 = vunpack.c.h.b16 %v247
    %v325 = vunpack.c.l.b16 %v248
    %v326 = vunpack.c.h.b16 %v248
    %v327 = vunpack.c.l.b16 %v249
    %v328 = vunpack.c.h.b16 %v249
    %v329 = vunpack.c.l.b16 %v250
    %v330 = vunpack.c.h.b16 %v250
    %v331 = vunpack.c.l.b16 %v251
    %v332 = vunpack.c.h.b16 %v251
    %v333 = vunpack.c.l.b16 %v252
    %v334 = vunpack.c.h.b16 %v252
    %v335 = vunpack.c.l.b16 %v253
    %v336 = vunpack.c.h.b16 %v253
    %v337 = vunpack.c.l.b16 %v254
    %v338 = vunpack.c.h.b16 %v254
    %v339 = vunpack.c.l.b16 %v255
    %v340 = vunpack.c.h.b16 %v255
    %v341 = vunpack.c.l.b16 %v256
    %v342 = vunpack.c.h.b16 %v256
    %v343 = vunpack.c.l.b16 %v257
    %v344 = vunpack.c.h.b16 %v257
    %v345 = vunpack.c.l.b16 %v258
    %v346 = vunpack.c.h.b16 %v258
    %v347 = vunpack.c.l.b16 %v259
    %v348 = vunpack.c.h.b16 %v259
    %v349 = vunpack.c.l.b16 %v260
    %v350 = vunpack.c.h.b16 %v260
    %v351 = vunpack.c.l.b16 %v261
    %v352 = vunpack.c.h.b16 %v261
    %v353 = vunpack.c.l.b16 %v262
    %v354 = vunpack.c.h.b16 %v262
    %v355 = vunpack.c.l.b16 %v263
    %v356 = vunpack.c.h.b16 %v263
    %v357 = vunpack.c.l.b16 %v264
    %v358 = vunpack.c.h.b16 %v264
    %v359 = vunpack.c.l.b16 %v265
    %v360 = vunpack.c.h.b16 %v265
    %v361 = vunpack.c.l.b16 %v266
    %v362 = vunpack.c.h.b16 %v266
    %v363 = vpack.c.b16 %v301, %v299
    %v364 = vpack.c.b16 %v302, %v300
    %v365 = vpack.c.b16 %v305, %v303
    %v366 = vpack.c.b16 %v306, %v304
    %v367 = vpack.c.b16 %v309, %v307
    %v368 = vpack.c.b16 %v310, %v308
    %v369 = vpack.c.b16 %v313, %v311
    %v370 = vpack.c.b16 %v314, %v312
    %v371 = vpack.c.b16 %v317, %v315
    %v372 = vpack.c.b16 %v318, %v316
    %v373 = vpack.c.b16 %v321, %v319
    %v374 = vpack.c.b16 %v322, %v320
    %v375 = vpack.c.b16 %v325, %v323
    %v376 = vpack.c.b16 %v326, %v324
    %v377 = vpack.c.b16 %v329, %v327
    %v378 = vpack.c.b16 %v330, %v328
    %v379 = vpack.c.b16 %v333, %v331
    %v380 = vpack.c.b16 %v334, %v332
    %v381 = vpack.c.b16 %v337, %v335
    %v382 = vpack.c.b16 %v338, %v336
    %v383 = vpack.c.b16 %v341, %v339
    %v384 = vpack.c.b16 %v342, %v340
    %v385 = vpack.c.b16 %v345, %v343
    %v386 = vpack.c.b16 %v346, %v344
    %v387 = vpack.c.b16 %v349, %v347
    %v388 = vpack.c.b16 %v350, %v348
    %v389 = vpack.c.b16 %v353, %v351
    %v390 = vpack.c.b16 %v354, %v352
    %v391 = vpack.c.b16 %v357, %v355
    %v392 = vpack.c.b16 %v358, %v356
    %v393 = vpack.c.b16 %v361, %v359
    %v394 = vpack.c.b16 %v362, %v360
    %427 = vmatprep.subr.bf16.mxu0 %v364
    %428 = vmatpush1.bf16.msra.mxu0 %v363
    %429 = vmatprep.subr.bf16.mxu0 %v366
    %430 = vmatpush1.bf16.msra.mxu0 %v365
    %431 = vmatprep.subr.bf16.mxu0 %v368
    %432 = vmatpush1.bf16.msra.mxu0 %v367
    %433 = vmatprep.subr.bf16.mxu0 %v370
    %434 = vmatpush1.bf16.msra.mxu0 %v369
    %435 = vmatprep.subr.bf16.mxu0 %v372
    %436 = vmatpush1.bf16.msra.mxu0 %v371
    %437 = vmatprep.subr.bf16.mxu0 %v374
    %438 = vmatpush1.bf16.msra.mxu0 %v373
    %439 = vmatprep.subr.bf16.mxu0 %v376
    %440 = vmatpush1.bf16.msra.mxu0 %v375
    %441 = vmatprep.subr.bf16.mxu0 %v378
    %442 = vmatpush1.bf16.msra.mxu0 %v377
    %443 = vmatprep.subr.bf16.mxu0 %v380
    %444 = vmatpush1.bf16.msra.mxu0 %v379
    %445 = vmatprep.subr.bf16.mxu0 %v382
    %446 = vmatpush1.bf16.msra.mxu0 %v381
    %447 = vmatprep.subr.bf16.mxu0 %v384
    %448 = vmatpush1.bf16.msra.mxu0 %v383
    %449 = vmatprep.subr.bf16.mxu0 %v386
    %450 = vmatpush1.bf16.msra.mxu0 %v385
    %451 = vmatprep.subr.bf16.mxu0 %v388
    %452 = vmatpush1.bf16.msra.mxu0 %v387
    %453 = vmatprep.subr.bf16.mxu0 %v390
    %454 = vmatpush1.bf16.msra.mxu0 %v389
    %455 = vmatprep.subr.bf16.mxu0 %v392
    %456 = vmatpush1.bf16.msra.mxu0 %v391
    %457 = vmatprep.subr.bf16.mxu0 %v394
    %458 = vmatpush1.bf16.msra.mxu0 %v393
    %459 = vmatprep.mubr.bf16.mxu0 %v216
    %460 = vmatmul.mubr.bf16.gmra.mrb[0].mxu0 %v215
    %v461 = vpop.f32.mrb[0].mxu0
    %v462 = vadd.f32 0.0, %v461
    %v463 = vpop.f32.mrb[0].mxu0
    %v464 = vadd.f32 0.0, %v463
    %v465 = vpop.f32.mrb[0].mxu0
    %v466 = vadd.f32 0.0, %v465
    %v467 = vpop.f32.mrb[0].mxu0
    %v468 = vadd.f32 0.0, %v467
    %469 = vmatprep.mubr.bf16.mxu0 %v218
    %470 = vmatmul.mubr.bf16.gmra.mrb[0].mxu0 %v217
    %v471 = vpop.f32.mrb[0].mxu0
    %v472 = vadd.f32 0.0, %v471
    %v473 = vpop.f32.mrb[0].mxu0
    %v474 = vadd.f32 0.0, %v473
    %v475 = vpop.f32.mrb[0].mxu0
    %v476 = vadd.f32 0.0, %v475
    %v477 = vpop.f32.mrb[0].mxu0
    %v478 = vadd.f32 0.0, %v477
    %479 = vmatprep.mubr.bf16.mxu0 %v220
    %480 = vmatmul.mubr.bf16.gmra.mrb[0].mxu0 %v219
    %v481 = vpop.f32.mrb[0].mxu0
    %v482 = vadd.f32 0.0, %v481
    %v483 = vpop.f32.mrb[0].mxu0
    %v484 = vadd.f32 0.0, %v483
    %v485 = vpop.f32.mrb[0].mxu0
    %v486 = vadd.f32 0.0, %v485
    %v487 = vpop.f32.mrb[0].mxu0
    %v488 = vadd.f32 0.0, %v487
    %489 = vmatprep.mubr.bf16.mxu0 %v222
    %490 = vmatmul.mubr.bf16.gmra.mrb[0].mxu0 %v221
    %v491 = vpop.f32.mrb[0].mxu0
    %v492 = vadd.f32 0.0, %v491
    %v493 = vpop.f32.mrb[0].mxu0
    %v494 = vadd.f32 0.0, %v493
    %v495 = vpop.f32.mrb[0].mxu0
    %v496 = vadd.f32 0.0, %v495
    %v497 = vpop.f32.mrb[0].mxu0
    %v498 = vadd.f32 0.0, %v497
    %499 = vmatprep.mubr.bf16.mxu0 %v224
    %500 = vmatmul.mubr.bf16.gmra.mrb[0].mxu0 %v223
    %v501 = vpop.f32.mrb[0].mxu0
    %v502 = vadd.f32 0.0, %v501
    %v503 = vpop.f32.mrb[0].mxu0
    %v504 = vadd.f32 0.0, %v503
    %v505 = vpop.f32.mrb[0].mxu0
    %v506 = vadd.f32 0.0, %v505
    %v507 = vpop.f32.mrb[0].mxu0
    %v508 = vadd.f32 0.0, %v507
    %509 = vmatprep.mubr.bf16.mxu0 %v226
    %510 = vmatmul.mubr.bf16.gmra.mrb[0].mxu0 %v225
    %v511 = vpop.f32.mrb[0].mxu0
    %v512 = vadd.f32 0.0, %v511
    %v513 = vpop.f32.mrb[0].mxu0
    %v514 = vadd.f32 0.0, %v513
    %v515 = vpop.f32.mrb[0].mxu0
    %v516 = vadd.f32 0.0, %v515
    %v517 = vpop.f32.mrb[0].mxu0
    %v518 = vadd.f32 0.0, %v517
    %519 = vmatprep.mubr.bf16.mxu0 %v228
    %520 = vmatmul.mubr.bf16.gmra.mrb[0].mxu0 %v227
    %v521 = vpop.f32.mrb[0].mxu0
    %v522 = vadd.f32 0.0, %v521
    %v523 = vpop.f32.mrb[0].mxu0
    %v524 = vadd.f32 0.0, %v523
    %v525 = vpop.f32.mrb[0].mxu0
    %v526 = vadd.f32 0.0, %v525
    %v527 = vpop.f32.mrb[0].mxu0
    %v528 = vadd.f32 0.0, %v527
    %529 = vmatprep.mubr.bf16.mxu0 %v230
    %530 = vmatmul.mubr.bf16.gmra.mrb[0].mxu0 %v229
    %v531 = vpop.f32.mrb[0].mxu0
    %v532 = vadd.f32 0.0, %v531
    %v533 = vpop.f32.mrb[0].mxu0
    %v534 = vadd.f32 0.0, %v533
    %v535 = vpop.f32.mrb[0].mxu0
    %v536 = vadd.f32 0.0, %v535
    %v537 = vpop.f32.mrb[0].mxu0
    %v538 = vadd.f32 0.0, %v537
    %539 = vmatprep.mubr.bf16.mxu0 %v232
    %540 = vmatmul.mubr.bf16.gmra.mrb[0].mxu0 %v231
    %v541 = vpop.f32.mrb[0].mxu0
    %v542 = vadd.f32 0.0, %v541
    %v543 = vpop.f32.mrb[0].mxu0
    %v544 = vadd.f32 0.0, %v543
    %v545 = vpop.f32.mrb[0].mxu0
    %v546 = vadd.f32 0.0, %v545
    %v547 = vpop.f32.mrb[0].mxu0
    %v548 = vadd.f32 0.0, %v547
    %549 = vmatprep.mubr.bf16.mxu0 %v234
    %550 = vmatmul.mubr.bf16.gmra.mrb[0].mxu0 %v233
    %v551 = vpop.f32.mrb[0].mxu0
    %v552 = vadd.f32 0.0, %v551
    %v553 = vpop.f32.mrb[0].mxu0
    %v554 = vadd.f32 0.0, %v553
    %v555 = vpop.f32.mrb[0].mxu0
    %v556 = vadd.f32 0.0, %v555
    %v557 = vpop.f32.mrb[0].mxu0
    %v558 = vadd.f32 0.0, %v557
    %559 = vdwg.mxu0
    %v560 = vadd.f32 %v135, %v462
    %v561 = vadd.f32 %v136, %v464
    %v562 = vadd.f32 %v137, %v466
    %v563 = vadd.f32 %v138, %v468
    %v564 = vadd.f32 %v139, %v472
    %v565 = vadd.f32 %v140, %v474
    %v566 = vadd.f32 %v141, %v476
    %v567 = vadd.f32 %v142, %v478
    %v568 = vadd.f32 %v143, %v482
    %v569 = vadd.f32 %v144, %v484
    %v570 = vadd.f32 %v145, %v486
    %v571 = vadd.f32 %v146, %v488
    %v572 = vadd.f32 %v147, %v492
    %v573 = vadd.f32 %v148, %v494
    %v574 = vadd.f32 %v149, %v496
    %v575 = vadd.f32 %v150, %v498
    %v576 = vadd.f32 %v151, %v502
    %v577 = vadd.f32 %v152, %v504
    %v578 = vadd.f32 %v153, %v506
    %v579 = vadd.f32 %v154, %v508
    %v580 = vadd.f32 %v155, %v512
    %v581 = vadd.f32 %v156, %v514
    %v582 = vadd.f32 %v157, %v516
    %v583 = vadd.f32 %v158, %v518
    %v584 = vadd.f32 %v159, %v522
    %v585 = vadd.f32 %v160, %v524
    %v586 = vadd.f32 %v161, %v526
    %v587 = vadd.f32 %v162, %v528
    %v588 = vadd.f32 %v163, %v532
    %v589 = vadd.f32 %v164, %v534
    %v590 = vadd.f32 %v165, %v536
    %v591 = vadd.f32 %v166, %v538
    %v592 = vadd.f32 %v167, %v542
    %v593 = vadd.f32 %v168, %v544
    %v594 = vadd.f32 %v169, %v546
    %v595 = vadd.f32 %v170, %v548
    %v596 = vadd.f32 %v171, %v552
    %v597 = vadd.f32 %v172, %v554
    %v598 = vadd.f32 %v173, %v556
    %v599 = vadd.f32 %v174, %v558
    %600 = vst [vmem:[#allocation2] sm:$0xff] %v560
    %601 = vst [vmem:[#allocation2 + $0x8] sm:$0xff] %v561
    %602 = vst [vmem:[#allocation2 + $0x10] sm:$0xff] %v562
    %603 = vst [vmem:[#allocation2 + $0x18] sm:$0xff] %v563
    %604 = vst [vmem:[#allocation2 + $0x20] sm:$0xff] %v564
    %605 = vst [vmem:[#allocation2 + $0x28] sm:$0xff] %v565
    %606 = vst [vmem:[#allocation2 + $0x30] sm:$0xff] %v566
    %607 = vst [vmem:[#allocation2 + $0x38] sm:$0xff] %v567
    %608 = vst [vmem:[#allocation2 + $0x40] sm:$0xff] %v568
    %609 = vst [vmem:[#allocation2 + $0x48] sm:$0xff] %v569
    %610 = vst [vmem:[#allocation2 + $0x50] sm:$0xff] %v570
    %611 = vst [vmem:[#allocation2 + $0x58] sm:$0xff] %v571
    %612 = vst [vmem:[#allocation2 + $0x60] sm:$0xff] %v572
    %613 = vst [vmem:[#allocation2 + $0x68] sm:$0xff] %v573
    %614 = vst [vmem:[#allocation2 + $0x70] sm:$0xff] %v574
    %615 = vst [vmem:[#allocation2 + $0x78] sm:$0xff] %v575
    %616 = vst [vmem:[#allocation2 + $0x80] sm:$0xff] %v576
    %617 = vst [vmem:[#allocation2 + $0x88] sm:$0xff] %v577
    %618 = vst [vmem:[#allocation2 + $0x90] sm:$0xff] %v578
    %619 = vst [vmem:[#allocation2 + $0x98] sm:$0xff] %v579
    %620 = vst [vmem:[#allocation2 + $0xa0] sm:$0xff] %v580
    %621 = vst [vmem:[#allocation2 + $0xa8] sm:$0xff] %v581
    %622 = vst [vmem:[#allocation2 + $0xb0] sm:$0xff] %v582
    %623 = vst [vmem:[#allocation2 + $0xb8] sm:$0xff] %v583
    %624 = vst [vmem:[#allocation2 + $0xc0] sm:$0xff] %v584
    %625 = vst [vmem:[#allocation2 + $0xc8] sm:$0xff] %v585
    %626 = vst [vmem:[#allocation2 + $0xd0] sm:$0xff] %v586
    %627 = vst [vmem:[#allocation2 + $0xd8] sm:$0xff] %v587
    %628 = vst [vmem:[#allocation2 + $0xe0] sm:$0xff] %v588
    %629 = vst [vmem:[#allocation2 + $0xe8] sm:$0xff] %v589
    %630 = vst [vmem:[#allocation2 + $0xf0] sm:$0xff] %v590
    %631 = vst [vmem:[#allocation2 + $0xf8] sm:$0xff] %v591
    %632 = vst [vmem:[#allocation2 + $0x100] sm:$0xff] %v592
    %633 = vst [vmem:[#allocation2 + $0x108] sm:$0xff] %v593
    %634 = vst [vmem:[#allocation2 + $0x110] sm:$0xff] %v594
    %635 = vst [vmem:[#allocation2 + $0x118] sm:$0xff] %v595
    %636 = vst [vmem:[#allocation2 + $0x120] sm:$0xff] %v596
    %637 = vst [vmem:[#allocation2 + $0x128] sm:$0xff] %v597
    %638 = vst [vmem:[#allocation2 + $0x130] sm:$0xff] %v598
    %639 = vst [vmem:[#allocation2 + $0x138] sm:$0xff] %v599
    // Predicated region
    $region54: #{tpu_custom_call.1} parent=1 // pred_check
      %p640 = pneg %p82
    $region55: #{tpu_custom_call.1} parent=1 // pred_check_branch
      %642 = sbr.rel (%p640) target = $region57
    $region56: #{tpu_custom_call.1} parent=1 // pred_region
      %v643 = vld [vmem:[#allocation2] sm:$0xff]
      %v644 = vld [vmem:[#allocation2 + $0x8] sm:$0xff]
      %v645 = vld [vmem:[#allocation2 + $0x10] sm:$0xff]
      %v646 = vld [vmem:[#allocation2 + $0x18] sm:$0xff]
      %v647 = vld [vmem:[#allocation2 + $0x20] sm:$0xff]
      %v648 = vld [vmem:[#allocation2 + $0x28] sm:$0xff]
      %v649 = vld [vmem:[#allocation2 + $0x30] sm:$0xff]
      %v650 = vld [vmem:[#allocation2 + $0x38] sm:$0xff]
      %v651 = vld [vmem:[#allocation2 + $0x40] sm:$0xff]
      %v652 = vld [vmem:[#allocation2 + $0x48] sm:$0xff]
      %v653 = vld [vmem:[#allocation2 + $0x50] sm:$0xff]
      %v654 = vld [vmem:[#allocation2 + $0x58] sm:$0xff]
      %v655 = vld [vmem:[#allocation2 + $0x60] sm:$0xff]
      %v656 = vld [vmem:[#allocation2 + $0x68] sm:$0xff]
      %v657 = vld [vmem:[#allocation2 + $0x70] sm:$0xff]
      %v658 = vld [vmem:[#allocation2 + $0x78] sm:$0xff]
      %v659 = vld [vmem:[#allocation2 + $0x80] sm:$0xff]
      %v660 = vld [vmem:[#allocation2 + $0x88] sm:$0xff]
      %v661 = vld [vmem:[#allocation2 + $0x90] sm:$0xff]
      %v662 = vld [vmem:[#allocation2 + $0x98] sm:$0xff]
      %v663 = vld [vmem:[#allocation2 + $0xa0] sm:$0xff]
      %v664 = vld [vmem:[#allocation2 + $0xa8] sm:$0xff]
      %v665 = vld [vmem:[#allocation2 + $0xb0] sm:$0xff]
      %v666 = vld [vmem:[#allocation2 + $0xb8] sm:$0xff]
      %v667 = vld [vmem:[#allocation2 + $0xc0] sm:$0xff]
      %v668 = vld [vmem:[#allocation2 + $0xc8] sm:$0xff]
      %v669 = vld [vmem:[#allocation2 + $0xd0] sm:$0xff]
      %v670 = vld [vmem:[#allocation2 + $0xd8] sm:$0xff]
      %v671 = vld [vmem:[#allocation2 + $0xe0] sm:$0xff]
      %v672 = vld [vmem:[#allocation2 + $0xe8] sm:$0xff]
      %v673 = vld [vmem:[#allocation2 + $0xf0] sm:$0xff]
      %v674 = vld [vmem:[#allocation2 + $0xf8] sm:$0xff]
      %v675 = vld [vmem:[#allocation2 + $0x100] sm:$0xff]
      %v676 = vld [vmem:[#allocation2 + $0x108] sm:$0xff]
      %v677 = vld [vmem:[#allocation2 + $0x110] sm:$0xff]
      %v678 = vld [vmem:[#allocation2 + $0x118] sm:$0xff]
      %v679 = vld [vmem:[#allocation2 + $0x120] sm:$0xff]
      %v680 = vld [vmem:[#allocation2 + $0x128] sm:$0xff]
      %v681 = vld [vmem:[#allocation2 + $0x130] sm:$0xff]
      %v682 = vld [vmem:[#allocation2 + $0x138] sm:$0xff]
      %v683 = vld [vmem:[%s3] sm:$0x3]
      %v685 = vlaneseq
      %v686 = vshrl.u32 %v685, 7
      %v687 = vsub.s32 0, %v686
      %v688 = vrot.slane %v683, %v687
      %v689 = vlaneseq
      %v690 = vshrl.u32 %v689, 7
      %v691 = vsub.s32 1, %v690
      %v692 = vrot.slane %v683, %v691
      %v695 = vadd.f32 %v643, %v688
      %v696 = vadd.f32 %v644, %v692
      %v697 = vadd.f32 %v645, %v688
      %v698 = vadd.f32 %v646, %v692
      %v699 = vadd.f32 %v647, %v688
      %v700 = vadd.f32 %v648, %v692
      %v701 = vadd.f32 %v649, %v688
      %v702 = vadd.f32 %v650, %v692
      %v703 = vadd.f32 %v651, %v688
      %v704 = vadd.f32 %v652, %v692
      %v705 = vadd.f32 %v653, %v688
      %v706 = vadd.f32 %v654, %v692
      %v707 = vadd.f32 %v655, %v688
      %v708 = vadd.f32 %v656, %v692
      %v709 = vadd.f32 %v657, %v688
      %v710 = vadd.f32 %v658, %v692
      %v711 = vadd.f32 %v659, %v688
      %v712 = vadd.f32 %v660, %v692
      %v713 = vadd.f32 %v661, %v688
      %v714 = vadd.f32 %v662, %v692
      %v715 = vadd.f32 %v663, %v688
      %v716 = vadd.f32 %v664, %v692
      %v717 = vadd.f32 %v665, %v688
      %v718 = vadd.f32 %v666, %v692
      %v719 = vadd.f32 %v667, %v688
      %v720 = vadd.f32 %v668, %v692
      %v721 = vadd.f32 %v669, %v688
      %v722 = vadd.f32 %v670, %v692
      %v723 = vadd.f32 %v671, %v688
      %v724 = vadd.f32 %v672, %v692
      %v725 = vadd.f32 %v673, %v688
      %v726 = vadd.f32 %v674, %v692
      %v727 = vadd.f32 %v675, %v688
      %v728 = vadd.f32 %v676, %v692
      %v729 = vadd.f32 %v677, %v688
      %v730 = vadd.f32 %v678, %v692
      %v731 = vadd.f32 %v679, %v688
      %v732 = vadd.f32 %v680, %v692
      %v733 = vadd.f32 %v681, %v688
      %v734 = vadd.f32 %v682, %v692
      %v735 = vmax.f32 %v695, 0.0
      %v736 = vmax.f32 %v696, 0.0
      %v737 = vmax.f32 %v697, 0.0
      %v738 = vmax.f32 %v698, 0.0
      %v739 = vmax.f32 %v699, 0.0
      %v740 = vmax.f32 %v700, 0.0
      %v741 = vmax.f32 %v701, 0.0
      %v742 = vmax.f32 %v702, 0.0
      %v743 = vmax.f32 %v703, 0.0
      %v744 = vmax.f32 %v704, 0.0
      %v745 = vmax.f32 %v705, 0.0
      %v746 = vmax.f32 %v706, 0.0
      %v747 = vmax.f32 %v707, 0.0
      %v748 = vmax.f32 %v708, 0.0
      %v749 = vmax.f32 %v709, 0.0
      %v750 = vmax.f32 %v710, 0.0
      %v751 = vmax.f32 %v711, 0.0
      %v752 = vmax.f32 %v712, 0.0
      %v753 = vmax.f32 %v713, 0.0
      %v754 = vmax.f32 %v714, 0.0
      %v755 = vmax.f32 %v715, 0.0
      %v756 = vmax.f32 %v716, 0.0
      %v757 = vmax.f32 %v717, 0.0
      %v758 = vmax.f32 %v718, 0.0
      %v759 = vmax.f32 %v719, 0.0
      %v760 = vmax.f32 %v720, 0.0
      %v761 = vmax.f32 %v721, 0.0
      %v762 = vmax.f32 %v722, 0.0
      %v763 = vmax.f32 %v723, 0.0
      %v764 = vmax.f32 %v724, 0.0
      %v765 = vmax.f32 %v725, 0.0
      %v766 = vmax.f32 %v726, 0.0
      %v767 = vmax.f32 %v727, 0.0
      %v768 = vmax.f32 %v728, 0.0
      %v769 = vmax.f32 %v729, 0.0
      %v770 = vmax.f32 %v730, 0.0
      %v771 = vmax.f32 %v731, 0.0
      %v772 = vmax.f32 %v732, 0.0
      %v773 = vmax.f32 %v733, 0.0
      %v774 = vmax.f32 %v734, 0.0
      %v775 = vld [vmem:[#allocation5] sm:$0xff]
      %v776 = vld [vmem:[#allocation5 + $0x8] sm:$0xff]
      %v777 = vld [vmem:[#allocation5 + $0x10] sm:$0xff]
      %v778 = vld [vmem:[#allocation5 + $0x18] sm:$0xff]
      %v779 = vld [vmem:[#allocation5 + $0x20] sm:$0xf]
      %v780 = vld [vmem:[#allocation5 + $0x28] sm:$0xf]
      %v781 = vpack.c.bf16 %v777, %v775
      %v782 = vpack.c.bf16 %v778, %v776
      %v783 = vpack.c.bf16 %v779, %v779
      %v784 = vpack.c.bf16 %v780, %v780
      %v785 = vld [vmem:[#allocation8] sm:$0xff]
      %v786 = vld [vmem:[#allocation8 + $0x8] sm:$0xff]
      %v787 = vld [vmem:[#allocation8 + $0x10] sm:$0xff]
      %v788 = vld [vmem:[#allocation8 + $0x18] sm:$0xff]
      %v789 = vld [vmem:[#allocation8 + $0x20] sm:$0xff]
      %v790 = vld [vmem:[#allocation8 + $0x28] sm:$0xff]
      %v791 = vld [vmem:[#allocation8 + $0x30] sm:$0xff]
      %v792 = vld [vmem:[#allocation8 + $0x38] sm:$0xff]
      %v793 = vld [vmem:[#allocation8 + $0x40] sm:$0xff]
      %v794 = vld [vmem:[#allocation8 + $0x48] sm:$0xff]
      %v795 = vld [vmem:[#allocation8 + $0x50] sm:$0xff]
      %v796 = vld [vmem:[#allocation8 + $0x58] sm:$0xff]
      %v797 = vld [vmem:[#allocation8 + $0x60] sm:$0xff]
      %v798 = vld [vmem:[#allocation8 + $0x68] sm:$0xff]
      %v799 = vld [vmem:[#allocation8 + $0x70] sm:$0xff]
      %v800 = vld [vmem:[#allocation8 + $0x78] sm:$0xff]
      %v801 = vld [vmem:[#allocation8 + $0x80] sm:$0xff]
      %v802 = vld [vmem:[#allocation8 + $0x88] sm:$0xff]
      %v803 = vld [vmem:[#allocation8 + $0x90] sm:$0xff]
      %v804 = vld [vmem:[#allocation8 + $0x98] sm:$0xff]
      %v805 = vld [vmem:[#allocation8 + $0xa0] sm:$0xff]
      %v806 = vld [vmem:[#allocation8 + $0xa8] sm:$0xff]
      %v807 = vld [vmem:[#allocation8 + $0xb0] sm:$0xff]
      %v808 = vld [vmem:[#allocation8 + $0xb8] sm:$0xff]
      %v809 = vld [vmem:[#allocation8 + $0xc0] sm:$0xff]
      %v810 = vld [vmem:[#allocation8 + $0xc8] sm:$0xff]
      %v811 = vld [vmem:[#allocation8 + $0xd0] sm:$0xff]
      %v812 = vld [vmem:[#allocation8 + $0xd8] sm:$0xff]
      %v813 = vld [vmem:[#allocation8 + $0xe0] sm:$0xff]
      %v814 = vld [vmem:[#allocation8 + $0xe8] sm:$0xff]
      %v815 = vld [vmem:[#allocation8 + $0xf0] sm:$0xff]
      %v816 = vld [vmem:[#allocation8 + $0xf8] sm:$0xff]
      %v817 = vld [vmem:[%s5] sm:$0x3]
      %v819 = vlaneseq
      %v820 = vshrl.u32 %v819, 7
      %v821 = vsub.s32 0, %v820
      %v822 = vrot.slane %v817, %v821
      %v823 = vlaneseq
      %v824 = vshrl.u32 %v823, 7
      %v825 = vsub.s32 1, %v824
      %v826 = vrot.slane %v817, %v825
      %v861 = vunpack.c.l.b16 %v785
      %v862 = vunpack.c.h.b16 %v785
      %v863 = vunpack.c.l.b16 %v786
      %v864 = vunpack.c.h.b16 %v786
      %v865 = vunpack.c.l.b16 %v787
      %v866 = vunpack.c.h.b16 %v787
      %v867 = vunpack.c.l.b16 %v788
      %v868 = vunpack.c.h.b16 %v788
      %v869 = vunpack.c.l.b16 %v789
      %v870 = vunpack.c.h.b16 %v789
      %v871 = vunpack.c.l.b16 %v790
      %v872 = vunpack.c.h.b16 %v790
      %v873 = vunpack.c.l.b16 %v791
      %v874 = vunpack.c.h.b16 %v791
      %v875 = vunpack.c.l.b16 %v792
      %v876 = vunpack.c.h.b16 %v792
      %v877 = vunpack.c.l.b16 %v793
      %v878 = vunpack.c.h.b16 %v793
      %v879 = vunpack.c.l.b16 %v794
      %v880 = vunpack.c.h.b16 %v794
      %v881 = vunpack.c.l.b16 %v795
      %v882 = vunpack.c.h.b16 %v795
      %v883 = vunpack.c.l.b16 %v796
      %v884 = vunpack.c.h.b16 %v796
      %v885 = vunpack.c.l.b16 %v797
      %v886 = vunpack.c.h.b16 %v797
      %v887 = vunpack.c.l.b16 %v798
      %v888 = vunpack.c.h.b16 %v798
      %v889 = vunpack.c.l.b16 %v799
      %v890 = vunpack.c.h.b16 %v799
      %v891 = vunpack.c.l.b16 %v800
      %v892 = vunpack.c.h.b16 %v800
      %v893 = vunpack.c.l.b16 %v801
      %v894 = vunpack.c.h.b16 %v801
      %v895 = vunpack.c.l.b16 %v802
      %v896 = vunpack.c.h.b16 %v802
      %v897 = vunpack.c.l.b16 %v803
      %v898 = vunpack.c.h.b16 %v803
      %v899 = vunpack.c.l.b16 %v804
      %v900 = vunpack.c.h.b16 %v804
      %v901 = vunpack.c.l.b16 %v805
      %v902 = vunpack.c.h.b16 %v805
      %v903 = vunpack.c.l.b16 %v806
      %v904 = vunpack.c.h.b16 %v806
      %v905 = vunpack.c.l.b16 %v807
      %v906 = vunpack.c.h.b16 %v807
      %v907 = vunpack.c.l.b16 %v808
      %v908 = vunpack.c.h.b16 %v808
      %v909 = vunpack.c.l.b16 %v809
      %v910 = vunpack.c.h.b16 %v809
      %v911 = vunpack.c.l.b16 %v810
      %v912 = vunpack.c.h.b16 %v810
      %v913 = vunpack.c.l.b16 %v811
      %v914 = vunpack.c.h.b16 %v811
      %v915 = vunpack.c.l.b16 %v812
      %v916 = vunpack.c.h.b16 %v812
      %v917 = vunpack.c.l.b16 %v813
      %v918 = vunpack.c.h.b16 %v813
      %v919 = vunpack.c.l.b16 %v814
      %v920 = vunpack.c.h.b16 %v814
      %v921 = vunpack.c.l.b16 %v815
      %v922 = vunpack.c.h.b16 %v815
      %v923 = vunpack.c.l.b16 %v816
      %v924 = vunpack.c.h.b16 %v816
      %v925 = vpack.c.b16 %v863, %v861
      %v926 = vpack.c.b16 %v864, %v862
      %v927 = vpack.c.b16 %v867, %v865
      %v928 = vpack.c.b16 %v868, %v866
      %v929 = vpack.c.b16 %v871, %v869
      %v930 = vpack.c.b16 %v872, %v870
      %v931 = vpack.c.b16 %v875, %v873
      %v932 = vpack.c.b16 %v876, %v874
      %v933 = vpack.c.b16 %v879, %v877
      %v934 = vpack.c.b16 %v880, %v878
      %v935 = vpack.c.b16 %v883, %v881
      %v936 = vpack.c.b16 %v884, %v882
      %v937 = vpack.c.b16 %v887, %v885
      %v938 = vpack.c.b16 %v888, %v886
      %v939 = vpack.c.b16 %v891, %v889
      %v940 = vpack.c.b16 %v892, %v890
      %v941 = vpack.c.b16 %v895, %v893
      %v942 = vpack.c.b16 %v896, %v894
      %v943 = vpack.c.b16 %v899, %v897
      %v944 = vpack.c.b16 %v900, %v898
      %v945 = vpack.c.b16 %v903, %v901
      %v946 = vpack.c.b16 %v904, %v902
      %v947 = vpack.c.b16 %v907, %v905
      %v948 = vpack.c.b16 %v908, %v906
      %v949 = vpack.c.b16 %v911, %v909
      %v950 = vpack.c.b16 %v912, %v910
      %v951 = vpack.c.b16 %v915, %v913
      %v952 = vpack.c.b16 %v916, %v914
      %v953 = vpack.c.b16 %v919, %v917
      %v954 = vpack.c.b16 %v920, %v918
      %v955 = vpack.c.b16 %v923, %v921
      %v956 = vpack.c.b16 %v924, %v922
      %989 = vmatprep.subr.bf16.mxu0 %v926
      %990 = vmatpush1.bf16.msra.mxu0 %v925
      %991 = vmatprep.subr.bf16.mxu0 %v928
      %992 = vmatpush1.bf16.msra.mxu0 %v927
      %993 = vmatprep.subr.bf16.mxu0 %v930
      %994 = vmatpush1.bf16.msra.mxu0 %v929
      %995 = vmatprep.subr.bf16.mxu0 %v932
      %996 = vmatpush1.bf16.msra.mxu0 %v931
      %997 = vmatprep.subr.bf16.mxu0 %v934
      %998 = vmatpush1.bf16.msra.mxu0 %v933
      %999 = vmatprep.subr.bf16.mxu0 %v936
      %1000 = vmatpush1.bf16.msra.mxu0 %v935
      %1001 = vmatprep.subr.bf16.mxu0 %v938
      %1002 = vmatpush1.bf16.msra.mxu0 %v937
      %1003 = vmatprep.subr.bf16.mxu0 %v940
      %1004 = vmatpush1.bf16.msra.mxu0 %v939
      %1005 = vmatprep.subr.bf16.mxu0 %v942
      %1006 = vmatpush1.bf16.msra.mxu0 %v941
      %1007 = vmatprep.subr.bf16.mxu0 %v944
      %1008 = vmatpush1.bf16.msra.mxu0 %v943
      %1009 = vmatprep.subr.bf16.mxu0 %v946
      %1010 = vmatpush1.bf16.msra.mxu0 %v945
      %1011 = vmatprep.subr.bf16.mxu0 %v948
      %1012 = vmatpush1.bf16.msra.mxu0 %v947
      %1013 = vmatprep.subr.bf16.mxu0 %v950
      %1014 = vmatpush1.bf16.msra.mxu0 %v949
      %1015 = vmatprep.subr.bf16.mxu0 %v952
      %1016 = vmatpush1.bf16.msra.mxu0 %v951
      %1017 = vmatprep.subr.bf16.mxu0 %v954
      %1018 = vmatpush1.bf16.msra.mxu0 %v953
      %1019 = vmatprep.subr.bf16.mxu0 %v956
      %1020 = vmatpush1.bf16.msra.mxu0 %v955
      %1021 = vmatprep.mubr.bf16.mxu0 %v782
      %1022 = vmatmul.mubr.bf16.gmra.mrb[0].mxu0 %v781
      %v1023 = vpop.f32.mrb[0].mxu0
      %v1024 = vadd.f32 %v822, %v1023
      %v1025 = vpop.f32.mrb[0].mxu0
      %v1026 = vadd.f32 %v826, %v1025
      %v1027 = vpop.f32.mrb[0].mxu0
      %v1028 = vadd.f32 %v822, %v1027
      %v1029 = vpop.f32.mrb[0].mxu0
      %v1030 = vadd.f32 %v826, %v1029
      %1031 = vmatprep.mubr.bf16.mxu0 %v784
      %1032 = vmatmul.mubr.bf16.gmra.mrb[0].mxu0 %v783
      %v1033 = vpop.f32.mrb[0].mxu0
      %v1034 = vadd.f32 %v822, %v1033
      %v1035 = vpop.f32.mrb[0].mxu0
      %v1036 = vadd.f32 %v826, %v1035
      %v1037 = vpop.f32.mrb[0].mxu0
      %v1038 = vpop.f32.mrb[0].mxu0
      %1039 = vdwg.mxu0
      %v1040 = vmax.f32 %v1024, 0.0
      %v1041 = vmax.f32 %v1026, 0.0
      %v1042 = vmax.f32 %v1028, 0.0
      %v1043 = vmax.f32 %v1030, 0.0
      %v1044 = vmax.f32 %v1034, 0.0
      %v1045 = vmax.f32 %v1036, 0.0
      %v1046 = vld [vmem:[%s6] sm:$0x3]
      %v1048 = vlaneseq
      %v1049 = vshrl.u32 %v1048, 7
      %v1050 = vsub.s32 0, %v1049
      %v1051 = vrot.slane %v1046, %v1050
      %v1052 = vlaneseq
      %v1053 = vshrl.u32 %v1052, 7
      %v1054 = vsub.s32 1, %v1053
      %v1055 = vrot.slane %v1046, %v1054
      %v1058 = vmul.f32 %v1040, %v1051
      %v1059 = vmul.f32 %v1041, %v1055
      %v1060 = vmul.f32 %v1042, %v1051
      %v1061 = vmul.f32 %v1043, %v1055
      %v1062 = vmul.f32 %v1044, %v1051
      %v1063 = vmul.f32 %v1045, %v1055
      %v1064 = vld [vmem:[%s7] sm:$0xff]
      %v1065 = vld [vmem:[%s7 + $0x8] sm:$0xff]
      %v1066 = vld [vmem:[%s7 + $0x10] sm:$0xf]
      %v1073 = vcombine.low %v1058, %v1059
      %v1074 = vcombine.high %v1058, %v1059
      %v1076 = vunpack.c.l.s4 1966171168
      %v1077 = vunpack.c.0.s8 %v1076
      %v1078 = vlaneseq
      %v1079 = vshrl.u32 %v1078, 7
      %v1080 = vsub.s32 %v1077, %v1079
      %v1081 = vrot.slane %v1073, %v1080
      %v1083 = vunpack.c.l.s4 1966171168
      %v1084 = vunpack.c.0.s8 %v1083
      %v1085 = vlaneseq
      %v1086 = vshrl.u32 %v1085, 7
      %v1087 = vsub.s32 %v1084, %v1086
      %v1088 = vrot.slane %v1074, %v1087
      %v1089 = vcombine.high %v1081, %v1081
      %v1090 = vcombine.high %v1088, %v1088
      %v1092 = vunpack.c.l.s4 1966171168
      %v1093 = vunpack.c.0.s8 %v1092
      %v1094 = vlaneseq
      %v1095 = vshrl.u32 %v1094, 7
      %v1096 = vsub.s32 %v1093, %v1095
      %v1097 = vrot.slane %v1081, %v1096
      %v1099 = vunpack.c.l.s4 1966171168
      %v1100 = vunpack.c.0.s8 %v1099
      %v1101 = vlaneseq
      %v1102 = vshrl.u32 %v1101, 7
      %v1103 = vsub.s32 %v1100, %v1102
      %v1104 = vrot.slane %v1088, %v1103
      %v1106 = vunpack.c.l.s4 1966171168
      %v1107 = vunpack.c.0.s8 %v1106
      %v1108 = vlaneseq
      %v1109 = vshrl.u32 %v1108, 7
      %v1110 = vsub.s32 %v1107, %v1109
      %v1111 = vrot.slane %v1089, %v1110
      %v1113 = vunpack.c.l.s4 1966171168
      %v1114 = vunpack.c.0.s8 %v1113
      %v1115 = vlaneseq
      %v1116 = vshrl.u32 %v1115, 7
      %v1117 = vsub.s32 %v1114, %v1116
      %v1118 = vrot.slane %v1090, %v1117
      %v1119 = vcombine.high %v1097, %v1097
      %v1120 = vcombine.high %v1104, %v1104
      %v1121 = vcombine.high %v1111, %v1111
      %v1122 = vcombine.high %v1118, %v1118
      %v1123 = vcombine.low %v1060, %v1061
      %v1124 = vcombine.high %v1060, %v1061
      %v1126 = vunpack.c.l.s4 1966171168
      %v1127 = vunpack.c.0.s8 %v1126
      %v1128 = vlaneseq
      %v1129 = vshrl.u32 %v1128, 7
      %v1130 = vsub.s32 %v1127, %v1129
      %v1131 = vrot.slane %v1123, %v1130
      %v1133 = vunpack.c.l.s4 1966171168
      %v1134 = vunpack.c.0.s8 %v1133
      %v1135 = vlaneseq
      %v1136 = vshrl.u32 %v1135, 7
      %v1137 = vsub.s32 %v1134, %v1136
      %v1138 = vrot.slane %v1124, %v1137
      %v1139 = vcombine.high %v1131, %v1131
      %v1140 = vcombine.high %v1138, %v1138
      %v1142 = vunpack.c.l.s4 1966171168
      %v1143 = vunpack.c.0.s8 %v1142
      %v1144 = vlaneseq
      %v1145 = vshrl.u32 %v1144, 7
      %v1146 = vsub.s32 %v1143, %v1145
      %v1147 = vrot.slane %v1131, %v1146
      %v1149 = vunpack.c.l.s4 1966171168
      %v1150 = vunpack.c.0.s8 %v1149
      %v1151 = vlaneseq
      %v1152 = vshrl.u32 %v1151, 7
      %v1153 = vsub.s32 %v1150, %v1152
      %v1154 = vrot.slane %v1138, %v1153
      %v1156 = vunpack.c.l.s4 1966171168
      %v1157 = vunpack.c.0.s8 %v1156
      %v1158 = vlaneseq
      %v1159 = vshrl.u32 %v1158, 7
      %v1160 = vsub.s32 %v1157, %v1159
      %v1161 = vrot.slane %v1139, %v1160
      %v1163 = vunpack.c.l.s4 1966171168
      %v1164 = vunpack.c.0.s8 %v1163
      %v1165 = vlaneseq
      %v1166 = vshrl.u32 %v1165, 7
      %v1167 = vsub.s32 %v1164, %v1166
      %v1168 = vrot.slane %v1140, %v1167
      %v1169 = vcombine.high %v1147, %v1147
      %v1170 = vcombine.high %v1154, %v1154
      %v1171 = vcombine.high %v1161, %v1161
      %v1172 = vcombine.high %v1168, %v1168
      %v1173 = vcombine.low %v1062, %v1063
      %v1175 = vunpack.c.l.s4 1966171168
      %v1176 = vunpack.c.0.s8 %v1175
      %v1177 = vlaneseq
      %v1178 = vshrl.u32 %v1177, 7
      %v1179 = vsub.s32 %v1176, %v1178
      %v1180 = vrot.slane %v1173, %v1179
      %v1181 = vcombine.high %v1180, %v1180
      %v1183 = vunpack.c.l.s4 1966171168
      %v1184 = vunpack.c.0.s8 %v1183
      %v1185 = vlaneseq
      %v1186 = vshrl.u32 %v1185, 7
      %v1187 = vsub.s32 %v1184, %v1186
      %v1188 = vrot.slane %v1180, %v1187
      %v1190 = vunpack.c.l.s4 1966171168
      %v1191 = vunpack.c.0.s8 %v1190
      %v1192 = vlaneseq
      %v1193 = vshrl.u32 %v1192, 7
      %v1194 = vsub.s32 %v1191, %v1193
      %v1195 = vrot.slane %v1181, %v1194
      %v1196 = vcombine.high %v1188, %v1188
      %v1197 = vcombine.high %v1195, %v1195
      %v1198 = vlaneseq
      %v1199 = vshrl.u32 %v1198, 7
      %v1200 = vsub.s32 0, %v1199
      %v1201 = vrot.slane %v1097, %v1200
      %v1202 = vlaneseq
      %v1203 = vshrl.u32 %v1202, 7
      %v1204 = vsub.s32 1, %v1203
      %v1205 = vrot.slane %v1097, %v1204
      %v1206 = vlaneseq
      %v1207 = vshrl.u32 %v1206, 7
      %v1208 = vsub.s32 0, %v1207
      %v1209 = vrot.slane %v1111, %v1208
      %v1210 = vlaneseq
      %v1211 = vshrl.u32 %v1210, 7
      %v1212 = vsub.s32 1, %v1211
      %v1213 = vrot.slane %v1111, %v1212
      %v1214 = vlaneseq
      %v1215 = vshrl.u32 %v1214, 7
      %v1216 = vsub.s32 0, %v1215
      %v1217 = vrot.slane %v1119, %v1216
      %v1218 = vlaneseq
      %v1219 = vshrl.u32 %v1218, 7
      %v1220 = vsub.s32 1, %v1219
      %v1221 = vrot.slane %v1119, %v1220
      %v1222 = vlaneseq
      %v1223 = vshrl.u32 %v1222, 7
      %v1224 = vsub.s32 0, %v1223
      %v1225 = vrot.slane %v1121, %v1224
      %v1226 = vlaneseq
      %v1227 = vshrl.u32 %v1226, 7
      %v1228 = vsub.s32 1, %v1227
      %v1229 = vrot.slane %v1121, %v1228
      %v1230 = vlaneseq
      %v1231 = vshrl.u32 %v1230, 7
      %v1232 = vsub.s32 0, %v1231
      %v1233 = vrot.slane %v1104, %v1232
      %v1234 = vlaneseq
      %v1235 = vshrl.u32 %v1234, 7
      %v1236 = vsub.s32 1, %v1235
      %v1237 = vrot.slane %v1104, %v1236
      %v1238 = vlaneseq
      %v1239 = vshrl.u32 %v1238, 7
      %v1240 = vsub.s32 0, %v1239
      %v1241 = vrot.slane %v1118, %v1240
      %v1242 = vlaneseq
      %v1243 = vshrl.u32 %v1242, 7
      %v1244 = vsub.s32 1, %v1243
      %v1245 = vrot.slane %v1118, %v1244
      %v1246 = vlaneseq
      %v1247 = vshrl.u32 %v1246, 7
      %v1248 = vsub.s32 0, %v1247
      %v1249 = vrot.slane %v1120, %v1248
      %v1250 = vlaneseq
      %v1251 = vshrl.u32 %v1250, 7
      %v1252 = vsub.s32 1, %v1251
      %v1253 = vrot.slane %v1120, %v1252
      %v1254 = vlaneseq
      %v1255 = vshrl.u32 %v1254, 7
      %v1256 = vsub.s32 0, %v1255
      %v1257 = vrot.slane %v1122, %v1256
      %v1258 = vlaneseq
      %v1259 = vshrl.u32 %v1258, 7
      %v1260 = vsub.s32 1, %v1259
      %v1261 = vrot.slane %v1122, %v1260
      %v1262 = vlaneseq
      %v1263 = vshrl.u32 %v1262, 7
      %v1264 = vsub.s32 0, %v1263
      %v1265 = vrot.slane %v1147, %v1264
      %v1266 = vlaneseq
      %v1267 = vshrl.u32 %v1266, 7
      %v1268 = vsub.s32 1, %v1267
      %v1269 = vrot.slane %v1147, %v1268
      %v1270 = vlaneseq
      %v1271 = vshrl.u32 %v1270, 7
      %v1272 = vsub.s32 0, %v1271
      %v1273 = vrot.slane %v1161, %v1272
      %v1274 = vlaneseq
      %v1275 = vshrl.u32 %v1274, 7
      %v1276 = vsub.s32 1, %v1275
      %v1277 = vrot.slane %v1161, %v1276
      %v1278 = vlaneseq
      %v1279 = vshrl.u32 %v1278, 7
      %v1280 = vsub.s32 0, %v1279
      %v1281 = vrot.slane %v1169, %v1280
      %v1282 = vlaneseq
      %v1283 = vshrl.u32 %v1282, 7
      %v1284 = vsub.s32 1, %v1283
      %v1285 = vrot.slane %v1169, %v1284
      %v1286 = vlaneseq
      %v1287 = vshrl.u32 %v1286, 7
      %v1288 = vsub.s32 0, %v1287
      %v1289 = vrot.slane %v1171, %v1288
      %v1290 = vlaneseq
      %v1291 = vshrl.u32 %v1290, 7
      %v1292 = vsub.s32 1, %v1291
      %v1293 = vrot.slane %v1171, %v1292
      %v1294 = vlaneseq
      %v1295 = vshrl.u32 %v1294, 7
      %v1296 = vsub.s32 0, %v1295
      %v1297 = vrot.slane %v1154, %v1296
      %v1298 = vlaneseq
      %v1299 = vshrl.u32 %v1298, 7
      %v1300 = vsub.s32 1, %v1299
      %v1301 = vrot.slane %v1154, %v1300
      %v1302 = vlaneseq
      %v1303 = vshrl.u32 %v1302, 7
      %v1304 = vsub.s32 0, %v1303
      %v1305 = vrot.slane %v1168, %v1304
      %v1306 = vlaneseq
      %v1307 = vshrl.u32 %v1306, 7
      %v1308 = vsub.s32 1, %v1307
      %v1309 = vrot.slane %v1168, %v1308
      %v1310 = vlaneseq
      %v1311 = vshrl.u32 %v1310, 7
      %v1312 = vsub.s32 0, %v1311
      %v1313 = vrot.slane %v1170, %v1312
      %v1314 = vlaneseq
      %v1315 = vshrl.u32 %v1314, 7
      %v1316 = vsub.s32 1, %v1315
      %v1317 = vrot.slane %v1170, %v1316
      %v1318 = vlaneseq
      %v1319 = vshrl.u32 %v1318, 7
      %v1320 = vsub.s32 0, %v1319
      %v1321 = vrot.slane %v1172, %v1320
      %v1322 = vlaneseq
      %v1323 = vshrl.u32 %v1322, 7
      %v1324 = vsub.s32 1, %v1323
      %v1325 = vrot.slane %v1172, %v1324
      %v1326 = vlaneseq
      %v1327 = vshrl.u32 %v1326, 7
      %v1328 = vsub.s32 0, %v1327
      %v1329 = vrot.slane %v1188, %v1328
      %v1330 = vlaneseq
      %v1331 = vshrl.u32 %v1330, 7
      %v1332 = vsub.s32 1, %v1331
      %v1333 = vrot.slane %v1188, %v1332
      %v1334 = vlaneseq
      %v1335 = vshrl.u32 %v1334, 7
      %v1336 = vsub.s32 0, %v1335
      %v1337 = vrot.slane %v1195, %v1336
      %v1338 = vlaneseq
      %v1339 = vshrl.u32 %v1338, 7
      %v1340 = vsub.s32 1, %v1339
      %v1341 = vrot.slane %v1195, %v1340
      %v1342 = vlaneseq
      %v1343 = vshrl.u32 %v1342, 7
      %v1344 = vsub.s32 0, %v1343
      %v1345 = vrot.slane %v1196, %v1344
      %v1346 = vlaneseq
      %v1347 = vshrl.u32 %v1346, 7
      %v1348 = vsub.s32 1, %v1347
      %v1349 = vrot.slane %v1196, %v1348
      %v1350 = vlaneseq
      %v1351 = vshrl.u32 %v1350, 7
      %v1352 = vsub.s32 0, %v1351
      %v1353 = vrot.slane %v1197, %v1352
      %v1354 = vlaneseq
      %v1355 = vshrl.u32 %v1354, 7
      %v1356 = vsub.s32 1, %v1355
      %v1357 = vrot.slane %v1197, %v1356
      %v1398 = vmul.f32 %v735, %v1201
      %v1399 = vmul.f32 %v736, %v1205
      %v1400 = vmul.f32 %v737, %v1209
      %v1401 = vmul.f32 %v738, %v1213
      %v1402 = vmul.f32 %v739, %v1217
      %v1403 = vmul.f32 %v740, %v1221
      %v1404 = vmul.f32 %v741, %v1225
      %v1405 = vmul.f32 %v742, %v1229
      %v1406 = vmul.f32 %v743, %v1233
      %v1407 = vmul.f32 %v744, %v1237
      %v1408 = vmul.f32 %v745, %v1241
      %v1409 = vmul.f32 %v746, %v1245
      %v1410 = vmul.f32 %v747, %v1249
      %v1411 = vmul.f32 %v748, %v1253
      %v1412 = vmul.f32 %v749, %v1257
      %v1413 = vmul.f32 %v750, %v1261
      %v1414 = vmul.f32 %v751, %v1265
      %v1415 = vmul.f32 %v752, %v1269
      %v1416 = vmul.f32 %v753, %v1273
      %v1417 = vmul.f32 %v754, %v1277
      %v1418 = vmul.f32 %v755, %v1281
      %v1419 = vmul.f32 %v756, %v1285
      %v1420 = vmul.f32 %v757, %v1289
      %v1421 = vmul.f32 %v758, %v1293
      %v1422 = vmul.f32 %v759, %v1297
      %v1423 = vmul.f32 %v760, %v1301
      %v1424 = vmul.f32 %v761, %v1305
      %v1425 = vmul.f32 %v762, %v1309
      %v1426 = vmul.f32 %v763, %v1313
      %v1427 = vmul.f32 %v764, %v1317
      %v1428 = vmul.f32 %v765, %v1321
      %v1429 = vmul.f32 %v766, %v1325
      %v1430 = vmul.f32 %v767, %v1329
      %v1431 = vmul.f32 %v768, %v1333
      %v1432 = vmul.f32 %v769, %v1337
      %v1433 = vmul.f32 %v770, %v1341
      %v1434 = vmul.f32 %v771, %v1345
      %v1435 = vmul.f32 %v772, %v1349
      %v1436 = vmul.f32 %v773, %v1353
      %v1437 = vmul.f32 %v774, %v1357
      %v1438 = vadd.f32 %v1398, %v1399
      %1439 = vadd.xlane.f32.xlu0 %v1438
      %v1440 = vpop.xlane.xlu0 %1439
      %v1441 = vadd.f32 %v1400, %v1401
      %1442 = vadd.xlane.f32.xlu0 %v1441
      %v1443 = vpop.xlane.xlu0 %1442
      %v1444 = vadd.f32 %v1402, %v1403
      %1445 = vadd.xlane.f32.xlu0 %v1444
      %v1446 = vpop.xlane.xlu0 %1445
      %v1447 = vadd.f32 %v1404, %v1405
      %1448 = vadd.xlane.f32.xlu0 %v1447
      %v1449 = vpop.xlane.xlu0 %1448
      %v1450 = vadd.f32 %v1406, %v1407
      %1451 = vadd.xlane.f32.xlu0 %v1450
      %v1452 = vpop.xlane.xlu0 %1451
      %v1453 = vadd.f32 %v1408, %v1409
      %1454 = vadd.xlane.f32.xlu0 %v1453
      %v1455 = vpop.xlane.xlu0 %1454
      %v1456 = vadd.f32 %v1410, %v1411
      %1457 = vadd.xlane.f32.xlu0 %v1456
      %v1458 = vpop.xlane.xlu0 %1457
      %v1459 = vadd.f32 %v1412, %v1413
      %1460 = vadd.xlane.f32.xlu0 %v1459
      %v1461 = vpop.xlane.xlu0 %1460
      %v1462 = vadd.f32 %v1414, %v1415
      %1463 = vadd.xlane.f32.xlu0 %v1462
      %v1464 = vpop.xlane.xlu0 %1463
      %v1465 = vadd.f32 %v1416, %v1417
      %1466 = vadd.xlane.f32.xlu0 %v1465
      %v1467 = vpop.xlane.xlu0 %1466
      %v1468 = vadd.f32 %v1418, %v1419
      %1469 = vadd.xlane.f32.xlu0 %v1468
      %v1470 = vpop.xlane.xlu0 %1469
      %v1471 = vadd.f32 %v1420, %v1421
      %1472 = vadd.xlane.f32.xlu0 %v1471
      %v1473 = vpop.xlane.xlu0 %1472
      %v1474 = vadd.f32 %v1422, %v1423
      %1475 = vadd.xlane.f32.xlu0 %v1474
      %v1476 = vpop.xlane.xlu0 %1475
      %v1477 = vadd.f32 %v1424, %v1425
      %1478 = vadd.xlane.f32.xlu0 %v1477
      %v1479 = vpop.xlane.xlu0 %1478
      %v1480 = vadd.f32 %v1426, %v1427
      %1481 = vadd.xlane.f32.xlu0 %v1480
      %v1482 = vpop.xlane.xlu0 %1481
      %v1483 = vadd.f32 %v1428, %v1429
      %1484 = vadd.xlane.f32.xlu0 %v1483
      %v1485 = vpop.xlane.xlu0 %1484
      %v1486 = vadd.f32 %v1430, %v1431
      %1487 = vadd.xlane.f32.xlu0 %v1486
      %v1488 = vpop.xlane.xlu0 %1487
      %v1489 = vadd.f32 %v1432, %v1433
      %1490 = vadd.xlane.f32.xlu0 %v1489
      %v1491 = vpop.xlane.xlu0 %1490
      %v1492 = vadd.f32 %v1434, %v1435
      %1493 = vadd.xlane.f32.xlu0 %v1492
      %v1494 = vpop.xlane.xlu0 %1493
      %v1495 = vadd.f32 %v1436, %v1437
      %1496 = vadd.xlane.f32.xlu0 %v1495
      %v1497 = vpop.xlane.xlu0 %1496
      %v1518 = vlaneseq
      %v1519 = vand.u32 %v1518, 127
      %v1520 = vlaneseq
      %v1521 = vshrl.u32 %v1520, 7
      %v1522 = vsub.s32 %v1519, %v1521
      %v1523 = vrot.slane %v1440, %v1522
      %v1524 = vlaneseq
      %v1525 = vshrl.u32 %v1524, 7
      %v1526 = vsub.s32 %v1519, %v1525
      %v1527 = vrot.slane %v1443, %v1526
      %v1528 = vlaneseq
      %v1529 = vshrl.u32 %v1528, 7
      %v1530 = vsub.s32 %v1519, %v1529
      %v1531 = vrot.slane %v1446, %v1530
      %v1532 = vlaneseq
      %v1533 = vshrl.u32 %v1532, 7
      %v1534 = vsub.s32 %v1519, %v1533
      %v1535 = vrot.slane %v1449, %v1534
      %v1536 = vlaneseq
      %v1537 = vshrl.u32 %v1536, 7
      %v1538 = vsub.s32 %v1519, %v1537
      %v1539 = vrot.slane %v1452, %v1538
      %v1540 = vlaneseq
      %v1541 = vshrl.u32 %v1540, 7
      %v1542 = vsub.s32 %v1519, %v1541
      %v1543 = vrot.slane %v1455, %v1542
      %v1544 = vlaneseq
      %v1545 = vshrl.u32 %v1544, 7
      %v1546 = vsub.s32 %v1519, %v1545
      %v1547 = vrot.slane %v1458, %v1546
      %v1548 = vlaneseq
      %v1549 = vshrl.u32 %v1548, 7
      %v1550 = vsub.s32 %v1519, %v1549
      %v1551 = vrot.slane %v1461, %v1550
      %v1552 = vlaneseq
      %v1553 = vshrl.u32 %v1552, 7
      %v1554 = vsub.s32 %v1519, %v1553
      %v1555 = vrot.slane %v1464, %v1554
      %v1556 = vlaneseq
      %v1557 = vshrl.u32 %v1556, 7
      %v1558 = vsub.s32 %v1519, %v1557
      %v1559 = vrot.slane %v1467, %v1558
      %v1560 = vlaneseq
      %v1561 = vshrl.u32 %v1560, 7
      %v1562 = vsub.s32 %v1519, %v1561
      %v1563 = vrot.slane %v1470, %v1562
      %v1564 = vlaneseq
      %v1565 = vshrl.u32 %v1564, 7
      %v1566 = vsub.s32 %v1519, %v1565
      %v1567 = vrot.slane %v1473, %v1566
      %v1568 = vlaneseq
      %v1569 = vshrl.u32 %v1568, 7
      %v1570 = vsub.s32 %v1519, %v1569
      %v1571 = vrot.slane %v1476, %v1570
      %v1572 = vlaneseq
      %v1573 = vshrl.u32 %v1572, 7
      %v1574 = vsub.s32 %v1519, %v1573
      %v1575 = vrot.slane %v1479, %v1574
      %v1576 = vlaneseq
      %v1577 = vshrl.u32 %v1576, 7
      %v1578 = vsub.s32 %v1519, %v1577
      %v1579 = vrot.slane %v1482, %v1578
      %v1580 = vlaneseq
      %v1581 = vshrl.u32 %v1580, 7
      %v1582 = vsub.s32 %v1519, %v1581
      %v1583 = vrot.slane %v1485, %v1582
      %v1584 = vlaneseq
      %v1585 = vshrl.u32 %v1584, 7
      %v1586 = vsub.s32 %v1519, %v1585
      %v1587 = vrot.slane %v1488, %v1586
      %v1588 = vlaneseq
      %v1589 = vshrl.u32 %v1588, 7
      %v1590 = vsub.s32 %v1519, %v1589
      %v1591 = vrot.slane %v1491, %v1590
      %v1592 = vlaneseq
      %v1593 = vshrl.u32 %v1592, 7
      %v1594 = vsub.s32 %v1519, %v1593
      %v1595 = vrot.slane %v1494, %v1594
      %v1596 = vlaneseq
      %v1597 = vshrl.u32 %v1596, 7
      %v1598 = vsub.s32 %v1519, %v1597
      %v1599 = vrot.slane %v1497, %v1598
      %vm1600 = vcmask 1041409
      %v1601 = vsel %vm1600, %v1527, %v1523
      %vm1602 = vcmask 1042434
      %v1603 = vsel %vm1602, %v1531, %v1601
      %vm1604 = vcmask 1043459
      %v1605 = vsel %vm1604, %v1535, %v1603
      %vm1606 = vcmask 1044484
      %v1607 = vsel %vm1606, %v1539, %v1605
      %vm1608 = vcmask 1045509
      %v1609 = vsel %vm1608, %v1543, %v1607
      %vm1610 = vcmask 1046534
      %v1611 = vsel %vm1610, %v1547, %v1609
      %vm1612 = vcmask 1047559
      %v1613 = vsel %vm1612, %v1551, %v1611
      %v1614 = vsel %vm1600, %v1559, %v1555
      %v1615 = vsel %vm1602, %v1563, %v1614
      %v1616 = vsel %vm1604, %v1567, %v1615
      %v1617 = vsel %vm1606, %v1571, %v1616
      %v1618 = vsel %vm1608, %v1575, %v1617
      %v1619 = vsel %vm1610, %v1579, %v1618
      %v1620 = vsel %vm1612, %v1583, %v1619
      %v1621 = vsel %vm1600, %v1591, %v1587
      %v1622 = vsel %vm1602, %v1595, %v1621
      %v1623 = vsel %vm1604, %v1599, %v1622
      %v1627 = vadd.f32 %v1064, %v1613
      %v1628 = vadd.f32 %v1065, %v1620
      %v1629 = vadd.f32 %v1066, %v1623
      %vm1630 = vcmask 64512
      %1631 = vst.msk [vmem:[%s7] sm:$0xff] %vm1630, %v1627
      %1632 = vst.msk [vmem:[%s7 + $0x8] sm:$0xff] %vm1630, %v1628
      %vm1633 = vcmask 60416
      %1634 = vst.msk [vmem:[%s7 + $0x10] sm:$0xf] %vm1633, %v1629
    $region57: #{tpu_custom_call.1} parent=1 // pred_fallthru
      _
    // Predicated region
    $region58: #{tpu_custom_call.1} parent=1 // pred_check
      _
    $region59: #{tpu_custom_call.1} parent=1 // pred_check_branch
      %1636 = sbr.rel (%p83) target = $region61
    $region60: #{tpu_custom_call.1} parent=1 // pred_region
      %v1637 = vld [vmem:[%s7] sm:$0xff]
      %v1638 = vld [vmem:[%s7 + $0x8] sm:$0xff]
      %v1639 = vld [vmem:[%s7 + $0x10] sm:$0xf]
      %vm1640 = vcmask 64512
      %v1641 = vsel %vm1640, %v1637, -inf
      %1642 = vmax.xlane.f32.xlu0 %v1641
      %v1643 = vpop.xlane.xlu0 %1642
      %v1644 = vsel %vm1640, %v1638, -inf
      %1645 = vmax.xlane.f32.xlu0 %v1644
      %v1646 = vpop.xlane.xlu0 %1645
      %vm1647 = vcmask 60416
      %v1648 = vsel %vm1647, %v1639, -inf
      %1649 = vmax.xlane.f32.xlu0 %v1648
      %v1650 = vpop.xlane.xlu0 %1649
      %v1651 = vsub.f32 %v1637, %v1643
      %v1652 = vsub.f32 %v1638, %v1646
      %v1653 = vsub.f32 %v1639, %v1650
      %v1654 = vmul.f32 %v1651, 1.442695
      %v1655 = vpow.pop %v1654
      %v1656 = vmul.f32 %v1652, 1.442695
      %v1657 = vpow.pop %v1656
      %v1658 = vmul.f32 %v1653, 1.442695
      %v1659 = vpow.pop %v1658
      %v1660 = vsel %vm1640, %v1655, 0.0
      %1661 = vadd.xlane.f32.xlu0 %v1660
      %v1662 = vpop.xlane.xlu0 %1661
      %v1663 = vsel %vm1640, %v1657, 0.0
      %1664 = vadd.xlane.f32.xlu0 %v1663
      %v1665 = vpop.xlane.xlu0 %1664
      %v1666 = vsel %vm1647, %v1659, 0.0
      %1667 = vadd.xlane.f32.xlu0 %v1666
      %v1668 = vpop.xlane.xlu0 %1667
      %v1669 = vrcp.pop %v1662
      %v1670 = vmul.f32 %v1655, %v1669
      %v1671 = vrcp.pop %v1665
      %v1672 = vmul.f32 %v1657, %v1671
      %v1673 = vrcp.pop %v1668
      %v1674 = vmul.f32 %v1659, %v1673
      %1675 = vst.msk [vmem:[%s7] sm:$0xff] %vm1640, %v1670
      %1676 = vst.msk [vmem:[%s7 + $0x8] sm:$0xff] %vm1640, %v1672
      %1677 = vst.msk [vmem:[%s7 + $0x10] sm:$0xf] %vm1647, %v1674
    $region61: #{tpu_custom_call.1} parent=1 // pred_fallthru
      _
    // Predicated region
    $region62: #{tpu_custom_call.1} parent=1 // pred_check
      _
    $region63: #{tpu_custom_call.1} parent=1 // pred_check_branch
      %1679 = sbr.rel (0) target = $region65
    $region64: #{tpu_custom_call.1} parent=1 // pred_region
      _
    $region65: #{tpu_custom_call.1} parent=1 // pred_fallthru
      _
    // Predicated region
    $region66: #{tpu_custom_call.1} parent=1 // pred_check
      _
    $region67: #{tpu_custom_call.1} parent=1 // pred_check_branch
      %1681 = sbr.rel (0) target = $region69
    $region68: #{tpu_custom_call.1} parent=1 // pred_region
      _
    $region69: #{tpu_custom_call.1} parent=1 // pred_fallthru
      _
    %1682 = vsyncpa [#allocation4], 1
    %1683 = vsyncpa [#allocation6], 1
    %1684 = vsyncpa [#allocation9], 1

</llo_original>
